<compile_context>
chip_gen: v7x
topology: tpu7x:2x2x1
jax: 0.10.0
libtpu: 0.0.40
codegen_flags: <defaults>
</compile_context>

<pallas_src>
import jax
import jax.numpy as jnp
from jax import lax
from jax.experimental import pallas as pl
from jax.experimental.pallas import tpu as pltpu


# ----------------------------------------------------------------------------
# Pallas kernels (transposed layout:  out[Nc, M] = W[Nc, K] @ A[K, M])
# ----------------------------------------------------------------------------
def _mm_kernel_factory(relu_in: bool, relu_out: bool, has_bias: bool):
    def kernel(w_ref, a_ref, *rest):
        if has_bias:
            b_ref, o_ref = rest
        else:
            (o_ref,) = rest
        a = a_ref[...]
        if relu_in:
            a = jnp.maximum(a, 0.0)
        acc = jnp.dot(w_ref[...], a, preferred_element_type=jnp.float32)
        if has_bias:
            acc = acc + b_ref[...]          # (Nc,1) broadcast over lanes
        if relu_out:
            acc = jnp.maximum(acc, 0.0)
        o_ref[...] = acc.astype(o_ref.dtype)
    return kernel


def _res_kernel_factory(final_relu: bool):
    # y = x + W1 @ relu(W3 @ relu(P));  optional trailing ReLU (stack output)
    def kernel(w3_ref, w1_ref, p_ref, x_ref, o_ref):
        p = jnp.maximum(p_ref[...], 0.0)    # relu(patches) == patches(relu(x))
        t = jnp.dot(w3_ref[...], p, preferred_element_type=jnp.float32)
        t = jnp.maximum(t, 0.0)
        y = x_ref[...] + jnp.dot(w1_ref[...], t, preferred_element_type=jnp.float32)
        if final_relu:
            y = jnp.maximum(y, 0.0)
        o_ref[...] = y.astype(o_ref.dtype)
    return kernel


def _pick_tm(M: int, cap: int = 1024) -> int:
    """Largest lane-tile (multiple of 128) that divides M, capped."""
    assert M % 128 == 0, M
    tm = min(M, cap)
    while M % tm != 0:
        tm -= 128
    return tm


def matmul_t(w, a, bias=None, relu_in=False, relu_out=False):
    """out[Nc, M] = maybe_relu( w[Nc, K] @ maybe_relu(a[K, M]) + bias )."""
    Nc, K = w.shape
    K2, M = a.shape
    assert K == K2
    tm = _pick_tm(M)

    in_specs = [
        pl.BlockSpec((Nc, K), lambda i: (0, 0)),     # full weight, resident
        pl.BlockSpec((K, tm), lambda i: (0, i)),     # lane-tiled activation
    ]
    args = [w, a]
    if bias is not None:
        in_specs.append(pl.BlockSpec((Nc, 1), lambda i: (0, 0)))
        args.append(bias.reshape(Nc, 1).astype(jnp.float32))

    return pl.pallas_call(
        _mm_kernel_factory(relu_in, relu_out, bias is not None),
        out_shape=jax.ShapeDtypeStruct((Nc, M), jnp.float32),
        grid_spec=pltpu.PrefetchScalarGridSpec(
            num_scalar_prefetch=0,
            grid=(M // tm,),
            in_specs=in_specs,
            out_specs=pl.BlockSpec((Nc, tm), lambda i: (0, i)),
        ),
        compiler_params=pltpu.CompilerParams(dimension_semantics=("parallel",)),
    )(*args)


def residual_block(w3, w1, p9, x_flat, final_relu=False):
    """One fused residual block:  y = x + W1 @ relu(W3 @ relu(P9)) [; relu]."""
    drh, K = w3.shape
    dh, drh2 = w1.shape
    Kp, M = p9.shape
    assert K == Kp and drh == drh2 and x_flat.shape == (dh, M)
    tm = _pick_tm(M)

    return pl.pallas_call(
        _res_kernel_factory(final_relu),
        out_shape=jax.ShapeDtypeStruct((dh, M), jnp.float32),
        grid_spec=pltpu.PrefetchScalarGridSpec(
            num_scalar_prefetch=0,
            grid=(M // tm,),
            in_specs=[
                pl.BlockSpec((drh, K), lambda i: (0, 0)),   # W3 (full)
                pl.BlockSpec((dh, drh), lambda i: (0, 0)),  # W1 (full)
                pl.BlockSpec((K, tm), lambda i: (0, i)),    # 3x3 patches of x
                pl.BlockSpec((dh, tm), lambda i: (0, i)),   # x (residual input)
            ],
            out_specs=pl.BlockSpec((dh, tm), lambda i: (0, i)),
        ),
        compiler_params=pltpu.CompilerParams(dimension_semantics=("parallel",)),
    )(w3, w1, p9, x_flat)


# ----------------------------------------------------------------------------
# JAX glue (layout plumbing only -- tiny arrays, no heavy compute)
# ----------------------------------------------------------------------------
def patches3x3(x_cnhw):
    """x: (C, N, H, W) -> P9: (9*C, N*H*W); rows ordered (tap=ty*3+tx, c)."""
    C, N, H, W = x_cnhw.shape
    xp = jnp.pad(x_cnhw, ((0, 0), (0, 0), (1, 1), (1, 1)))
    taps = [xp[:, :, ty:ty + H, tx:tx + W] for ty in range(3) for tx in range(3)]
    return jnp.stack(taps, axis=0).reshape(9 * C, N * H * W)


def conv3x3_w(w):
    """PyTorch Conv2d weight (O, I, 3, 3) -> (O, 9*I), cols ordered (ky,kx,i)."""
    O, I, kh, kw = w.shape
    return jnp.transpose(w, (0, 2, 3, 1)).reshape(O, kh * kw * I)


def convT_phase_w(w):
    """ConvTranspose2d weight (I, O, 4, 4) -> stacked 4-phase matrix (4*O, 9*I).

    y[co, n, 2i+a, 2j+b] = sum_{ci,dy,dx} wf[co,ci,2dy+a,2dx+b] * xpad[ci,n,i+a+dy,j+b+dx]
    where wf is the channel-swapped, spatially flipped kernel and xpad is the
    input padded by 1.  Taps (a+dy, b+dx) live inside a 3x3 window, so each
    phase is a (zero-padded) row-block of one weight matrix applied to the
    standard 3x3 patch slab.
    """
    I, O, kh, kw = w.shape
    wf = jnp.transpose(w[:, :, ::-1, ::-1], (1, 0, 2, 3))   # (O, I, ky, kx)
    wall = jnp.zeros((2, 2, O, 3, 3, I), w.dtype)
    for a in range(2):
        for b in range(2):
            for dy in range(2):
                for dx in range(2):
                    wall = wall.at[a, b, :, a + dy, b + dx, :].set(
                        wf[:, :, 2 * dy + a, 2 * dx + b])
    return wall.reshape(4 * O, 9 * I)


def phase_interleave(y_all, Co, N, H, W):
    """(4*Co, N*H*W) phase-stacked result -> (Co, N, 2H, 2W)."""
    y = y_all.reshape(2, 2, Co, N, H, W)            # [a, b, co, n, i, j]
    y = jnp.transpose(y, (2, 3, 4, 0, 5, 1))        # [co, n, i, a, j, b]
    return y.reshape(Co, N, 2 * H, 2 * W)


# ----------------------------------------------------------------------------
# Decoder forward (Pallas path)
# ----------------------------------------------------------------------------
def decoder_forward(params, x_nchw):
    x_nchw = x_nchw.astype(jnp.float32)
    N = x_nchw.shape[0]
    x = jnp.transpose(x_nchw, (1, 0, 2, 3))          # internal layout (C, N, H, W)
    _, _, H, W = x.shape
    dh = params["conv1_w"].shape[0]
    num_res = len(params["res"])

    # conv_1: 3x3, stride 1, pad 1, bias.  (Stack ReLU folded here if no res layers.)
    p9 = patches3x3(x)
    xf = matmul_t(conv3x3_w(params["conv1_w"]), p9, bias=params["conv1_b"],
                  relu_out=(num_res == 0))
    x = xf.reshape(dh, N, H, W)

    # residual stack: one fused pallas_call per block; last block also applies
    # the stack's final ReLU (so the next layer needs no relu_in).
    for li, (w3, w1) in enumerate(params["res"]):
        p9 = patches3x3(x)
        xf = residual_block(conv3x3_w(w3), w1[:, :, 0, 0], p9, x.reshape(dh, -1),
                            final_relu=(li == num_res - 1))
        x = xf.reshape(dh, N, H, W)

    # conv_trans_1 (k=4,s=2,p=1) + F.relu  -- sub-pixel 4-phase, one fused matmul
    Co1 = params["ct1_w"].shape[1]
    p9 = patches3x3(x)
    yall = matmul_t(convT_phase_w(params["ct1_w"]), p9,
                    bias=jnp.tile(params["ct1_b"], 4), relu_out=True)
    x = phase_interleave(yall, Co1, N, H, W)
    H, W = 2 * H, 2 * W

    # conv_trans_2 (k=4,s=2,p=1), no activation
    Co2 = params["ct2_w"].shape[1]
    p9 = patches3x3(x)
    yall = matmul_t(convT_phase_w(params["ct2_w"]), p9,
                    bias=jnp.tile(params["ct2_b"], 4), relu_out=False)
    x = phase_interleave(yall, Co2, N, H, W)         # (3, N, 2H, 2W)

    return jnp.transpose(x, (1, 0, 2, 3))            # back to NCHW
    # TODO(synk): 3x3 tap extraction / phase interleave are layout-only JAX glue
    # between pallas_calls; fully in-kernel halo'd patch construction would cut
    # the remaining (small) HBM duplication further.


# ----------------------------------------------------------------------------
# Pure-JAX reference (XLA convolutions) for correctness checking
# ----------------------------------------------------------------------------
def ref_forward(params, x_nchw):
    dn = ("NHWC", "HWIO", "NHWC")
    x = jnp.transpose(x_nchw, (0, 2, 3, 1)).astype(jnp.float32)

    def conv(x, w, b=None, pad=1):
        wh = jnp.transpose(w, (2, 3, 1, 0))  # (O,I,kh,kw) -> HWIO
        y = lax.conv_general_dilated(x, wh, (1, 1), [(pad, pad), (pad, pad)],
                                     dimension_numbers=dn)
        return y if b is None else y + b

    def convT(x, w, b, k=4, s=2, p=1):
        wh = jnp.transpose(w[:, :, ::-1, ::-1], (2, 3, 0, 1))  # flipped, HWIO
        y = lax.conv_general_dilated(x, wh, (1, 1),
                                     [(k - 1 - p, k - 1 - p)] * 2,
                                     lhs_dilation=(s, s),
                                     dimension_numbers=dn)
        return y + b

    x = conv(x, params["conv1_w"], params["conv1_b"], pad=1)
    for w3, w1 in params["res"]:
        h = jax.nn.relu(x)
        h = conv(h, w3, None, pad=1)
        h = jax.nn.relu(h)
        h = conv(h, w1, None, pad=0)
        x = x + h
    x = jax.nn.relu(x)
    x = jax.nn.relu(convT(x, params["ct1_w"], params["ct1_b"]))
    x = convT(x, params["ct2_w"], params["ct2_b"])
    return jnp.transpose(x, (0, 3, 1, 2))


# ----------------------------------------------------------------------------
# Deterministic parameter init (synthetic; matches PyTorch __init__ shapes)
# ----------------------------------------------------------------------------
def init_params(key, in_channels, dh, num_res, drh):
    n_keys = 6 + 2 * num_res
    ks = list(jax.random.split(key, n_keys))

    def w(shape, scale=0.05):
        return scale * jax.random.normal(ks.pop(), shape, jnp.float32)

    return {
        "conv1_w": w((dh, in_channels, 3, 3)),
        "conv1_b": w((dh,)),
        "res": [(w((drh, dh, 3, 3)), w((dh, drh, 1, 1))) for _ in range(num_res)],
        "ct1_w": w((dh, dh // 2, 4, 4)),
        "ct1_b": w((dh // 2,)),
        "ct2_w": w((dh // 2, 3, 4, 4)),
        "ct2_b": w((3,)),
    }


if __name__ == "__main__":
    in_channels, dim_hidden, num_residual_layers, dim_residual_hidden = 4, 32, 2, 8
    key = jax.random.PRNGKey(0)
    kp, kx = jax.random.split(key)
    params = init_params(kp, in_channels, dim_hidden, num_residual_layers,
                         dim_residual_hidden)
    x = jax.random.normal(kx, (2, in_channels, 16, 16), jnp.float32)

    out = jax.jit(decoder_forward)(params, x)
    out = jax.block_until_ready(out)

    assert out.shape == (2, 3, 64, 64), out.shape

    ref = ref_forward(params, x)
    # Tolerance accounts for MXU default f32 matmul precision (bf16 passes) in
    # both the Pallas path and the XLA conv reference.
    rel_err = float(jnp.max(jnp.abs(out - ref)) / (jnp.max(jnp.abs(ref)) + 1e-6))
    assert rel_err < 5e-2, f"relative error too large: {rel_err}"

    print("KERNEL_OK")
</pallas_src>

<mosaic_0001>
module attributes {stable_mosaic.version = 11 : i64} {
  func.func @kernel(%arg0: i32, %arg1: memref<32x36xf32, #tpu.memory_space<vmem>>, %arg2: memref<36x512xf32, #tpu.memory_space<vmem>>, %arg3: memref<32x1xf32, #tpu.memory_space<vmem>>, %arg4: memref<32x512xf32, #tpu.memory_space<vmem>>) attributes {dimension_semantics = [#tpu.dimension_semantics<parallel>], iteration_bounds = array<i64: 1>, scalar_prefetch = 0 : i64, scratch_operands = 0 : i64, tpu.core_type = #tpu.core_type<tc>, window_params = [{pipeline_mode = #tpu.pipeline_mode<synchronous>, transform_indices = @transform_0, window_bounds = array<i64: 32, 36>}, {transform_indices = @transform_1, window_bounds = array<i64: 36, 512>}, {pipeline_mode = #tpu.pipeline_mode<synchronous>, transform_indices = @transform_2, window_bounds = array<i64: 32, 1>}, {transform_indices = @transform_3, window_bounds = array<i64: 32, 512>}]} {
    %c0 = arith.constant 0 : index
    %c0_0 = arith.constant 0 : index
    %0 = vector.load %arg2[%c0, %c0_0] : memref<36x512xf32, #tpu.memory_space<vmem>>, vector<36x512xf32>
    %c0_1 = arith.constant 0 : index
    %c0_2 = arith.constant 0 : index
    %1 = vector.load %arg1[%c0_1, %c0_2] : memref<32x36xf32, #tpu.memory_space<vmem>>, vector<32x36xf32>
    %cst = arith.constant dense<0.000000e+00> : vector<32x512xf32>
    %2 = tpu.matmul %1, %0, %cst {dimension_numbers = #tpu.dot_dimension_numbers<[1], [0], [0], [1], [0, 0, 1, 1], [], []>} : vector<32x36xf32>, vector<36x512xf32>, vector<32x512xf32> -> vector<32x512xf32>
    %c0_3 = arith.constant 0 : index
    %c0_4 = arith.constant 0 : index
    %3 = vector.load %arg3[%c0_3, %c0_4] : memref<32x1xf32, #tpu.memory_space<vmem>>, vector<32x1xf32>
    %4 = vector.broadcast %3 : vector<32x1xf32> to vector<32x512xf32>
    %5 = arith.addf %2, %4 : vector<32x512xf32>
    %c0_5 = arith.constant 0 : index
    %c0_6 = arith.constant 0 : index
    %6 = vector.load %arg4[%c0_5, %c0_6] : memref<32x512xf32, #tpu.memory_space<vmem>>, vector<32x512xf32>
    tpu.vector_store %arg4[%c0_5, %c0_6], %5 {strides = array<i32>} : memref<32x512xf32, #tpu.memory_space<vmem>>, vector<32x512xf32>,
    return
  }
  func.func @transform_0(%arg0: i32) -> (i32, i32) {
    %c0_i32 = arith.constant 0 : i32
    %c0_i32_0 = arith.constant 0 : i32
    %c0_i32_1 = arith.constant 0 : i32
    return %c0_i32, %c0_i32_0 : i32, i32
  }
  func.func @transform_1(%arg0: i32) -> (i32, i32) {
    %c0_i32 = arith.constant 0 : i32
    %c0_i32_0 = arith.constant 0 : i32
    return %c0_i32, %arg0 : i32, i32
  }
  func.func @transform_2(%arg0: i32) -> (i32, i32) {
    %c0_i32 = arith.constant 0 : i32
    %c0_i32_0 = arith.constant 0 : i32
    %c0_i32_1 = arith.constant 0 : i32
    return %c0_i32, %c0_i32_0 : i32, i32
  }
  func.func @transform_3(%arg0: i32) -> (i32, i32) {
    %c0_i32 = arith.constant 0 : i32
    %c0_i32_0 = arith.constant 0 : i32
    return %c0_i32, %arg0 : i32, i32
  }
}

module attributes {stable_mosaic.version = 11 : i64} {
  func.func @kernel(%arg0: i32, %arg1: memref<8x288xf32, #tpu.memory_space<vmem>>, %arg2: memref<32x8xf32, #tpu.memory_space<vmem>>, %arg3: memref<288x512xf32, #tpu.memory_space<vmem>>, %arg4: memref<32x512xf32, #tpu.memory_space<vmem>>, %arg5: memref<32x512xf32, #tpu.memory_space<vmem>>) attributes {dimension_semantics = [#tpu.dimension_semantics<parallel>], iteration_bounds = array<i64: 1>, scalar_prefetch = 0 : i64, scratch_operands = 0 : i64, tpu.core_type = #tpu.core_type<tc>, window_params = [{pipeline_mode = #tpu.pipeline_mode<synchronous>, transform_indices = @transform_0, window_bounds = array<i64: 8, 288>}, {pipeline_mode = #tpu.pipeline_mode<synchronous>, transform_indices = @transform_1, window_bounds = array<i64: 32, 8>}, {transform_indices = @transform_2, window_bounds = array<i64: 288, 512>}, {transform_indices = @transform_3, window_bounds = array<i64: 32, 512>}, {transform_indices = @transform_4, window_bounds = array<i64: 32, 512>}]} {
    %c0 = arith.constant 0 : index
    %c0_0 = arith.constant 0 : index
    %0 = vector.load %arg3[%c0, %c0_0] : memref<288x512xf32, #tpu.memory_space<vmem>>, vector<288x512xf32>
    %cst = arith.constant 0.000000e+00 : f32
    %1 = vector.broadcast %cst : f32 to vector<288x512xf32>
    %2 = arith.maximumf %0, %1 : vector<288x512xf32>
    %c0_1 = arith.constant 0 : index
    %c0_2 = arith.constant 0 : index
    %3 = vector.load %arg1[%c0_1, %c0_2] : memref<8x288xf32, #tpu.memory_space<vmem>>, vector<8x288xf32>
    %cst_3 = arith.constant dense<0.000000e+00> : vector<8x512xf32>
    %4 = tpu.matmul %3, %2, %cst_3 {dimension_numbers = #tpu.dot_dimension_numbers<[1], [0], [0], [1], [0, 0, 1, 1], [], []>} : vector<8x288xf32>, vector<288x512xf32>, vector<8x512xf32> -> vector<8x512xf32>
    %cst_4 = arith.constant 0.000000e+00 : f32
    %5 = vector.broadcast %cst_4 : f32 to vector<8x512xf32>
    %6 = arith.maximumf %4, %5 : vector<8x512xf32>
    %c0_5 = arith.constant 0 : index
    %c0_6 = arith.constant 0 : index
    %7 = vector.load %arg4[%c0_5, %c0_6] : memref<32x512xf32, #tpu.memory_space<vmem>>, vector<32x512xf32>
    %c0_7 = arith.constant 0 : index
    %c0_8 = arith.constant 0 : index
    %8 = vector.load %arg2[%c0_7, %c0_8] : memref<32x8xf32, #tpu.memory_space<vmem>>, vector<32x8xf32>
    %cst_9 = arith.constant dense<0.000000e+00> : vector<32x512xf32>
    %9 = tpu.matmul %8, %6, %cst_9 {dimension_numbers = #tpu.dot_dimension_numbers<[1], [0], [0], [1], [0, 0, 1, 1], [], []>} : vector<32x8xf32>, vector<8x512xf32>, vector<32x512xf32> -> vector<32x512xf32>
    %10 = arith.addf %7, %9 : vector<32x512xf32>
    %c0_10 = arith.constant 0 : index
    %c0_11 = arith.constant 0 : index
    %11 = vector.load %arg5[%c0_10, %c0_11] : memref<32x512xf32, #tpu.memory_space<vmem>>, vector<32x512xf32>
    tpu.vector_store %arg5[%c0_10, %c0_11], %10 {strides = array<i32>} : memref<32x512xf32, #tpu.memory_space<vmem>>, vector<32x512xf32>,
    return
  }
  func.func @transform_0(%arg0: i32) -> (i32, i32) {
    %c0_i32 = arith.constant 0 : i32
    %c0_i32_0 = arith.constant 0 : i32
    %c0_i32_1 = arith.constant 0 : i32
    return %c0_i32, %c0_i32_0 : i32, i32
  }
  func.func @transform_1(%arg0: i32) -> (i32, i32) {
    %c0_i32 = arith.constant 0 : i32
    %c0_i32_0 = arith.constant 0 : i32
    %c0_i32_1 = arith.constant 0 : i32
    return %c0_i32, %c0_i32_0 : i32, i32
  }
  func.func @transform_2(%arg0: i32) -> (i32, i32) {
    %c0_i32 = arith.constant 0 : i32
    %c0_i32_0 = arith.constant 0 : i32
    return %c0_i32, %arg0 : i32, i32
  }
  func.func @transform_3(%arg0: i32) -> (i32, i32) {
    %c0_i32 = arith.constant 0 : i32
    %c0_i32_0 = arith.constant 0 : i32
    return %c0_i32, %arg0 : i32, i32
  }
  func.func @transform_4(%arg0: i32) -> (i32, i32) {
    %c0_i32 = arith.constant 0 : i32
    %c0_i32_0 = arith.constant 0 : i32
    return %c0_i32, %arg0 : i32, i32
  }
}

module attributes {stable_mosaic.version = 11 : i64} {
  func.func @kernel(%arg0: i32, %arg1: memref<8x288xf32, #tpu.memory_space<vmem>>, %arg2: memref<32x8xf32, #tpu.memory_space<vmem>>, %arg3: memref<288x512xf32, #tpu.memory_space<vmem>>, %arg4: memref<32x512xf32, #tpu.memory_space<vmem>>, %arg5: memref<32x512xf32, #tpu.memory_space<vmem>>) attributes {dimension_semantics = [#tpu.dimension_semantics<parallel>], iteration_bounds = array<i64: 1>, scalar_prefetch = 0 : i64, scratch_operands = 0 : i64, tpu.core_type = #tpu.core_type<tc>, window_params = [{pipeline_mode = #tpu.pipeline_mode<synchronous>, transform_indices = @transform_0, window_bounds = array<i64: 8, 288>}, {pipeline_mode = #tpu.pipeline_mode<synchronous>, transform_indices = @transform_1, window_bounds = array<i64: 32, 8>}, {transform_indices = @transform_2, window_bounds = array<i64: 288, 512>}, {transform_indices = @transform_3, window_bounds = array<i64: 32, 512>}, {transform_indices = @transform_4, window_bounds = array<i64: 32, 512>}]} {
    %c0 = arith.constant 0 : index
    %c0_0 = arith.constant 0 : index
    %0 = vector.load %arg3[%c0, %c0_0] : memref<288x512xf32, #tpu.memory_space<vmem>>, vector<288x512xf32>
    %cst = arith.constant 0.000000e+00 : f32
    %1 = vector.broadcast %cst : f32 to vector<288x512xf32>
    %2 = arith.maximumf %0, %1 : vector<288x512xf32>
    %c0_1 = arith.constant 0 : index
    %c0_2 = arith.constant 0 : index
    %3 = vector.load %arg1[%c0_1, %c0_2] : memref<8x288xf32, #tpu.memory_space<vmem>>, vector<8x288xf32>
    %cst_3 = arith.constant dense<0.000000e+00> : vector<8x512xf32>
    %4 = tpu.matmul %3, %2, %cst_3 {dimension_numbers = #tpu.dot_dimension_numbers<[1], [0], [0], [1], [0, 0, 1, 1], [], []>} : vector<8x288xf32>, vector<288x512xf32>, vector<8x512xf32> -> vector<8x512xf32>
    %cst_4 = arith.constant 0.000000e+00 : f32
    %5 = vector.broadcast %cst_4 : f32 to vector<8x512xf32>
    %6 = arith.maximumf %4, %5 : vector<8x512xf32>
    %c0_5 = arith.constant 0 : index
    %c0_6 = arith.constant 0 : index
    %7 = vector.load %arg4[%c0_5, %c0_6] : memref<32x512xf32, #tpu.memory_space<vmem>>, vector<32x512xf32>
    %c0_7 = arith.constant 0 : index
    %c0_8 = arith.constant 0 : index
    %8 = vector.load %arg2[%c0_7, %c0_8] : memref<32x8xf32, #tpu.memory_space<vmem>>, vector<32x8xf32>
    %cst_9 = arith.constant dense<0.000000e+00> : vector<32x512xf32>
    %9 = tpu.matmul %8, %6, %cst_9 {dimension_numbers = #tpu.dot_dimension_numbers<[1], [0], [0], [1], [0, 0, 1, 1], [], []>} : vector<32x8xf32>, vector<8x512xf32>, vector<32x512xf32> -> vector<32x512xf32>
    %10 = arith.addf %7, %9 : vector<32x512xf32>
    %cst_10 = arith.constant 0.000000e+00 : f32
    %11 = vector.broadcast %cst_10 : f32 to vector<32x512xf32>
    %12 = arith.maximumf %10, %11 : vector<32x512xf32>
    %c0_11 = arith.constant 0 : index
    %c0_12 = arith.constant 0 : index
    %13 = vector.load %arg5[%c0_11, %c0_12] : memref<32x512xf32, #tpu.memory_space<vmem>>, vector<32x512xf32>
    tpu.vector_store %arg5[%c0_11, %c0_12], %12 {strides = array<i32>} : memref<32x512xf32, #tpu.memory_space<vmem>>, vector<32x512xf32>,
    return
  }
  func.func @transform_0(%arg0: i32) -> (i32, i32) {
    %c0_i32 = arith.constant 0 : i32
    %c0_i32_0 = arith.constant 0 : i32
    %c0_i32_1 = arith.constant 0 : i32
    return %c0_i32, %c0_i32_0 : i32, i32
  }
  func.func @transform_1(%arg0: i32) -> (i32, i32) {
    %c0_i32 = arith.constant 0 : i32
    %c0_i32_0 = arith.constant 0 : i32
    %c0_i32_1 = arith.constant 0 : i32
    return %c0_i32, %c0_i32_0 : i32, i32
  }
  func.func @transform_2(%arg0: i32) -> (i32, i32) {
    %c0_i32 = arith.constant 0 : i32
    %c0_i32_0 = arith.constant 0 : i32
    return %c0_i32, %arg0 : i32, i32
  }
  func.func @transform_3(%arg0: i32) -> (i32, i32) {
    %c0_i32 = arith.constant 0 : i32
    %c0_i32_0 = arith.constant 0 : i32
    return %c0_i32, %arg0 : i32, i32
  }
  func.func @transform_4(%arg0: i32) -> (i32, i32) {
    %c0_i32 = arith.constant 0 : i32
    %c0_i32_0 = arith.constant 0 : i32
    return %c0_i32, %arg0 : i32, i32
  }
}

module attributes {stable_mosaic.version = 11 : i64} {
  func.func @kernel(%arg0: i32, %arg1: memref<64x288xf32, #tpu.memory_space<vmem>>, %arg2: memref<288x512xf32, #tpu.memory_space<vmem>>, %arg3: memref<64x1xf32, #tpu.memory_space<vmem>>, %arg4: memref<64x512xf32, #tpu.memory_space<vmem>>) attributes {dimension_semantics = [#tpu.dimension_semantics<parallel>], iteration_bounds = array<i64: 1>, scalar_prefetch = 0 : i64, scratch_operands = 0 : i64, tpu.core_type = #tpu.core_type<tc>, window_params = [{pipeline_mode = #tpu.pipeline_mode<synchronous>, transform_indices = @transform_0, window_bounds = array<i64: 64, 288>}, {transform_indices = @transform_1, window_bounds = array<i64: 288, 512>}, {pipeline_mode = #tpu.pipeline_mode<synchronous>, transform_indices = @transform_2, window_bounds = array<i64: 64, 1>}, {transform_indices = @transform_3, window_bounds = array<i64: 64, 512>}]} {
    %c0 = arith.constant 0 : index
    %c0_0 = arith.constant 0 : index
    %0 = vector.load %arg2[%c0, %c0_0] : memref<288x512xf32, #tpu.memory_space<vmem>>, vector<288x512xf32>
    %c0_1 = arith.constant 0 : index
    %c0_2 = arith.constant 0 : index
    %1 = vector.load %arg1[%c0_1, %c0_2] : memref<64x288xf32, #tpu.memory_space<vmem>>, vector<64x288xf32>
    %cst = arith.constant dense<0.000000e+00> : vector<64x512xf32>
    %2 = tpu.matmul %1, %0, %cst {dimension_numbers = #tpu.dot_dimension_numbers<[1], [0], [0], [1], [0, 0, 1, 1], [], []>} : vector<64x288xf32>, vector<288x512xf32>, vector<64x512xf32> -> vector<64x512xf32>
    %c0_3 = arith.constant 0 : index
    %c0_4 = arith.constant 0 : index
    %3 = vector.load %arg3[%c0_3, %c0_4] : memref<64x1xf32, #tpu.memory_space<vmem>>, vector<64x1xf32>
    %4 = vector.broadcast %3 : vector<64x1xf32> to vector<64x512xf32>
    %5 = arith.addf %2, %4 : vector<64x512xf32>
    %cst_5 = arith.constant 0.000000e+00 : f32
    %6 = vector.broadcast %cst_5 : f32 to vector<64x512xf32>
    %7 = arith.maximumf %5, %6 : vector<64x512xf32>
    %c0_6 = arith.constant 0 : index
    %c0_7 = arith.constant 0 : index
    %8 = vector.load %arg4[%c0_6, %c0_7] : memref<64x512xf32, #tpu.memory_space<vmem>>, vector<64x512xf32>
    tpu.vector_store %arg4[%c0_6, %c0_7], %7 {strides = array<i32>} : memref<64x512xf32, #tpu.memory_space<vmem>>, vector<64x512xf32>,
    return
  }
  func.func @transform_0(%arg0: i32) -> (i32, i32) {
    %c0_i32 = arith.constant 0 : i32
    %c0_i32_0 = arith.constant 0 : i32
    %c0_i32_1 = arith.constant 0 : i32
    return %c0_i32, %c0_i32_0 : i32, i32
  }
  func.func @transform_1(%arg0: i32) -> (i32, i32) {
    %c0_i32 = arith.constant 0 : i32
    %c0_i32_0 = arith.constant 0 : i32
    return %c0_i32, %arg0 : i32, i32
  }
  func.func @transform_2(%arg0: i32) -> (i32, i32) {
    %c0_i32 = arith.constant 0 : i32
    %c0_i32_0 = arith.constant 0 : i32
    %c0_i32_1 = arith.constant 0 : i32
    return %c0_i32, %c0_i32_0 : i32, i32
  }
  func.func @transform_3(%arg0: i32) -> (i32, i32) {
    %c0_i32 = arith.constant 0 : i32
    %c0_i32_0 = arith.constant 0 : i32
    return %c0_i32, %arg0 : i32, i32
  }
}

module attributes {stable_mosaic.version = 11 : i64} {
  func.func @kernel(%arg0: i32, %arg1: memref<12x144xf32, #tpu.memory_space<vmem>>, %arg2: memref<144x1024xf32, #tpu.memory_space<vmem>>, %arg3: memref<12x1xf32, #tpu.memory_space<vmem>>, %arg4: memref<12x1024xf32, #tpu.memory_space<vmem>>) attributes {dimension_semantics = [#tpu.dimension_semantics<parallel>], iteration_bounds = array<i64: 2>, scalar_prefetch = 0 : i64, scratch_operands = 0 : i64, tpu.core_type = #tpu.core_type<tc>, window_params = [{pipeline_mode = #tpu.pipeline_mode<synchronous>, transform_indices = @transform_0, window_bounds = array<i64: 12, 144>}, {transform_indices = @transform_1, window_bounds = array<i64: 144, 1024>}, {pipeline_mode = #tpu.pipeline_mode<synchronous>, transform_indices = @transform_2, window_bounds = array<i64: 12, 1>}, {transform_indices = @transform_3, window_bounds = array<i64: 12, 1024>}]} {
    %c0 = arith.constant 0 : index
    %c0_0 = arith.constant 0 : index
    %0 = vector.load %arg2[%c0, %c0_0] : memref<144x1024xf32, #tpu.memory_space<vmem>>, vector<144x1024xf32>
    %c0_1 = arith.constant 0 : index
    %c0_2 = arith.constant 0 : index
    %1 = vector.load %arg1[%c0_1, %c0_2] : memref<12x144xf32, #tpu.memory_space<vmem>>, vector<12x144xf32>
    %cst = arith.constant dense<0.000000e+00> : vector<12x1024xf32>
    %2 = tpu.matmul %1, %0, %cst {dimension_numbers = #tpu.dot_dimension_numbers<[1], [0], [0], [1], [0, 0, 1, 1], [], []>} : vector<12x144xf32>, vector<144x1024xf32>, vector<12x1024xf32> -> vector<12x1024xf32>
    %c0_3 = arith.constant 0 : index
    %c0_4 = arith.constant 0 : index
    %3 = vector.load %arg3[%c0_3, %c0_4] : memref<12x1xf32, #tpu.memory_space<vmem>>, vector<12x1xf32>
    %4 = vector.broadcast %3 : vector<12x1xf32> to vector<12x1024xf32>
    %5 = arith.addf %2, %4 : vector<12x1024xf32>
    %c0_5 = arith.constant 0 : index
    %c0_6 = arith.constant 0 : index
    %6 = vector.load %arg4[%c0_5, %c0_6] : memref<12x1024xf32, #tpu.memory_space<vmem>>, vector<12x1024xf32>
    tpu.vector_store %arg4[%c0_5, %c0_6], %5 {strides = array<i32>} : memref<12x1024xf32, #tpu.memory_space<vmem>>, vector<12x1024xf32>,
    return
  }
  func.func @transform_0(%arg0: i32) -> (i32, i32) {
    %c0_i32 = arith.constant 0 : i32
    %c0_i32_0 = arith.constant 0 : i32
    %c0_i32_1 = arith.constant 0 : i32
    return %c0_i32, %c0_i32_0 : i32, i32
  }
  func.func @transform_1(%arg0: i32) -> (i32, i32) {
    %c0_i32 = arith.constant 0 : i32
    %c0_i32_0 = arith.constant 0 : i32
    return %c0_i32, %arg0 : i32, i32
  }
  func.func @transform_2(%arg0: i32) -> (i32, i32) {
    %c0_i32 = arith.constant 0 : i32
    %c0_i32_0 = arith.constant 0 : i32
    %c0_i32_1 = arith.constant 0 : i32
    return %c0_i32, %c0_i32_0 : i32, i32
  }
  func.func @transform_3(%arg0: i32) -> (i32, i32) {
    %c0_i32 = arith.constant 0 : i32
    %c0_i32_0 = arith.constant 0 : i32
    return %c0_i32, %arg0 : i32, i32
  }
}

</mosaic_0001>

<llo_original>
// kernel: decoder_forward.5
$region0: #{decoder_forward.5}
  #allocation0 [shape = 'u32[]', space=smem, size = 0x4, offset = 0x4, fixed_abs, tag = 'smem constant byte address 0x4 - core index']
  #allocation1 [shape = 'u32[144,128]{1,0:T(1,128)}', space=vmem, size = 0x12000, scoped, tag = 'internal scratch']
  %s0 = inlined_call_operand.vmem [shape: f32[32,36], index: 0, kind: input, shape index: {}]
  %s1 = inlined_call_operand.vmem [shape: f32[36,512], index: 1, kind: input, shape index: {}]
  %s2 = inlined_call_operand.vmem [shape: f32[32,1], index: 2, kind: input, shape index: {}]
  %s3 = inlined_call_operand.vmem [shape: f32[32,512], index: 3, kind: output, shape index: {}]
  %s4 = sld [smem:[#allocation0]]
  $region22: #{decoder_forward.5} parent=0
    _
  %s6 = ssub.s32 1, %s4
  %s7 = scalar_select 0, %s6, %s4
  // Predicated region
  $region2: #{decoder_forward.5} parent=0 // pred_check
    _
  $region3: #{decoder_forward.5} parent=0 // pred_check_branch
    %9 = sbr.rel (0) target = $region5
  $region4: #{decoder_forward.5} parent=0 // pred_region
    _
  $region5: #{decoder_forward.5} parent=0 // pred_fallthru
    _
  // Predicated region
  $region6: #{decoder_forward.5} parent=0 // pred_check
    _
  $region7: #{decoder_forward.5} parent=0 // pred_check_branch
    %11 = sbr.rel (0) target = $region9
  $region8: #{decoder_forward.5} parent=0 // pred_region
    _
  $region9: #{decoder_forward.5} parent=0 // pred_fallthru
    _
  // Predicated region
  $region10: #{decoder_forward.5} parent=0 // pred_check
    _
  $region11: #{decoder_forward.5} parent=0 // pred_check_branch
    %13 = sbr.rel (0) target = $region13
  $region12: #{decoder_forward.5} parent=0 // pred_region
    _
  $region13: #{decoder_forward.5} parent=0 // pred_fallthru
    _
  %v14 = vld [vmem:[%s1] sm:$0xff]
  %v15 = vld [vmem:[%s1 + $0x8] sm:$0xff]
  %v16 = vld [vmem:[%s1 + $0x10] sm:$0xff]
  %v17 = vld [vmem:[%s1 + $0x18] sm:$0xff]
  %v18 = vld [vmem:[%s1 + $0x20] sm:$0xff]
  %v19 = vld [vmem:[%s1 + $0x28] sm:$0xff]
  %v20 = vld [vmem:[%s1 + $0x30] sm:$0xff]
  %v21 = vld [vmem:[%s1 + $0x38] sm:$0xff]
  %v22 = vld [vmem:[%s1 + $0x40] sm:$0xff]
  %v23 = vld [vmem:[%s1 + $0x48] sm:$0xff]
  %v24 = vld [vmem:[%s1 + $0x50] sm:$0xff]
  %v25 = vld [vmem:[%s1 + $0x58] sm:$0xff]
  %v26 = vld [vmem:[%s1 + $0x60] sm:$0xff]
  %v27 = vld [vmem:[%s1 + $0x68] sm:$0xff]
  %v28 = vld [vmem:[%s1 + $0x70] sm:$0xff]
  %v29 = vld [vmem:[%s1 + $0x78] sm:$0xff]
  %v30 = vld [vmem:[%s1 + $0x80] sm:$0xf]
  %v31 = vld [vmem:[%s1 + $0x88] sm:$0xf]
  %v32 = vld [vmem:[%s1 + $0x90] sm:$0xf]
  %v33 = vld [vmem:[%s1 + $0x98] sm:$0xf]
  %v34 = vld [vmem:[%s0] sm:$0xff]
  %v35 = vld [vmem:[%s0 + $0x8] sm:$0xff]
  %v36 = vld [vmem:[%s0 + $0x10] sm:$0xff]
  %v37 = vld [vmem:[%s0 + $0x18] sm:$0xff]
  %v38 = vld [vmem:[%s2] sm:$0xff]
  %v39 = vld [vmem:[%s2 + $0x8] sm:$0xff]
  %v40 = vld [vmem:[%s2 + $0x10] sm:$0xff]
  %v41 = vld [vmem:[%s2 + $0x18] sm:$0xff]
  %43 = vset.pattern.permute.xlu0 0
  %44 = vperm.xlu0 %43, %v38
  %v45 = vpop.permute.xlu0 %44
  %48 = vset.pattern.permute.xlu0 0
  %49 = vperm.xlu0 %48, %v39
  %v50 = vpop.permute.xlu0 %49
  %53 = vset.pattern.permute.xlu0 0
  %54 = vperm.xlu0 %53, %v40
  %v55 = vpop.permute.xlu0 %54
  %58 = vset.pattern.permute.xlu0 0
  %59 = vperm.xlu0 %58, %v41
  %v60 = vpop.permute.xlu0 %59
  %vm62 = vcmask 293888
  %v64 = vsel %vm62, %v34, 0
  %v67 = vsel %vm62, %v35, 0
  %v70 = vsel %vm62, %v36, 0
  %v73 = vsel %vm62, %v37, 0
  %vm75 = vcmask 1043456
  %v77 = vsel %vm75, %v30, 0
  %v80 = vsel %vm75, %v31, 0
  %v83 = vsel %vm75, %v32, 0
  %v86 = vsel %vm75, %v33, 0
  %88 = vmatprep.subr.mxu0 %v15
  %89 = vmatpush1.msra.mxu0 %v14
  %90 = vmatprep.subr.mxu0 %v19
  %91 = vmatpush1.msra.mxu0 %v18
  %92 = vmatprep.subr.mxu0 %v23
  %93 = vmatpush1.msra.mxu0 %v22
  %94 = vmatprep.subr.mxu0 %v27
  %95 = vmatpush1.msra.mxu0 %v26
  %96 = vmatprep.subr.mxu0 %v80
  %97 = vmatpush1.msra.mxu0 %v77
  %98 = vmatprep.subr.mxu0 0.0
  %99 = vmatpush1.msra.mxu0 0.0
  %100 = vmatprep.subr.mxu0 0.0
  %101 = vmatpush1.msra.mxu0 0.0
  %102 = vmatprep.subr.mxu0 0.0
  %103 = vmatpush1.msra.mxu0 0.0
  %104 = vmatprep.subr.mxu0 0.0
  %105 = vmatpush1.msra.mxu0 0.0
  %106 = vmatprep.subr.mxu0 0.0
  %107 = vmatpush1.msra.mxu0 0.0
  %108 = vmatprep.subr.mxu0 0.0
  %109 = vmatpush1.msra.mxu0 0.0
  %110 = vmatprep.subr.mxu0 0.0
  %111 = vmatpush1.msra.mxu0 0.0
  %112 = vmatprep.subr.mxu0 0.0
  %113 = vmatpush1.msra.mxu0 0.0
  %114 = vmatprep.subr.mxu0 0.0
  %115 = vmatpush1.msra.mxu0 0.0
  %116 = vmatprep.subr.mxu0 0.0
  %117 = vmatpush1.msra.mxu0 0.0
  %118 = vmatprep.subr.mxu0 0.0
  %119 = vmatpush1.msra.mxu0 0.0
  %120 = vmatprep.subr.mxu0 0.0
  %121 = vmatpush1.msra.mxu0 0.0
  %122 = vmatprep.subr.mxu0 0.0
  %123 = vmatpush1.msra.mxu0 0.0
  %124 = vmatprep.subr.mxu0 0.0
  %125 = vmatpush1.msra.mxu0 0.0
  %126 = vmatprep.subr.mxu0 0.0
  %127 = vmatpush1.msra.mxu0 0.0
  %128 = vmatprep.subr.mxu0 0.0
  %129 = vmatpush1.msra.mxu0 0.0
  %130 = vmatprep.subr.mxu0 0.0
  %131 = vmatpush1.msra.mxu0 0.0
  %132 = vmatprep.subr.mxu0 0.0
  %133 = vmatpush1.msra.mxu0 0.0
  %134 = vmatprep.subr.mxu0 0.0
  %135 = vmatpush1.msra.mxu0 0.0
  %136 = vmatprep.subr.mxu0 0.0
  %137 = vmatpush1.msra.mxu0 0.0
  %138 = vmatprep.subr.mxu0 0.0
  %139 = vmatpush1.msra.mxu0 0.0
  %140 = vmatprep.subr.mxu0 0.0
  %141 = vmatpush1.msra.mxu0 0.0
  %142 = vmatprep.subr.mxu0 0.0
  %143 = vmatpush1.msra.mxu0 0.0
  %144 = vmatprep.subr.mxu0 0.0
  %145 = vmatpush1.msra.mxu0 0.0
  %146 = vmatprep.subr.mxu0 0.0
  %147 = vmatpush1.msra.mxu0 0.0
  %148 = vmatprep.subr.mxu0 0.0
  %149 = vmatpush1.msra.mxu0 0.0
  %150 = vmatprep.subr.mxu0 0.0
  %151 = vmatpush1.msra.mxu0 0.0
  %152 = vmatprep.mubr.f32.mxu0 0.0
  %153 = vmatmul.mubr.f32.gmra.mrb[0].mxu0 %v64
  %v154 = vpop.f32.mrb[0].mxu0
  %v155 = vadd.f32 %v45, %v154
  %v156 = vpop.f32.mrb[0].mxu0
  %v157 = vadd.f32 %v45, %v156
  %158 = vmatprep.mubr.f32.mxu0 0.0
  %159 = vmatmul.mubr.f32.gmra.mrb[0].mxu0 %v67
  %v160 = vpop.f32.mrb[0].mxu0
  %v161 = vadd.f32 %v50, %v160
  %v162 = vpop.f32.mrb[0].mxu0
  %v163 = vadd.f32 %v50, %v162
  %164 = vmatprep.mubr.f32.mxu0 0.0
  %165 = vmatmul.mubr.f32.gmra.mrb[0].mxu0 %v70
  %v166 = vpop.f32.mrb[0].mxu0
  %v167 = vadd.f32 %v55, %v166
  %v168 = vpop.f32.mrb[0].mxu0
  %v169 = vadd.f32 %v55, %v168
  %170 = vmatprep.mubr.f32.mxu0 0.0
  %171 = vmatmul.mubr.f32.gmra.mrb[0].mxu0 %v73
  %v172 = vpop.f32.mrb[0].mxu0
  %v173 = vadd.f32 %v60, %v172
  %v174 = vpop.f32.mrb[0].mxu0
  %v175 = vadd.f32 %v60, %v174
  %176 = vdwg.mxu0
  %177 = vmatprep.subr.mxu0 %v17
  %178 = vmatpush1.msra.mxu0 %v16
  %179 = vmatprep.subr.mxu0 %v21
  %180 = vmatpush1.msra.mxu0 %v20
  %181 = vmatprep.subr.mxu0 %v25
  %182 = vmatpush1.msra.mxu0 %v24
  %183 = vmatprep.subr.mxu0 %v29
  %184 = vmatpush1.msra.mxu0 %v28
  %185 = vmatprep.subr.mxu0 %v86
  %186 = vmatpush1.msra.mxu0 %v83
  %187 = vmatprep.subr.mxu0 0.0
  %188 = vmatpush1.msra.mxu0 0.0
  %189 = vmatprep.subr.mxu0 0.0
  %190 = vmatpush1.msra.mxu0 0.0
  %191 = vmatprep.subr.mxu0 0.0
  %192 = vmatpush1.msra.mxu0 0.0
  %193 = vmatprep.subr.mxu0 0.0
  %194 = vmatpush1.msra.mxu0 0.0
  %195 = vmatprep.subr.mxu0 0.0
  %196 = vmatpush1.msra.mxu0 0.0
  %197 = vmatprep.subr.mxu0 0.0
  %198 = vmatpush1.msra.mxu0 0.0
  %199 = vmatprep.subr.mxu0 0.0
  %200 = vmatpush1.msra.mxu0 0.0
  %201 = vmatprep.subr.mxu0 0.0
  %202 = vmatpush1.msra.mxu0 0.0
  %203 = vmatprep.subr.mxu0 0.0
  %204 = vmatpush1.msra.mxu0 0.0
  %205 = vmatprep.subr.mxu0 0.0
  %206 = vmatpush1.msra.mxu0 0.0
  %207 = vmatprep.subr.mxu0 0.0
  %208 = vmatpush1.msra.mxu0 0.0
  %209 = vmatprep.subr.mxu0 0.0
  %210 = vmatpush1.msra.mxu0 0.0
  %211 = vmatprep.subr.mxu0 0.0
  %212 = vmatpush1.msra.mxu0 0.0
  %213 = vmatprep.subr.mxu0 0.0
  %214 = vmatpush1.msra.mxu0 0.0
  %215 = vmatprep.subr.mxu0 0.0
  %216 = vmatpush1.msra.mxu0 0.0
  %217 = vmatprep.subr.mxu0 0.0
  %218 = vmatpush1.msra.mxu0 0.0
  %219 = vmatprep.subr.mxu0 0.0
  %220 = vmatpush1.msra.mxu0 0.0
  %221 = vmatprep.subr.mxu0 0.0
  %222 = vmatpush1.msra.mxu0 0.0
  %223 = vmatprep.subr.mxu0 0.0
  %224 = vmatpush1.msra.mxu0 0.0
  %225 = vmatprep.subr.mxu0 0.0
  %226 = vmatpush1.msra.mxu0 0.0
  %227 = vmatprep.subr.mxu0 0.0
  %228 = vmatpush1.msra.mxu0 0.0
  %229 = vmatprep.subr.mxu0 0.0
  %230 = vmatpush1.msra.mxu0 0.0
  %231 = vmatprep.subr.mxu0 0.0
  %232 = vmatpush1.msra.mxu0 0.0
  %233 = vmatprep.subr.mxu0 0.0
  %234 = vmatpush1.msra.mxu0 0.0
  %235 = vmatprep.subr.mxu0 0.0
  %236 = vmatpush1.msra.mxu0 0.0
  %237 = vmatprep.subr.mxu0 0.0
  %238 = vmatpush1.msra.mxu0 0.0
  %239 = vmatprep.subr.mxu0 0.0
  %240 = vmatpush1.msra.mxu0 0.0
  %241 = vmatprep.mubr.f32.mxu0 0.0
  %242 = vmatmul.mubr.f32.gmra.mrb[0].mxu0 %v64
  %v243 = vpop.f32.mrb[0].mxu0
  %v244 = vadd.f32 %v45, %v243
  %v245 = vpop.f32.mrb[0].mxu0
  %v246 = vadd.f32 %v45, %v245
  %247 = vmatprep.mubr.f32.mxu0 0.0
  %248 = vmatmul.mubr.f32.gmra.mrb[0].mxu0 %v67
  %v249 = vpop.f32.mrb[0].mxu0
  %v250 = vadd.f32 %v50, %v249
  %v251 = vpop.f32.mrb[0].mxu0
  %v252 = vadd.f32 %v50, %v251
  %253 = vmatprep.mubr.f32.mxu0 0.0
  %254 = vmatmul.mubr.f32.gmra.mrb[0].mxu0 %v70
  %v255 = vpop.f32.mrb[0].mxu0
  %v256 = vadd.f32 %v55, %v255
  %v257 = vpop.f32.mrb[0].mxu0
  %v258 = vadd.f32 %v55, %v257
  %259 = vmatprep.mubr.f32.mxu0 0.0
  %260 = vmatmul.mubr.f32.gmra.mrb[0].mxu0 %v73
  %v261 = vpop.f32.mrb[0].mxu0
  %v262 = vadd.f32 %v60, %v261
  %v263 = vpop.f32.mrb[0].mxu0
  %v264 = vadd.f32 %v60, %v263
  %265 = vdwg.mxu0
  %266 = vst [vmem:[%s3] sm:$0xff] %v155
  %267 = vst [vmem:[%s3 + $0x8] sm:$0xff] %v157
  %268 = vst [vmem:[%s3 + $0x10] sm:$0xff] %v244
  %269 = vst [vmem:[%s3 + $0x18] sm:$0xff] %v246
  %270 = vst [vmem:[%s3 + $0x20] sm:$0xff] %v161
  %271 = vst [vmem:[%s3 + $0x28] sm:$0xff] %v163
  %272 = vst [vmem:[%s3 + $0x30] sm:$0xff] %v250
  %273 = vst [vmem:[%s3 + $0x38] sm:$0xff] %v252
  %274 = vst [vmem:[%s3 + $0x40] sm:$0xff] %v167
  %275 = vst [vmem:[%s3 + $0x48] sm:$0xff] %v169
  %276 = vst [vmem:[%s3 + $0x50] sm:$0xff] %v256
  %277 = vst [vmem:[%s3 + $0x58] sm:$0xff] %v258
  %278 = vst [vmem:[%s3 + $0x60] sm:$0xff] %v173
  %279 = vst [vmem:[%s3 + $0x68] sm:$0xff] %v175
  %280 = vst [vmem:[%s3 + $0x70] sm:$0xff] %v262
  %281 = vst [vmem:[%s3 + $0x78] sm:$0xff] %v264
  // Predicated region
  $region14: #{decoder_forward.5} parent=0 // pred_check
    _
  $region15: #{decoder_forward.5} parent=0 // pred_check_branch
    %283 = sbr.rel (0) target = $region17
  $region16: #{decoder_forward.5} parent=0 // pred_region
    _
  $region17: #{decoder_forward.5} parent=0 // pred_fallthru
    _
  // Predicated region
  $region18: #{decoder_forward.5} parent=0 // pred_check
    _
  $region19: #{decoder_forward.5} parent=0 // pred_check_branch
    %285 = sbr.rel (0) target = $region21
  $region20: #{decoder_forward.5} parent=0 // pred_region
    _
  $region21: #{decoder_forward.5} parent=0 // pred_fallthru
    _

// kernel: decoder_forward.6
$region0: #{decoder_forward.6}
  #allocation0 [shape = 'u32[]', space=smem, size = 0x4, offset = 0x4, fixed_abs, tag = 'smem constant byte address 0x4 - core index']
  #allocation1 [shape = 'u32[144,128]{1,0:T(1,128)}', space=vmem, size = 0x12000, scoped, tag = 'internal scratch']
  %s0 = inlined_call_operand.vmem [shape: f32[8,288], index: 0, kind: input, shape index: {}]
  %s1 = inlined_call_operand.vmem [shape: f32[32,8], index: 1, kind: input, shape index: {}]
  %s2 = inlined_call_operand.vmem [shape: f32[288,512], index: 2, kind: input, shape index: {}]
  %s3 = inlined_call_operand.vmem [shape: f32[32,512], index: 3, kind: input, shape index: {}]
  %s4 = inlined_call_operand.vmem [shape: f32[32,512], index: 4, kind: output, shape index: {}]
  %s5 = sld [smem:[#allocation0]]
  $region26: #{decoder_forward.6} parent=0
    _
  %s7 = ssub.s32 1, %s5
  %s8 = scalar_select 0, %s7, %s5
  // Predicated region
  $region2: #{decoder_forward.6} parent=0 // pred_check
    _
  $region3: #{decoder_forward.6} parent=0 // pred_check_branch
    %10 = sbr.rel (0) target = $region5
  $region4: #{decoder_forward.6} parent=0 // pred_region
    _
  $region5: #{decoder_forward.6} parent=0 // pred_fallthru
    _
  // Predicated region
  $region6: #{decoder_forward.6} parent=0 // pred_check
    _
  $region7: #{decoder_forward.6} parent=0 // pred_check_branch
    %12 = sbr.rel (0) target = $region9
  $region8: #{decoder_forward.6} parent=0 // pred_region
    _
  $region9: #{decoder_forward.6} parent=0 // pred_fallthru
    _
  // Predicated region
  $region10: #{decoder_forward.6} parent=0 // pred_check
    _
  $region11: #{decoder_forward.6} parent=0 // pred_check_branch
    %14 = sbr.rel (0) target = $region13
  $region12: #{decoder_forward.6} parent=0 // pred_region
    _
  $region13: #{decoder_forward.6} parent=0 // pred_fallthru
    _
  // Predicated region
  $region14: #{decoder_forward.6} parent=0 // pred_check
    _
  $region15: #{decoder_forward.6} parent=0 // pred_check_branch
    %16 = sbr.rel (0) target = $region17
  $region16: #{decoder_forward.6} parent=0 // pred_region
    _
  $region17: #{decoder_forward.6} parent=0 // pred_fallthru
    _
  %v17 = vld [vmem:[%s2] sm:$0xff]
  %v18 = vld [vmem:[%s2 + $0x8] sm:$0xff]
  %v19 = vld [vmem:[%s2 + $0x10] sm:$0xff]
  %v20 = vld [vmem:[%s2 + $0x18] sm:$0xff]
  %v21 = vld [vmem:[%s2 + $0x20] sm:$0xff]
  %v22 = vld [vmem:[%s2 + $0x28] sm:$0xff]
  %v23 = vld [vmem:[%s2 + $0x30] sm:$0xff]
  %v24 = vld [vmem:[%s2 + $0x38] sm:$0xff]
  %v25 = vld [vmem:[%s2 + $0x40] sm:$0xff]
  %v26 = vld [vmem:[%s2 + $0x48] sm:$0xff]
  %v27 = vld [vmem:[%s2 + $0x50] sm:$0xff]
  %v28 = vld [vmem:[%s2 + $0x58] sm:$0xff]
  %v29 = vld [vmem:[%s2 + $0x60] sm:$0xff]
  %v30 = vld [vmem:[%s2 + $0x68] sm:$0xff]
  %v31 = vld [vmem:[%s2 + $0x70] sm:$0xff]
  %v32 = vld [vmem:[%s2 + $0x78] sm:$0xff]
  %v33 = vld [vmem:[%s2 + $0x80] sm:$0xff]
  %v34 = vld [vmem:[%s2 + $0x88] sm:$0xff]
  %v35 = vld [vmem:[%s2 + $0x90] sm:$0xff]
  %v36 = vld [vmem:[%s2 + $0x98] sm:$0xff]
  %v37 = vld [vmem:[%s2 + $0xa0] sm:$0xff]
  %v38 = vld [vmem:[%s2 + $0xa8] sm:$0xff]
  %v39 = vld [vmem:[%s2 + $0xb0] sm:$0xff]
  %v40 = vld [vmem:[%s2 + $0xb8] sm:$0xff]
  %v41 = vld [vmem:[%s2 + $0xc0] sm:$0xff]
  %v42 = vld [vmem:[%s2 + $0xc8] sm:$0xff]
  %v43 = vld [vmem:[%s2 + $0xd0] sm:$0xff]
  %v44 = vld [vmem:[%s2 + $0xd8] sm:$0xff]
  %v45 = vld [vmem:[%s2 + $0xe0] sm:$0xff]
  %v46 = vld [vmem:[%s2 + $0xe8] sm:$0xff]
  %v47 = vld [vmem:[%s2 + $0xf0] sm:$0xff]
  %v48 = vld [vmem:[%s2 + $0xf8] sm:$0xff]
  %v49 = vld [vmem:[%s2 + $0x100] sm:$0xff]
  %v50 = vld [vmem:[%s2 + $0x108] sm:$0xff]
  %v51 = vld [vmem:[%s2 + $0x110] sm:$0xff]
  %v52 = vld [vmem:[%s2 + $0x118] sm:$0xff]
  %v53 = vld [vmem:[%s2 + $0x120] sm:$0xff]
  %v54 = vld [vmem:[%s2 + $0x128] sm:$0xff]
  %v55 = vld [vmem:[%s2 + $0x130] sm:$0xff]
  %v56 = vld [vmem:[%s2 + $0x138] sm:$0xff]
  %v57 = vld [vmem:[%s2 + $0x140] sm:$0xff]
  %v58 = vld [vmem:[%s2 + $0x148] sm:$0xff]
  %v59 = vld [vmem:[%s2 + $0x150] sm:$0xff]
  %v60 = vld [vmem:[%s2 + $0x158] sm:$0xff]
  %v61 = vld [vmem:[%s2 + $0x160] sm:$0xff]
  %v62 = vld [vmem:[%s2 + $0x168] sm:$0xff]
  %v63 = vld [vmem:[%s2 + $0x170] sm:$0xff]
  %v64 = vld [vmem:[%s2 + $0x178] sm:$0xff]
  %v65 = vld [vmem:[%s2 + $0x180] sm:$0xff]
  %v66 = vld [vmem:[%s2 + $0x188] sm:$0xff]
  %v67 = vld [vmem:[%s2 + $0x190] sm:$0xff]
  %v68 = vld [vmem:[%s2 + $0x198] sm:$0xff]
  %v69 = vld [vmem:[%s2 + $0x1a0] sm:$0xff]
  %v70 = vld [vmem:[%s2 + $0x1a8] sm:$0xff]
  %v71 = vld [vmem:[%s2 + $0x1b0] sm:$0xff]
  %v72 = vld [vmem:[%s2 + $0x1b8] sm:$0xff]
  %v73 = vld [vmem:[%s2 + $0x1c0] sm:$0xff]
  %v74 = vld [vmem:[%s2 + $0x1c8] sm:$0xff]
  %v75 = vld [vmem:[%s2 + $0x1d0] sm:$0xff]
  %v76 = vld [vmem:[%s2 + $0x1d8] sm:$0xff]
  %v77 = vld [vmem:[%s2 + $0x1e0] sm:$0xff]
  %v78 = vld [vmem:[%s2 + $0x1e8] sm:$0xff]
  %v79 = vld [vmem:[%s2 + $0x1f0] sm:$0xff]
  %v80 = vld [vmem:[%s2 + $0x1f8] sm:$0xff]
  %v81 = vld [vmem:[%s2 + $0x200] sm:$0xff]
  %v82 = vld [vmem:[%s2 + $0x208] sm:$0xff]
  %v83 = vld [vmem:[%s2 + $0x210] sm:$0xff]
  %v84 = vld [vmem:[%s2 + $0x218] sm:$0xff]
  %v85 = vld [vmem:[%s2 + $0x220] sm:$0xff]
  %v86 = vld [vmem:[%s2 + $0x228] sm:$0xff]
  %v87 = vld [vmem:[%s2 + $0x230] sm:$0xff]
  %v88 = vld [vmem:[%s2 + $0x238] sm:$0xff]
  %v89 = vld [vmem:[%s2 + $0x240] sm:$0xff]
  %v90 = vld [vmem:[%s2 + $0x248] sm:$0xff]
  %v91 = vld [vmem:[%s2 + $0x250] sm:$0xff]
  %v92 = vld [vmem:[%s2 + $0x258] sm:$0xff]
  %v93 = vld [vmem:[%s2 + $0x260] sm:$0xff]
  %v94 = vld [vmem:[%s2 + $0x268] sm:$0xff]
  %v95 = vld [vmem:[%s2 + $0x270] sm:$0xff]
  %v96 = vld [vmem:[%s2 + $0x278] sm:$0xff]
  %v97 = vld [vmem:[%s2 + $0x280] sm:$0xff]
  %v98 = vld [vmem:[%s2 + $0x288] sm:$0xff]
  %v99 = vld [vmem:[%s2 + $0x290] sm:$0xff]
  %v100 = vld [vmem:[%s2 + $0x298] sm:$0xff]
  %v101 = vld [vmem:[%s2 + $0x2a0] sm:$0xff]
  %v102 = vld [vmem:[%s2 + $0x2a8] sm:$0xff]
  %v103 = vld [vmem:[%s2 + $0x2b0] sm:$0xff]
  %v104 = vld [vmem:[%s2 + $0x2b8] sm:$0xff]
  %v105 = vld [vmem:[%s2 + $0x2c0] sm:$0xff]
  %v106 = vld [vmem:[%s2 + $0x2c8] sm:$0xff]
  %v107 = vld [vmem:[%s2 + $0x2d0] sm:$0xff]
  %v108 = vld [vmem:[%s2 + $0x2d8] sm:$0xff]
  %v109 = vld [vmem:[%s2 + $0x2e0] sm:$0xff]
  %v110 = vld [vmem:[%s2 + $0x2e8] sm:$0xff]
  %v111 = vld [vmem:[%s2 + $0x2f0] sm:$0xff]
  %v112 = vld [vmem:[%s2 + $0x2f8] sm:$0xff]
  %v113 = vld [vmem:[%s2 + $0x300] sm:$0xff]
  %v114 = vld [vmem:[%s2 + $0x308] sm:$0xff]
  %v115 = vld [vmem:[%s2 + $0x310] sm:$0xff]
  %v116 = vld [vmem:[%s2 + $0x318] sm:$0xff]
  %v117 = vld [vmem:[%s2 + $0x320] sm:$0xff]
  %v118 = vld [vmem:[%s2 + $0x328] sm:$0xff]
  %v119 = vld [vmem:[%s2 + $0x330] sm:$0xff]
  %v120 = vld [vmem:[%s2 + $0x338] sm:$0xff]
  %v121 = vld [vmem:[%s2 + $0x340] sm:$0xff]
  %v122 = vld [vmem:[%s2 + $0x348] sm:$0xff]
  %v123 = vld [vmem:[%s2 + $0x350] sm:$0xff]
  %v124 = vld [vmem:[%s2 + $0x358] sm:$0xff]
  %v125 = vld [vmem:[%s2 + $0x360] sm:$0xff]
  %v126 = vld [vmem:[%s2 + $0x368] sm:$0xff]
  %v127 = vld [vmem:[%s2 + $0x370] sm:$0xff]
  %v128 = vld [vmem:[%s2 + $0x378] sm:$0xff]
  %v129 = vld [vmem:[%s2 + $0x380] sm:$0xff]
  %v130 = vld [vmem:[%s2 + $0x388] sm:$0xff]
  %v131 = vld [vmem:[%s2 + $0x390] sm:$0xff]
  %v132 = vld [vmem:[%s2 + $0x398] sm:$0xff]
  %v133 = vld [vmem:[%s2 + $0x3a0] sm:$0xff]
  %v134 = vld [vmem:[%s2 + $0x3a8] sm:$0xff]
  %v135 = vld [vmem:[%s2 + $0x3b0] sm:$0xff]
  %v136 = vld [vmem:[%s2 + $0x3b8] sm:$0xff]
  %v137 = vld [vmem:[%s2 + $0x3c0] sm:$0xff]
  %v138 = vld [vmem:[%s2 + $0x3c8] sm:$0xff]
  %v139 = vld [vmem:[%s2 + $0x3d0] sm:$0xff]
  %v140 = vld [vmem:[%s2 + $0x3d8] sm:$0xff]
  %v141 = vld [vmem:[%s2 + $0x3e0] sm:$0xff]
  %v142 = vld [vmem:[%s2 + $0x3e8] sm:$0xff]
  %v143 = vld [vmem:[%s2 + $0x3f0] sm:$0xff]
  %v144 = vld [vmem:[%s2 + $0x3f8] sm:$0xff]
  %v145 = vld [vmem:[%s2 + $0x400] sm:$0xff]
  %v146 = vld [vmem:[%s2 + $0x408] sm:$0xff]
  %v147 = vld [vmem:[%s2 + $0x410] sm:$0xff]
  %v148 = vld [vmem:[%s2 + $0x418] sm:$0xff]
  %v149 = vld [vmem:[%s2 + $0x420] sm:$0xff]
  %v150 = vld [vmem:[%s2 + $0x428] sm:$0xff]
  %v151 = vld [vmem:[%s2 + $0x430] sm:$0xff]
  %v152 = vld [vmem:[%s2 + $0x438] sm:$0xff]
  %v153 = vld [vmem:[%s2 + $0x440] sm:$0xff]
  %v154 = vld [vmem:[%s2 + $0x448] sm:$0xff]
  %v155 = vld [vmem:[%s2 + $0x450] sm:$0xff]
  %v156 = vld [vmem:[%s2 + $0x458] sm:$0xff]
  %v157 = vld [vmem:[%s2 + $0x460] sm:$0xff]
  %v158 = vld [vmem:[%s2 + $0x468] sm:$0xff]
  %v159 = vld [vmem:[%s2 + $0x470] sm:$0xff]
  %v160 = vld [vmem:[%s2 + $0x478] sm:$0xff]
  %v161 = vmax.f32 %v17, 0.0
  %v162 = vmax.f32 %v18, 0.0
  %v163 = vmax.f32 %v19, 0.0
  %v164 = vmax.f32 %v20, 0.0
  %v165 = vmax.f32 %v21, 0.0
  %v166 = vmax.f32 %v22, 0.0
  %v167 = vmax.f32 %v23, 0.0
  %v168 = vmax.f32 %v24, 0.0
  %v169 = vmax.f32 %v25, 0.0
  %v170 = vmax.f32 %v26, 0.0
  %v171 = vmax.f32 %v27, 0.0
  %v172 = vmax.f32 %v28, 0.0
  %v173 = vmax.f32 %v29, 0.0
  %v174 = vmax.f32 %v30, 0.0
  %v175 = vmax.f32 %v31, 0.0
  %v176 = vmax.f32 %v32, 0.0
  %v177 = vmax.f32 %v33, 0.0
  %v178 = vmax.f32 %v34, 0.0
  %v179 = vmax.f32 %v35, 0.0
  %v180 = vmax.f32 %v36, 0.0
  %v181 = vmax.f32 %v37, 0.0
  %v182 = vmax.f32 %v38, 0.0
  %v183 = vmax.f32 %v39, 0.0
  %v184 = vmax.f32 %v40, 0.0
  %v185 = vmax.f32 %v41, 0.0
  %v186 = vmax.f32 %v42, 0.0
  %v187 = vmax.f32 %v43, 0.0
  %v188 = vmax.f32 %v44, 0.0
  %v189 = vmax.f32 %v45, 0.0
  %v190 = vmax.f32 %v46, 0.0
  %v191 = vmax.f32 %v47, 0.0
  %v192 = vmax.f32 %v48, 0.0
  %v193 = vmax.f32 %v49, 0.0
  %v194 = vmax.f32 %v50, 0.0
  %v195 = vmax.f32 %v51, 0.0
  %v196 = vmax.f32 %v52, 0.0
  %v197 = vmax.f32 %v53, 0.0
  %v198 = vmax.f32 %v54, 0.0
  %v199 = vmax.f32 %v55, 0.0
  %v200 = vmax.f32 %v56, 0.0
  %v201 = vmax.f32 %v57, 0.0
  %v202 = vmax.f32 %v58, 0.0
  %v203 = vmax.f32 %v59, 0.0
  %v204 = vmax.f32 %v60, 0.0
  %v205 = vmax.f32 %v61, 0.0
  %v206 = vmax.f32 %v62, 0.0
  %v207 = vmax.f32 %v63, 0.0
  %v208 = vmax.f32 %v64, 0.0
  %v209 = vmax.f32 %v65, 0.0
  %v210 = vmax.f32 %v66, 0.0
  %v211 = vmax.f32 %v67, 0.0
  %v212 = vmax.f32 %v68, 0.0
  %v213 = vmax.f32 %v69, 0.0
  %v214 = vmax.f32 %v70, 0.0
  %v215 = vmax.f32 %v71, 0.0
  %v216 = vmax.f32 %v72, 0.0
  %v217 = vmax.f32 %v73, 0.0
  %v218 = vmax.f32 %v74, 0.0
  %v219 = vmax.f32 %v75, 0.0
  %v220 = vmax.f32 %v76, 0.0
  %v221 = vmax.f32 %v77, 0.0
  %v222 = vmax.f32 %v78, 0.0
  %v223 = vmax.f32 %v79, 0.0
  %v224 = vmax.f32 %v80, 0.0
  %v225 = vmax.f32 %v81, 0.0
  %v226 = vmax.f32 %v82, 0.0
  %v227 = vmax.f32 %v83, 0.0
  %v228 = vmax.f32 %v84, 0.0
  %v229 = vmax.f32 %v85, 0.0
  %v230 = vmax.f32 %v86, 0.0
  %v231 = vmax.f32 %v87, 0.0
  %v232 = vmax.f32 %v88, 0.0
  %v233 = vmax.f32 %v89, 0.0
  %v234 = vmax.f32 %v90, 0.0
  %v235 = vmax.f32 %v91, 0.0
  %v236 = vmax.f32 %v92, 0.0
  %v237 = vmax.f32 %v93, 0.0
  %v238 = vmax.f32 %v94, 0.0
  %v239 = vmax.f32 %v95, 0.0
  %v240 = vmax.f32 %v96, 0.0
  %v241 = vmax.f32 %v97, 0.0
  %v242 = vmax.f32 %v98, 0.0
  %v243 = vmax.f32 %v99, 0.0
  %v244 = vmax.f32 %v100, 0.0
  %v245 = vmax.f32 %v101, 0.0
  %v246 = vmax.f32 %v102, 0.0
  %v247 = vmax.f32 %v103, 0.0
  %v248 = vmax.f32 %v104, 0.0
  %v249 = vmax.f32 %v105, 0.0
  %v250 = vmax.f32 %v106, 0.0
  %v251 = vmax.f32 %v107, 0.0
  %v252 = vmax.f32 %v108, 0.0
  %v253 = vmax.f32 %v109, 0.0
  %v254 = vmax.f32 %v110, 0.0
  %v255 = vmax.f32 %v111, 0.0
  %v256 = vmax.f32 %v112, 0.0
  %v257 = vmax.f32 %v113, 0.0
  %v258 = vmax.f32 %v114, 0.0
  %v259 = vmax.f32 %v115, 0.0
  %v260 = vmax.f32 %v116, 0.0
  %v261 = vmax.f32 %v117, 0.0
  %v262 = vmax.f32 %v118, 0.0
  %v263 = vmax.f32 %v119, 0.0
  %v264 = vmax.f32 %v120, 0.0
  %v265 = vmax.f32 %v121, 0.0
  %v266 = vmax.f32 %v122, 0.0
  %v267 = vmax.f32 %v123, 0.0
  %v268 = vmax.f32 %v124, 0.0
  %v269 = vmax.f32 %v125, 0.0
  %v270 = vmax.f32 %v126, 0.0
  %v271 = vmax.f32 %v127, 0.0
  %v272 = vmax.f32 %v128, 0.0
  %v273 = vmax.f32 %v129, 0.0
  %v274 = vmax.f32 %v130, 0.0
  %v275 = vmax.f32 %v131, 0.0
  %v276 = vmax.f32 %v132, 0.0
  %v277 = vmax.f32 %v133, 0.0
  %v278 = vmax.f32 %v134, 0.0
  %v279 = vmax.f32 %v135, 0.0
  %v280 = vmax.f32 %v136, 0.0
  %v281 = vmax.f32 %v137, 0.0
  %v282 = vmax.f32 %v138, 0.0
  %v283 = vmax.f32 %v139, 0.0
  %v284 = vmax.f32 %v140, 0.0
  %v285 = vmax.f32 %v141, 0.0
  %v286 = vmax.f32 %v142, 0.0
  %v287 = vmax.f32 %v143, 0.0
  %v288 = vmax.f32 %v144, 0.0
  %v289 = vmax.f32 %v145, 0.0
  %v290 = vmax.f32 %v146, 0.0
  %v291 = vmax.f32 %v147, 0.0
  %v292 = vmax.f32 %v148, 0.0
  %v293 = vmax.f32 %v149, 0.0
  %v294 = vmax.f32 %v150, 0.0
  %v295 = vmax.f32 %v151, 0.0
  %v296 = vmax.f32 %v152, 0.0
  %v297 = vmax.f32 %v153, 0.0
  %v298 = vmax.f32 %v154, 0.0
  %v299 = vmax.f32 %v155, 0.0
  %v300 = vmax.f32 %v156, 0.0
  %v301 = vmax.f32 %v157, 0.0
  %v302 = vmax.f32 %v158, 0.0
  %v303 = vmax.f32 %v159, 0.0
  %v304 = vmax.f32 %v160, 0.0
  %v305 = vld [vmem:[%s0] sm:$0xff]
  %v306 = vld [vmem:[%s0 + $0x8] sm:$0xff]
  %v307 = vld [vmem:[%s0 + $0x10] sm:$0xff]
  %vm308 = vcmask 261120
  %v310 = vsel %vm308, %v307, 0
  %312 = vmatprep.subr.mxu0 %v162
  %313 = vmatpush1.msra.mxu0 %v161
  %314 = vmatprep.subr.mxu0 %v166
  %315 = vmatpush1.msra.mxu0 %v165
  %316 = vmatprep.subr.mxu0 %v170
  %317 = vmatpush1.msra.mxu0 %v169
  %318 = vmatprep.subr.mxu0 %v174
  %319 = vmatpush1.msra.mxu0 %v173
  %320 = vmatprep.subr.mxu0 %v178
  %321 = vmatpush1.msra.mxu0 %v177
  %322 = vmatprep.subr.mxu0 %v182
  %323 = vmatpush1.msra.mxu0 %v181
  %324 = vmatprep.subr.mxu0 %v186
  %325 = vmatpush1.msra.mxu0 %v185
  %326 = vmatprep.subr.mxu0 %v190
  %327 = vmatpush1.msra.mxu0 %v189
  %328 = vmatprep.subr.mxu0 %v194
  %329 = vmatpush1.msra.mxu0 %v193
  %330 = vmatprep.subr.mxu0 %v198
  %331 = vmatpush1.msra.mxu0 %v197
  %332 = vmatprep.subr.mxu0 %v202
  %333 = vmatpush1.msra.mxu0 %v201
  %334 = vmatprep.subr.mxu0 %v206
  %335 = vmatpush1.msra.mxu0 %v205
  %336 = vmatprep.subr.mxu0 %v210
  %337 = vmatpush1.msra.mxu0 %v209
  %338 = vmatprep.subr.mxu0 %v214
  %339 = vmatpush1.msra.mxu0 %v213
  %340 = vmatprep.subr.mxu0 %v218
  %341 = vmatpush1.msra.mxu0 %v217
  %342 = vmatprep.subr.mxu0 %v222
  %343 = vmatpush1.msra.mxu0 %v221
  %344 = vmatprep.subr.mxu0 %v226
  %345 = vmatpush1.msra.mxu0 %v225
  %346 = vmatprep.subr.mxu0 %v230
  %347 = vmatpush1.msra.mxu0 %v229
  %348 = vmatprep.subr.mxu0 %v234
  %349 = vmatpush1.msra.mxu0 %v233
  %350 = vmatprep.subr.mxu0 %v238
  %351 = vmatpush1.msra.mxu0 %v237
  %352 = vmatprep.subr.mxu0 %v242
  %353 = vmatpush1.msra.mxu0 %v241
  %354 = vmatprep.subr.mxu0 %v246
  %355 = vmatpush1.msra.mxu0 %v245
  %356 = vmatprep.subr.mxu0 %v250
  %357 = vmatpush1.msra.mxu0 %v249
  %358 = vmatprep.subr.mxu0 %v254
  %359 = vmatpush1.msra.mxu0 %v253
  %360 = vmatprep.subr.mxu0 %v258
  %361 = vmatpush1.msra.mxu0 %v257
  %362 = vmatprep.subr.mxu0 %v262
  %363 = vmatpush1.msra.mxu0 %v261
  %364 = vmatprep.subr.mxu0 %v266
  %365 = vmatpush1.msra.mxu0 %v265
  %366 = vmatprep.subr.mxu0 %v270
  %367 = vmatpush1.msra.mxu0 %v269
  %368 = vmatprep.subr.mxu0 %v274
  %369 = vmatpush1.msra.mxu0 %v273
  %370 = vmatprep.subr.mxu0 %v278
  %371 = vmatpush1.msra.mxu0 %v277
  %372 = vmatprep.subr.mxu0 %v282
  %373 = vmatpush1.msra.mxu0 %v281
  %374 = vmatprep.subr.mxu0 %v286
  %375 = vmatpush1.msra.mxu0 %v285
  %376 = vmatprep.mubr.f32.mxu0 %v306
  %377 = vmatmul.mubr.f32.gmra.mrb[0].mxu0 %v305
  %v378 = vpop.f32.mrb[0].mxu0
  %v379 = vadd.f32 0.0, %v378
  %v380 = vpop.f32.mrb[0].mxu0
  %v381 = vadd.f32 0.0, %v380
  %382 = vdwg.mxu0
  %383 = vmatprep.subr.mxu0 %v290
  %384 = vmatpush1.msra.mxu0 %v289
  %385 = vmatprep.subr.mxu0 %v294
  %386 = vmatpush1.msra.mxu0 %v293
  %387 = vmatprep.subr.mxu0 %v298
  %388 = vmatpush1.msra.mxu0 %v297
  %389 = vmatprep.subr.mxu0 %v302
  %390 = vmatpush1.msra.mxu0 %v301
  %391 = vmatprep.subr.mxu0 0.0
  %392 = vmatpush1.msra.mxu0 0.0
  %393 = vmatprep.subr.mxu0 0.0
  %394 = vmatpush1.msra.mxu0 0.0
  %395 = vmatprep.subr.mxu0 0.0
  %396 = vmatpush1.msra.mxu0 0.0
  %397 = vmatprep.subr.mxu0 0.0
  %398 = vmatpush1.msra.mxu0 0.0
  %399 = vmatprep.subr.mxu0 0.0
  %400 = vmatpush1.msra.mxu0 0.0
  %401 = vmatprep.subr.mxu0 0.0
  %402 = vmatpush1.msra.mxu0 0.0
  %403 = vmatprep.subr.mxu0 0.0
  %404 = vmatpush1.msra.mxu0 0.0
  %405 = vmatprep.subr.mxu0 0.0
  %406 = vmatpush1.msra.mxu0 0.0
  %407 = vmatprep.subr.mxu0 0.0
  %408 = vmatpush1.msra.mxu0 0.0
  %409 = vmatprep.subr.mxu0 0.0
  %410 = vmatpush1.msra.mxu0 0.0
  %411 = vmatprep.subr.mxu0 0.0
  %412 = vmatpush1.msra.mxu0 0.0
  %413 = vmatprep.subr.mxu0 0.0
  %414 = vmatpush1.msra.mxu0 0.0
  %415 = vmatprep.subr.mxu0 0.0
  %416 = vmatpush1.msra.mxu0 0.0
  %417 = vmatprep.subr.mxu0 0.0
  %418 = vmatpush1.msra.mxu0 0.0
  %419 = vmatprep.subr.mxu0 0.0
  %420 = vmatpush1.msra.mxu0 0.0
  %421 = vmatprep.subr.mxu0 0.0
  %422 = vmatpush1.msra.mxu0 0.0
  %423 = vmatprep.subr.mxu0 0.0
  %424 = vmatpush1.msra.mxu0 0.0
  %425 = vmatprep.subr.mxu0 0.0
  %426 = vmatpush1.msra.mxu0 0.0
  %427 = vmatprep.subr.mxu0 0.0
  %428 = vmatpush1.msra.mxu0 0.0
  %429 = vmatprep.subr.mxu0 0.0
  %430 = vmatpush1.msra.mxu0 0.0
  %431 = vmatprep.subr.mxu0 0.0
  %432 = vmatpush1.msra.mxu0 0.0
  %433 = vmatprep.subr.mxu0 0.0
  %434 = vmatpush1.msra.mxu0 0.0
  %435 = vmatprep.subr.mxu0 0.0
  %436 = vmatpush1.msra.mxu0 0.0
  %437 = vmatprep.subr.mxu0 0.0
  %438 = vmatpush1.msra.mxu0 0.0
  %439 = vmatprep.subr.mxu0 0.0
  %440 = vmatpush1.msra.mxu0 0.0
  %441 = vmatprep.subr.mxu0 0.0
  %442 = vmatpush1.msra.mxu0 0.0
  %443 = vmatprep.subr.mxu0 0.0
  %444 = vmatpush1.msra.mxu0 0.0
  %445 = vmatprep.subr.mxu0 0.0
  %446 = vmatpush1.msra.mxu0 0.0
  %447 = vmatprep.mubr.f32.mxu0 0.0
  %448 = vmatmul.mubr.f32.gmra.mrb[0].mxu0 %v310
  %v449 = vpop.f32.mrb[0].mxu0
  %v450 = vadd.f32 %v379, %v449
  %v451 = vpop.f32.mrb[0].mxu0
  %v452 = vadd.f32 %v381, %v451
  %453 = vdwg.mxu0
  %454 = vmatprep.subr.mxu0 %v164
  %455 = vmatpush1.msra.mxu0 %v163
  %456 = vmatprep.subr.mxu0 %v168
  %457 = vmatpush1.msra.mxu0 %v167
  %458 = vmatprep.subr.mxu0 %v172
  %459 = vmatpush1.msra.mxu0 %v171
  %460 = vmatprep.subr.mxu0 %v176
  %461 = vmatpush1.msra.mxu0 %v175
  %462 = vmatprep.subr.mxu0 %v180
  %463 = vmatpush1.msra.mxu0 %v179
  %464 = vmatprep.subr.mxu0 %v184
  %465 = vmatpush1.msra.mxu0 %v183
  %466 = vmatprep.subr.mxu0 %v188
  %467 = vmatpush1.msra.mxu0 %v187
  %468 = vmatprep.subr.mxu0 %v192
  %469 = vmatpush1.msra.mxu0 %v191
  %470 = vmatprep.subr.mxu0 %v196
  %471 = vmatpush1.msra.mxu0 %v195
  %472 = vmatprep.subr.mxu0 %v200
  %473 = vmatpush1.msra.mxu0 %v199
  %474 = vmatprep.subr.mxu0 %v204
  %475 = vmatpush1.msra.mxu0 %v203
  %476 = vmatprep.subr.mxu0 %v208
  %477 = vmatpush1.msra.mxu0 %v207
  %478 = vmatprep.subr.mxu0 %v212
  %479 = vmatpush1.msra.mxu0 %v211
  %480 = vmatprep.subr.mxu0 %v216
  %481 = vmatpush1.msra.mxu0 %v215
  %482 = vmatprep.subr.mxu0 %v220
  %483 = vmatpush1.msra.mxu0 %v219
  %484 = vmatprep.subr.mxu0 %v224
  %485 = vmatpush1.msra.mxu0 %v223
  %486 = vmatprep.subr.mxu0 %v228
  %487 = vmatpush1.msra.mxu0 %v227
  %488 = vmatprep.subr.mxu0 %v232
  %489 = vmatpush1.msra.mxu0 %v231
  %490 = vmatprep.subr.mxu0 %v236
  %491 = vmatpush1.msra.mxu0 %v235
  %492 = vmatprep.subr.mxu0 %v240
  %493 = vmatpush1.msra.mxu0 %v239
  %494 = vmatprep.subr.mxu0 %v244
  %495 = vmatpush1.msra.mxu0 %v243
  %496 = vmatprep.subr.mxu0 %v248
  %497 = vmatpush1.msra.mxu0 %v247
  %498 = vmatprep.subr.mxu0 %v252
  %499 = vmatpush1.msra.mxu0 %v251
  %500 = vmatprep.subr.mxu0 %v256
  %501 = vmatpush1.msra.mxu0 %v255
  %502 = vmatprep.subr.mxu0 %v260
  %503 = vmatpush1.msra.mxu0 %v259
  %504 = vmatprep.subr.mxu0 %v264
  %505 = vmatpush1.msra.mxu0 %v263
  %506 = vmatprep.subr.mxu0 %v268
  %507 = vmatpush1.msra.mxu0 %v267
  %508 = vmatprep.subr.mxu0 %v272
  %509 = vmatpush1.msra.mxu0 %v271
  %510 = vmatprep.subr.mxu0 %v276
  %511 = vmatpush1.msra.mxu0 %v275
  %512 = vmatprep.subr.mxu0 %v280
  %513 = vmatpush1.msra.mxu0 %v279
  %514 = vmatprep.subr.mxu0 %v284
  %515 = vmatpush1.msra.mxu0 %v283
  %516 = vmatprep.subr.mxu0 %v288
  %517 = vmatpush1.msra.mxu0 %v287
  %518 = vmatprep.mubr.f32.mxu0 %v306
  %519 = vmatmul.mubr.f32.gmra.mrb[0].mxu0 %v305
  %v520 = vpop.f32.mrb[0].mxu0
  %v521 = vadd.f32 0.0, %v520
  %v522 = vpop.f32.mrb[0].mxu0
  %v523 = vadd.f32 0.0, %v522
  %524 = vdwg.mxu0
  %525 = vmatprep.subr.mxu0 %v292
  %526 = vmatpush1.msra.mxu0 %v291
  %527 = vmatprep.subr.mxu0 %v296
  %528 = vmatpush1.msra.mxu0 %v295
  %529 = vmatprep.subr.mxu0 %v300
  %530 = vmatpush1.msra.mxu0 %v299
  %531 = vmatprep.subr.mxu0 %v304
  %532 = vmatpush1.msra.mxu0 %v303
  %533 = vmatprep.subr.mxu0 0.0
  %534 = vmatpush1.msra.mxu0 0.0
  %535 = vmatprep.subr.mxu0 0.0
  %536 = vmatpush1.msra.mxu0 0.0
  %537 = vmatprep.subr.mxu0 0.0
  %538 = vmatpush1.msra.mxu0 0.0
  %539 = vmatprep.subr.mxu0 0.0
  %540 = vmatpush1.msra.mxu0 0.0
  %541 = vmatprep.subr.mxu0 0.0
  %542 = vmatpush1.msra.mxu0 0.0
  %543 = vmatprep.subr.mxu0 0.0
  %544 = vmatpush1.msra.mxu0 0.0
  %545 = vmatprep.subr.mxu0 0.0
  %546 = vmatpush1.msra.mxu0 0.0
  %547 = vmatprep.subr.mxu0 0.0
  %548 = vmatpush1.msra.mxu0 0.0
  %549 = vmatprep.subr.mxu0 0.0
  %550 = vmatpush1.msra.mxu0 0.0
  %551 = vmatprep.subr.mxu0 0.0
  %552 = vmatpush1.msra.mxu0 0.0
  %553 = vmatprep.subr.mxu0 0.0
  %554 = vmatpush1.msra.mxu0 0.0
  %555 = vmatprep.subr.mxu0 0.0
  %556 = vmatpush1.msra.mxu0 0.0
  %557 = vmatprep.subr.mxu0 0.0
  %558 = vmatpush1.msra.mxu0 0.0
  %559 = vmatprep.subr.mxu0 0.0
  %560 = vmatpush1.msra.mxu0 0.0
  %561 = vmatprep.subr.mxu0 0.0
  %562 = vmatpush1.msra.mxu0 0.0
  %563 = vmatprep.subr.mxu0 0.0
  %564 = vmatpush1.msra.mxu0 0.0
  %565 = vmatprep.subr.mxu0 0.0
  %566 = vmatpush1.msra.mxu0 0.0
  %567 = vmatprep.subr.mxu0 0.0
  %568 = vmatpush1.msra.mxu0 0.0
  %569 = vmatprep.subr.mxu0 0.0
  %570 = vmatpush1.msra.mxu0 0.0
  %571 = vmatprep.subr.mxu0 0.0
  %572 = vmatpush1.msra.mxu0 0.0
  %573 = vmatprep.subr.mxu0 0.0
  %574 = vmatpush1.msra.mxu0 0.0
  %575 = vmatprep.subr.mxu0 0.0
  %576 = vmatpush1.msra.mxu0 0.0
  %577 = vmatprep.subr.mxu0 0.0
  %578 = vmatpush1.msra.mxu0 0.0
  %579 = vmatprep.subr.mxu0 0.0
  %580 = vmatpush1.msra.mxu0 0.0
  %581 = vmatprep.subr.mxu0 0.0
  %582 = vmatpush1.msra.mxu0 0.0
  %583 = vmatprep.subr.mxu0 0.0
  %584 = vmatpush1.msra.mxu0 0.0
  %585 = vmatprep.subr.mxu0 0.0
  %586 = vmatpush1.msra.mxu0 0.0
  %587 = vmatprep.subr.mxu0 0.0
  %588 = vmatpush1.msra.mxu0 0.0
  %589 = vmatprep.mubr.f32.mxu0 0.0
  %590 = vmatmul.mubr.f32.gmra.mrb[0].mxu0 %v310
  %v591 = vpop.f32.mrb[0].mxu0
  %v592 = vadd.f32 %v521, %v591
  %v593 = vpop.f32.mrb[0].mxu0
  %v594 = vadd.f32 %v523, %v593
  %595 = vdwg.mxu0
  %v596 = vmax.f32 %v450, 0.0
  %v597 = vmax.f32 %v452, 0.0
  %v598 = vmax.f32 %v592, 0.0
  %v599 = vmax.f32 %v594, 0.0
  %v600 = vld [vmem:[%s3] sm:$0xff]
  %v601 = vld [vmem:[%s3 + $0x8] sm:$0xff]
  %v602 = vld [vmem:[%s3 + $0x10] sm:$0xff]
  %v603 = vld [vmem:[%s3 + $0x18] sm:$0xff]
  %v604 = vld [vmem:[%s3 + $0x20] sm:$0xff]
  %v605 = vld [vmem:[%s3 + $0x28] sm:$0xff]
  %v606 = vld [vmem:[%s3 + $0x30] sm:$0xff]
  %v607 = vld [vmem:[%s3 + $0x38] sm:$0xff]
  %v608 = vld [vmem:[%s3 + $0x40] sm:$0xff]
  %v609 = vld [vmem:[%s3 + $0x48] sm:$0xff]
  %v610 = vld [vmem:[%s3 + $0x50] sm:$0xff]
  %v611 = vld [vmem:[%s3 + $0x58] sm:$0xff]
  %v612 = vld [vmem:[%s3 + $0x60] sm:$0xff]
  %v613 = vld [vmem:[%s3 + $0x68] sm:$0xff]
  %v614 = vld [vmem:[%s3 + $0x70] sm:$0xff]
  %v615 = vld [vmem:[%s3 + $0x78] sm:$0xff]
  %v616 = vld [vmem:[%s1] sm:$0xff]
  %v617 = vld [vmem:[%s1 + $0x8] sm:$0xff]
  %v618 = vld [vmem:[%s1 + $0x10] sm:$0xff]
  %v619 = vld [vmem:[%s1 + $0x18] sm:$0xff]
  %vm620 = vcmask 64512
  %v622 = vsel %vm620, %v616, 0
  %v625 = vsel %vm620, %v617, 0
  %v628 = vsel %vm620, %v618, 0
  %v631 = vsel %vm620, %v619, 0
  %633 = vmatprep.subr.mxu0 %v597
  %634 = vmatpush1.msra.mxu0 %v596
  %635 = vmatprep.subr.mxu0 0.0
  %636 = vmatpush1.msra.mxu0 0.0
  %637 = vmatprep.subr.mxu0 0.0
  %638 = vmatpush1.msra.mxu0 0.0
  %639 = vmatprep.subr.mxu0 0.0
  %640 = vmatpush1.msra.mxu0 0.0
  %641 = vmatprep.subr.mxu0 0.0
  %642 = vmatpush1.msra.mxu0 0.0
  %643 = vmatprep.subr.mxu0 0.0
  %644 = vmatpush1.msra.mxu0 0.0
  %645 = vmatprep.subr.mxu0 0.0
  %646 = vmatpush1.msra.mxu0 0.0
  %647 = vmatprep.subr.mxu0 0.0
  %648 = vmatpush1.msra.mxu0 0.0
  %649 = vmatprep.subr.mxu0 0.0
  %650 = vmatpush1.msra.mxu0 0.0
  %651 = vmatprep.subr.mxu0 0.0
  %652 = vmatpush1.msra.mxu0 0.0
  %653 = vmatprep.subr.mxu0 0.0
  %654 = vmatpush1.msra.mxu0 0.0
  %655 = vmatprep.subr.mxu0 0.0
  %656 = vmatpush1.msra.mxu0 0.0
  %657 = vmatprep.subr.mxu0 0.0
  %658 = vmatpush1.msra.mxu0 0.0
  %659 = vmatprep.subr.mxu0 0.0
  %660 = vmatpush1.msra.mxu0 0.0
  %661 = vmatprep.subr.mxu0 0.0
  %662 = vmatpush1.msra.mxu0 0.0
  %663 = vmatprep.subr.mxu0 0.0
  %664 = vmatpush1.msra.mxu0 0.0
  %665 = vmatprep.subr.mxu0 0.0
  %666 = vmatpush1.msra.mxu0 0.0
  %667 = vmatprep.subr.mxu0 0.0
  %668 = vmatpush1.msra.mxu0 0.0
  %669 = vmatprep.subr.mxu0 0.0
  %670 = vmatpush1.msra.mxu0 0.0
  %671 = vmatprep.subr.mxu0 0.0
  %672 = vmatpush1.msra.mxu0 0.0
  %673 = vmatprep.subr.mxu0 0.0
  %674 = vmatpush1.msra.mxu0 0.0
  %675 = vmatprep.subr.mxu0 0.0
  %676 = vmatpush1.msra.mxu0 0.0
  %677 = vmatprep.subr.mxu0 0.0
  %678 = vmatpush1.msra.mxu0 0.0
  %679 = vmatprep.subr.mxu0 0.0
  %680 = vmatpush1.msra.mxu0 0.0
  %681 = vmatprep.subr.mxu0 0.0
  %682 = vmatpush1.msra.mxu0 0.0
  %683 = vmatprep.subr.mxu0 0.0
  %684 = vmatpush1.msra.mxu0 0.0
  %685 = vmatprep.subr.mxu0 0.0
  %686 = vmatpush1.msra.mxu0 0.0
  %687 = vmatprep.subr.mxu0 0.0
  %688 = vmatpush1.msra.mxu0 0.0
  %689 = vmatprep.subr.mxu0 0.0
  %690 = vmatpush1.msra.mxu0 0.0
  %691 = vmatprep.subr.mxu0 0.0
  %692 = vmatpush1.msra.mxu0 0.0
  %693 = vmatprep.subr.mxu0 0.0
  %694 = vmatpush1.msra.mxu0 0.0
  %695 = vmatprep.subr.mxu0 0.0
  %696 = vmatpush1.msra.mxu0 0.0
  %697 = vmatprep.mubr.f32.mxu0 0.0
  %698 = vmatmul.mubr.f32.gmra.mrb[0].mxu0 %v622
  %v699 = vpop.f32.mrb[0].mxu0
  %v700 = vadd.f32 0.0, %v699
  %v701 = vpop.f32.mrb[0].mxu0
  %v702 = vadd.f32 0.0, %v701
  %703 = vmatprep.mubr.f32.mxu0 0.0
  %704 = vmatmul.mubr.f32.gmra.mrb[0].mxu0 %v625
  %v705 = vpop.f32.mrb[0].mxu0
  %v706 = vadd.f32 0.0, %v705
  %v707 = vpop.f32.mrb[0].mxu0
  %v708 = vadd.f32 0.0, %v707
  %709 = vmatprep.mubr.f32.mxu0 0.0
  %710 = vmatmul.mubr.f32.gmra.mrb[0].mxu0 %v628
  %v711 = vpop.f32.mrb[0].mxu0
  %v712 = vadd.f32 0.0, %v711
  %v713 = vpop.f32.mrb[0].mxu0
  %v714 = vadd.f32 0.0, %v713
  %715 = vmatprep.mubr.f32.mxu0 0.0
  %716 = vmatmul.mubr.f32.gmra.mrb[0].mxu0 %v631
  %v717 = vpop.f32.mrb[0].mxu0
  %v718 = vadd.f32 0.0, %v717
  %v719 = vpop.f32.mrb[0].mxu0
  %v720 = vadd.f32 0.0, %v719
  %721 = vdwg.mxu0
  %722 = vmatprep.subr.mxu0 %v599
  %723 = vmatpush1.msra.mxu0 %v598
  %724 = vmatprep.subr.mxu0 0.0
  %725 = vmatpush1.msra.mxu0 0.0
  %726 = vmatprep.subr.mxu0 0.0
  %727 = vmatpush1.msra.mxu0 0.0
  %728 = vmatprep.subr.mxu0 0.0
  %729 = vmatpush1.msra.mxu0 0.0
  %730 = vmatprep.subr.mxu0 0.0
  %731 = vmatpush1.msra.mxu0 0.0
  %732 = vmatprep.subr.mxu0 0.0
  %733 = vmatpush1.msra.mxu0 0.0
  %734 = vmatprep.subr.mxu0 0.0
  %735 = vmatpush1.msra.mxu0 0.0
  %736 = vmatprep.subr.mxu0 0.0
  %737 = vmatpush1.msra.mxu0 0.0
  %738 = vmatprep.subr.mxu0 0.0
  %739 = vmatpush1.msra.mxu0 0.0
  %740 = vmatprep.subr.mxu0 0.0
  %741 = vmatpush1.msra.mxu0 0.0
  %742 = vmatprep.subr.mxu0 0.0
  %743 = vmatpush1.msra.mxu0 0.0
  %744 = vmatprep.subr.mxu0 0.0
  %745 = vmatpush1.msra.mxu0 0.0
  %746 = vmatprep.subr.mxu0 0.0
  %747 = vmatpush1.msra.mxu0 0.0
  %748 = vmatprep.subr.mxu0 0.0
  %749 = vmatpush1.msra.mxu0 0.0
  %750 = vmatprep.subr.mxu0 0.0
  %751 = vmatpush1.msra.mxu0 0.0
  %752 = vmatprep.subr.mxu0 0.0
  %753 = vmatpush1.msra.mxu0 0.0
  %754 = vmatprep.subr.mxu0 0.0
  %755 = vmatpush1.msra.mxu0 0.0
  %756 = vmatprep.subr.mxu0 0.0
  %757 = vmatpush1.msra.mxu0 0.0
  %758 = vmatprep.subr.mxu0 0.0
  %759 = vmatpush1.msra.mxu0 0.0
  %760 = vmatprep.subr.mxu0 0.0
  %761 = vmatpush1.msra.mxu0 0.0
  %762 = vmatprep.subr.mxu0 0.0
  %763 = vmatpush1.msra.mxu0 0.0
  %764 = vmatprep.subr.mxu0 0.0
  %765 = vmatpush1.msra.mxu0 0.0
  %766 = vmatprep.subr.mxu0 0.0
  %767 = vmatpush1.msra.mxu0 0.0
  %768 = vmatprep.subr.mxu0 0.0
  %769 = vmatpush1.msra.mxu0 0.0
  %770 = vmatprep.subr.mxu0 0.0
  %771 = vmatpush1.msra.mxu0 0.0
  %772 = vmatprep.subr.mxu0 0.0
  %773 = vmatpush1.msra.mxu0 0.0
  %774 = vmatprep.subr.mxu0 0.0
  %775 = vmatpush1.msra.mxu0 0.0
  %776 = vmatprep.subr.mxu0 0.0
  %777 = vmatpush1.msra.mxu0 0.0
  %778 = vmatprep.subr.mxu0 0.0
  %779 = vmatpush1.msra.mxu0 0.0
  %780 = vmatprep.subr.mxu0 0.0
  %781 = vmatpush1.msra.mxu0 0.0
  %782 = vmatprep.subr.mxu0 0.0
  %783 = vmatpush1.msra.mxu0 0.0
  %784 = vmatprep.subr.mxu0 0.0
  %785 = vmatpush1.msra.mxu0 0.0
  %786 = vmatprep.mubr.f32.mxu0 0.0
  %787 = vmatmul.mubr.f32.gmra.mrb[0].mxu0 %v622
  %v788 = vpop.f32.mrb[0].mxu0
  %v789 = vadd.f32 0.0, %v788
  %v790 = vpop.f32.mrb[0].mxu0
  %v791 = vadd.f32 0.0, %v790
  %792 = vmatprep.mubr.f32.mxu0 0.0
  %793 = vmatmul.mubr.f32.gmra.mrb[0].mxu0 %v625
  %v794 = vpop.f32.mrb[0].mxu0
  %v795 = vadd.f32 0.0, %v794
  %v796 = vpop.f32.mrb[0].mxu0
  %v797 = vadd.f32 0.0, %v796
  %798 = vmatprep.mubr.f32.mxu0 0.0
  %799 = vmatmul.mubr.f32.gmra.mrb[0].mxu0 %v628
  %v800 = vpop.f32.mrb[0].mxu0
  %v801 = vadd.f32 0.0, %v800
  %v802 = vpop.f32.mrb[0].mxu0
  %v803 = vadd.f32 0.0, %v802
  %804 = vmatprep.mubr.f32.mxu0 0.0
  %805 = vmatmul.mubr.f32.gmra.mrb[0].mxu0 %v631
  %v806 = vpop.f32.mrb[0].mxu0
  %v807 = vadd.f32 0.0, %v806
  %v808 = vpop.f32.mrb[0].mxu0
  %v809 = vadd.f32 0.0, %v808
  %810 = vdwg.mxu0
  %v811 = vadd.f32 %v600, %v700
  %v812 = vadd.f32 %v601, %v702
  %v813 = vadd.f32 %v602, %v789
  %v814 = vadd.f32 %v603, %v791
  %v815 = vadd.f32 %v604, %v706
  %v816 = vadd.f32 %v605, %v708
  %v817 = vadd.f32 %v606, %v795
  %v818 = vadd.f32 %v607, %v797
  %v819 = vadd.f32 %v608, %v712
  %v820 = vadd.f32 %v609, %v714
  %v821 = vadd.f32 %v610, %v801
  %v822 = vadd.f32 %v611, %v803
  %v823 = vadd.f32 %v612, %v718
  %v824 = vadd.f32 %v613, %v720
  %v825 = vadd.f32 %v614, %v807
  %v826 = vadd.f32 %v615, %v809
  %827 = vst [vmem:[%s4] sm:$0xff] %v811
  %828 = vst [vmem:[%s4 + $0x8] sm:$0xff] %v812
  %829 = vst [vmem:[%s4 + $0x10] sm:$0xff] %v813
  %830 = vst [vmem:[%s4 + $0x18] sm:$0xff] %v814
  %831 = vst [vmem:[%s4 + $0x20] sm:$0xff] %v815
  %832 = vst [vmem:[%s4 + $0x28] sm:$0xff] %v816
  %833 = vst [vmem:[%s4 + $0x30] sm:$0xff] %v817
  %834 = vst [vmem:[%s4 + $0x38] sm:$0xff] %v818
  %835 = vst [vmem:[%s4 + $0x40] sm:$0xff] %v819
  %836 = vst [vmem:[%s4 + $0x48] sm:$0xff] %v820
  %837 = vst [vmem:[%s4 + $0x50] sm:$0xff] %v821
  %838 = vst [vmem:[%s4 + $0x58] sm:$0xff] %v822
  %839 = vst [vmem:[%s4 + $0x60] sm:$0xff] %v823
  %840 = vst [vmem:[%s4 + $0x68] sm:$0xff] %v824
  %841 = vst [vmem:[%s4 + $0x70] sm:$0xff] %v825
  %842 = vst [vmem:[%s4 + $0x78] sm:$0xff] %v826
  // Predicated region
  $region18: #{decoder_forward.6} parent=0 // pred_check
    _
  $region19: #{decoder_forward.6} parent=0 // pred_check_branch
    %844 = sbr.rel (0) target = $region21
  $region20: #{decoder_forward.6} parent=0 // pred_region
    _
  $region21: #{decoder_forward.6} parent=0 // pred_fallthru
    _
  // Predicated region
  $region22: #{decoder_forward.6} parent=0 // pred_check
    _
  $region23: #{decoder_forward.6} parent=0 // pred_check_branch
    %846 = sbr.rel (0) target = $region25
  $region24: #{decoder_forward.6} parent=0 // pred_region
    _
  $region25: #{decoder_forward.6} parent=0 // pred_fallthru
    _

// kernel: decoder_forward.7
$region0: #{decoder_forward.7}
  #allocation0 [shape = 'u32[]', space=smem, size = 0x4, offset = 0x4, fixed_abs, tag = 'smem constant byte address 0x4 - core index']
  #allocation1 [shape = 'u32[144,128]{1,0:T(1,128)}', space=vmem, size = 0x12000, scoped, tag = 'internal scratch']
  %s0 = inlined_call_operand.vmem [shape: f32[8,288], index: 0, kind: input, shape index: {}]
  %s1 = inlined_call_operand.vmem [shape: f32[32,8], index: 1, kind: input, shape index: {}]
  %s2 = inlined_call_operand.vmem [shape: f32[288,512], index: 2, kind: input, shape index: {}]
  %s3 = inlined_call_operand.vmem [shape: f32[32,512], index: 3, kind: input, shape index: {}]
  %s4 = inlined_call_operand.vmem [shape: f32[32,512], index: 4, kind: output, shape index: {}]
  %s5 = sld [smem:[#allocation0]]
  $region26: #{decoder_forward.7} parent=0
    _
  %s7 = ssub.s32 1, %s5
  %s8 = scalar_select 0, %s7, %s5
  // Predicated region
  $region2: #{decoder_forward.7} parent=0 // pred_check
    _
  $region3: #{decoder_forward.7} parent=0 // pred_check_branch
    %10 = sbr.rel (0) target = $region5
  $region4: #{decoder_forward.7} parent=0 // pred_region
    _
  $region5: #{decoder_forward.7} parent=0 // pred_fallthru
    _
  // Predicated region
  $region6: #{decoder_forward.7} parent=0 // pred_check
    _
  $region7: #{decoder_forward.7} parent=0 // pred_check_branch
    %12 = sbr.rel (0) target = $region9
  $region8: #{decoder_forward.7} parent=0 // pred_region
    _
  $region9: #{decoder_forward.7} parent=0 // pred_fallthru
    _
  // Predicated region
  $region10: #{decoder_forward.7} parent=0 // pred_check
    _
  $region11: #{decoder_forward.7} parent=0 // pred_check_branch
    %14 = sbr.rel (0) target = $region13
  $region12: #{decoder_forward.7} parent=0 // pred_region
    _
  $region13: #{decoder_forward.7} parent=0 // pred_fallthru
    _
  // Predicated region
  $region14: #{decoder_forward.7} parent=0 // pred_check
    _
  $region15: #{decoder_forward.7} parent=0 // pred_check_branch
    %16 = sbr.rel (0) target = $region17
  $region16: #{decoder_forward.7} parent=0 // pred_region
    _
  $region17: #{decoder_forward.7} parent=0 // pred_fallthru
    _
  %v17 = vld [vmem:[%s2] sm:$0xff]
  %v18 = vld [vmem:[%s2 + $0x8] sm:$0xff]
  %v19 = vld [vmem:[%s2 + $0x10] sm:$0xff]
  %v20 = vld [vmem:[%s2 + $0x18] sm:$0xff]
  %v21 = vld [vmem:[%s2 + $0x20] sm:$0xff]
  %v22 = vld [vmem:[%s2 + $0x28] sm:$0xff]
  %v23 = vld [vmem:[%s2 + $0x30] sm:$0xff]
  %v24 = vld [vmem:[%s2 + $0x38] sm:$0xff]
  %v25 = vld [vmem:[%s2 + $0x40] sm:$0xff]
  %v26 = vld [vmem:[%s2 + $0x48] sm:$0xff]
  %v27 = vld [vmem:[%s2 + $0x50] sm:$0xff]
  %v28 = vld [vmem:[%s2 + $0x58] sm:$0xff]
  %v29 = vld [vmem:[%s2 + $0x60] sm:$0xff]
  %v30 = vld [vmem:[%s2 + $0x68] sm:$0xff]
  %v31 = vld [vmem:[%s2 + $0x70] sm:$0xff]
  %v32 = vld [vmem:[%s2 + $0x78] sm:$0xff]
  %v33 = vld [vmem:[%s2 + $0x80] sm:$0xff]
  %v34 = vld [vmem:[%s2 + $0x88] sm:$0xff]
  %v35 = vld [vmem:[%s2 + $0x90] sm:$0xff]
  %v36 = vld [vmem:[%s2 + $0x98] sm:$0xff]
  %v37 = vld [vmem:[%s2 + $0xa0] sm:$0xff]
  %v38 = vld [vmem:[%s2 + $0xa8] sm:$0xff]
  %v39 = vld [vmem:[%s2 + $0xb0] sm:$0xff]
  %v40 = vld [vmem:[%s2 + $0xb8] sm:$0xff]
  %v41 = vld [vmem:[%s2 + $0xc0] sm:$0xff]
  %v42 = vld [vmem:[%s2 + $0xc8] sm:$0xff]
  %v43 = vld [vmem:[%s2 + $0xd0] sm:$0xff]
  %v44 = vld [vmem:[%s2 + $0xd8] sm:$0xff]
  %v45 = vld [vmem:[%s2 + $0xe0] sm:$0xff]
  %v46 = vld [vmem:[%s2 + $0xe8] sm:$0xff]
  %v47 = vld [vmem:[%s2 + $0xf0] sm:$0xff]
  %v48 = vld [vmem:[%s2 + $0xf8] sm:$0xff]
  %v49 = vld [vmem:[%s2 + $0x100] sm:$0xff]
  %v50 = vld [vmem:[%s2 + $0x108] sm:$0xff]
  %v51 = vld [vmem:[%s2 + $0x110] sm:$0xff]
  %v52 = vld [vmem:[%s2 + $0x118] sm:$0xff]
  %v53 = vld [vmem:[%s2 + $0x120] sm:$0xff]
  %v54 = vld [vmem:[%s2 + $0x128] sm:$0xff]
  %v55 = vld [vmem:[%s2 + $0x130] sm:$0xff]
  %v56 = vld [vmem:[%s2 + $0x138] sm:$0xff]
  %v57 = vld [vmem:[%s2 + $0x140] sm:$0xff]
  %v58 = vld [vmem:[%s2 + $0x148] sm:$0xff]
  %v59 = vld [vmem:[%s2 + $0x150] sm:$0xff]
  %v60 = vld [vmem:[%s2 + $0x158] sm:$0xff]
  %v61 = vld [vmem:[%s2 + $0x160] sm:$0xff]
  %v62 = vld [vmem:[%s2 + $0x168] sm:$0xff]
  %v63 = vld [vmem:[%s2 + $0x170] sm:$0xff]
  %v64 = vld [vmem:[%s2 + $0x178] sm:$0xff]
  %v65 = vld [vmem:[%s2 + $0x180] sm:$0xff]
  %v66 = vld [vmem:[%s2 + $0x188] sm:$0xff]
  %v67 = vld [vmem:[%s2 + $0x190] sm:$0xff]
  %v68 = vld [vmem:[%s2 + $0x198] sm:$0xff]
  %v69 = vld [vmem:[%s2 + $0x1a0] sm:$0xff]
  %v70 = vld [vmem:[%s2 + $0x1a8] sm:$0xff]
  %v71 = vld [vmem:[%s2 + $0x1b0] sm:$0xff]
  %v72 = vld [vmem:[%s2 + $0x1b8] sm:$0xff]
  %v73 = vld [vmem:[%s2 + $0x1c0] sm:$0xff]
  %v74 = vld [vmem:[%s2 + $0x1c8] sm:$0xff]
  %v75 = vld [vmem:[%s2 + $0x1d0] sm:$0xff]
  %v76 = vld [vmem:[%s2 + $0x1d8] sm:$0xff]
  %v77 = vld [vmem:[%s2 + $0x1e0] sm:$0xff]
  %v78 = vld [vmem:[%s2 + $0x1e8] sm:$0xff]
  %v79 = vld [vmem:[%s2 + $0x1f0] sm:$0xff]
  %v80 = vld [vmem:[%s2 + $0x1f8] sm:$0xff]
  %v81 = vld [vmem:[%s2 + $0x200] sm:$0xff]
  %v82 = vld [vmem:[%s2 + $0x208] sm:$0xff]
  %v83 = vld [vmem:[%s2 + $0x210] sm:$0xff]
  %v84 = vld [vmem:[%s2 + $0x218] sm:$0xff]
  %v85 = vld [vmem:[%s2 + $0x220] sm:$0xff]
  %v86 = vld [vmem:[%s2 + $0x228] sm:$0xff]
  %v87 = vld [vmem:[%s2 + $0x230] sm:$0xff]
  %v88 = vld [vmem:[%s2 + $0x238] sm:$0xff]
  %v89 = vld [vmem:[%s2 + $0x240] sm:$0xff]
  %v90 = vld [vmem:[%s2 + $0x248] sm:$0xff]
  %v91 = vld [vmem:[%s2 + $0x250] sm:$0xff]
  %v92 = vld [vmem:[%s2 + $0x258] sm:$0xff]
  %v93 = vld [vmem:[%s2 + $0x260] sm:$0xff]
  %v94 = vld [vmem:[%s2 + $0x268] sm:$0xff]
  %v95 = vld [vmem:[%s2 + $0x270] sm:$0xff]
  %v96 = vld [vmem:[%s2 + $0x278] sm:$0xff]
  %v97 = vld [vmem:[%s2 + $0x280] sm:$0xff]
  %v98 = vld [vmem:[%s2 + $0x288] sm:$0xff]
  %v99 = vld [vmem:[%s2 + $0x290] sm:$0xff]
  %v100 = vld [vmem:[%s2 + $0x298] sm:$0xff]
  %v101 = vld [vmem:[%s2 + $0x2a0] sm:$0xff]
  %v102 = vld [vmem:[%s2 + $0x2a8] sm:$0xff]
  %v103 = vld [vmem:[%s2 + $0x2b0] sm:$0xff]
  %v104 = vld [vmem:[%s2 + $0x2b8] sm:$0xff]
  %v105 = vld [vmem:[%s2 + $0x2c0] sm:$0xff]
  %v106 = vld [vmem:[%s2 + $0x2c8] sm:$0xff]
  %v107 = vld [vmem:[%s2 + $0x2d0] sm:$0xff]
  %v108 = vld [vmem:[%s2 + $0x2d8] sm:$0xff]
  %v109 = vld [vmem:[%s2 + $0x2e0] sm:$0xff]
  %v110 = vld [vmem:[%s2 + $0x2e8] sm:$0xff]
  %v111 = vld [vmem:[%s2 + $0x2f0] sm:$0xff]
  %v112 = vld [vmem:[%s2 + $0x2f8] sm:$0xff]
  %v113 = vld [vmem:[%s2 + $0x300] sm:$0xff]
  %v114 = vld [vmem:[%s2 + $0x308] sm:$0xff]
  %v115 = vld [vmem:[%s2 + $0x310] sm:$0xff]
  %v116 = vld [vmem:[%s2 + $0x318] sm:$0xff]
  %v117 = vld [vmem:[%s2 + $0x320] sm:$0xff]
  %v118 = vld [vmem:[%s2 + $0x328] sm:$0xff]
  %v119 = vld [vmem:[%s2 + $0x330] sm:$0xff]
  %v120 = vld [vmem:[%s2 + $0x338] sm:$0xff]
  %v121 = vld [vmem:[%s2 + $0x340] sm:$0xff]
  %v122 = vld [vmem:[%s2 + $0x348] sm:$0xff]
  %v123 = vld [vmem:[%s2 + $0x350] sm:$0xff]
  %v124 = vld [vmem:[%s2 + $0x358] sm:$0xff]
  %v125 = vld [vmem:[%s2 + $0x360] sm:$0xff]
  %v126 = vld [vmem:[%s2 + $0x368] sm:$0xff]
  %v127 = vld [vmem:[%s2 + $0x370] sm:$0xff]
  %v128 = vld [vmem:[%s2 + $0x378] sm:$0xff]
  %v129 = vld [vmem:[%s2 + $0x380] sm:$0xff]
  %v130 = vld [vmem:[%s2 + $0x388] sm:$0xff]
  %v131 = vld [vmem:[%s2 + $0x390] sm:$0xff]
  %v132 = vld [vmem:[%s2 + $0x398] sm:$0xff]
  %v133 = vld [vmem:[%s2 + $0x3a0] sm:$0xff]
  %v134 = vld [vmem:[%s2 + $0x3a8] sm:$0xff]
  %v135 = vld [vmem:[%s2 + $0x3b0] sm:$0xff]
  %v136 = vld [vmem:[%s2 + $0x3b8] sm:$0xff]
  %v137 = vld [vmem:[%s2 + $0x3c0] sm:$0xff]
  %v138 = vld [vmem:[%s2 + $0x3c8] sm:$0xff]
  %v139 = vld [vmem:[%s2 + $0x3d0] sm:$0xff]
  %v140 = vld [vmem:[%s2 + $0x3d8] sm:$0xff]
  %v141 = vld [vmem:[%s2 + $0x3e0] sm:$0xff]
  %v142 = vld [vmem:[%s2 + $0x3e8] sm:$0xff]
  %v143 = vld [vmem:[%s2 + $0x3f0] sm:$0xff]
  %v144 = vld [vmem:[%s2 + $0x3f8] sm:$0xff]
  %v145 = vld [vmem:[%s2 + $0x400] sm:$0xff]
  %v146 = vld [vmem:[%s2 + $0x408] sm:$0xff]
  %v147 = vld [vmem:[%s2 + $0x410] sm:$0xff]
  %v148 = vld [vmem:[%s2 + $0x418] sm:$0xff]
  %v149 = vld [vmem:[%s2 + $0x420] sm:$0xff]
  %v150 = vld [vmem:[%s2 + $0x428] sm:$0xff]
  %v151 = vld [vmem:[%s2 + $0x430] sm:$0xff]
  %v152 = vld [vmem:[%s2 + $0x438] sm:$0xff]
  %v153 = vld [vmem:[%s2 + $0x440] sm:$0xff]
  %v154 = vld [vmem:[%s2 + $0x448] sm:$0xff]
  %v155 = vld [vmem:[%s2 + $0x450] sm:$0xff]
  %v156 = vld [vmem:[%s2 + $0x458] sm:$0xff]
  %v157 = vld [vmem:[%s2 + $0x460] sm:$0xff]
  %v158 = vld [vmem:[%s2 + $0x468] sm:$0xff]
  %v159 = vld [vmem:[%s2 + $0x470] sm:$0xff]
  %v160 = vld [vmem:[%s2 + $0x478] sm:$0xff]
  %v161 = vmax.f32 %v17, 0.0
  %v162 = vmax.f32 %v18, 0.0
  %v163 = vmax.f32 %v19, 0.0
  %v164 = vmax.f32 %v20, 0.0
  %v165 = vmax.f32 %v21, 0.0
  %v166 = vmax.f32 %v22, 0.0
  %v167 = vmax.f32 %v23, 0.0
  %v168 = vmax.f32 %v24, 0.0
  %v169 = vmax.f32 %v25, 0.0
  %v170 = vmax.f32 %v26, 0.0
  %v171 = vmax.f32 %v27, 0.0
  %v172 = vmax.f32 %v28, 0.0
  %v173 = vmax.f32 %v29, 0.0
  %v174 = vmax.f32 %v30, 0.0
  %v175 = vmax.f32 %v31, 0.0
  %v176 = vmax.f32 %v32, 0.0
  %v177 = vmax.f32 %v33, 0.0
  %v178 = vmax.f32 %v34, 0.0
  %v179 = vmax.f32 %v35, 0.0
  %v180 = vmax.f32 %v36, 0.0
  %v181 = vmax.f32 %v37, 0.0
  %v182 = vmax.f32 %v38, 0.0
  %v183 = vmax.f32 %v39, 0.0
  %v184 = vmax.f32 %v40, 0.0
  %v185 = vmax.f32 %v41, 0.0
  %v186 = vmax.f32 %v42, 0.0
  %v187 = vmax.f32 %v43, 0.0
  %v188 = vmax.f32 %v44, 0.0
  %v189 = vmax.f32 %v45, 0.0
  %v190 = vmax.f32 %v46, 0.0
  %v191 = vmax.f32 %v47, 0.0
  %v192 = vmax.f32 %v48, 0.0
  %v193 = vmax.f32 %v49, 0.0
  %v194 = vmax.f32 %v50, 0.0
  %v195 = vmax.f32 %v51, 0.0
  %v196 = vmax.f32 %v52, 0.0
  %v197 = vmax.f32 %v53, 0.0
  %v198 = vmax.f32 %v54, 0.0
  %v199 = vmax.f32 %v55, 0.0
  %v200 = vmax.f32 %v56, 0.0
  %v201 = vmax.f32 %v57, 0.0
  %v202 = vmax.f32 %v58, 0.0
  %v203 = vmax.f32 %v59, 0.0
  %v204 = vmax.f32 %v60, 0.0
  %v205 = vmax.f32 %v61, 0.0
  %v206 = vmax.f32 %v62, 0.0
  %v207 = vmax.f32 %v63, 0.0
  %v208 = vmax.f32 %v64, 0.0
  %v209 = vmax.f32 %v65, 0.0
  %v210 = vmax.f32 %v66, 0.0
  %v211 = vmax.f32 %v67, 0.0
  %v212 = vmax.f32 %v68, 0.0
  %v213 = vmax.f32 %v69, 0.0
  %v214 = vmax.f32 %v70, 0.0
  %v215 = vmax.f32 %v71, 0.0
  %v216 = vmax.f32 %v72, 0.0
  %v217 = vmax.f32 %v73, 0.0
  %v218 = vmax.f32 %v74, 0.0
  %v219 = vmax.f32 %v75, 0.0
  %v220 = vmax.f32 %v76, 0.0
  %v221 = vmax.f32 %v77, 0.0
  %v222 = vmax.f32 %v78, 0.0
  %v223 = vmax.f32 %v79, 0.0
  %v224 = vmax.f32 %v80, 0.0
  %v225 = vmax.f32 %v81, 0.0
  %v226 = vmax.f32 %v82, 0.0
  %v227 = vmax.f32 %v83, 0.0
  %v228 = vmax.f32 %v84, 0.0
  %v229 = vmax.f32 %v85, 0.0
  %v230 = vmax.f32 %v86, 0.0
  %v231 = vmax.f32 %v87, 0.0
  %v232 = vmax.f32 %v88, 0.0
  %v233 = vmax.f32 %v89, 0.0
  %v234 = vmax.f32 %v90, 0.0
  %v235 = vmax.f32 %v91, 0.0
  %v236 = vmax.f32 %v92, 0.0
  %v237 = vmax.f32 %v93, 0.0
  %v238 = vmax.f32 %v94, 0.0
  %v239 = vmax.f32 %v95, 0.0
  %v240 = vmax.f32 %v96, 0.0
  %v241 = vmax.f32 %v97, 0.0
  %v242 = vmax.f32 %v98, 0.0
  %v243 = vmax.f32 %v99, 0.0
  %v244 = vmax.f32 %v100, 0.0
  %v245 = vmax.f32 %v101, 0.0
  %v246 = vmax.f32 %v102, 0.0
  %v247 = vmax.f32 %v103, 0.0
  %v248 = vmax.f32 %v104, 0.0
  %v249 = vmax.f32 %v105, 0.0
  %v250 = vmax.f32 %v106, 0.0
  %v251 = vmax.f32 %v107, 0.0
  %v252 = vmax.f32 %v108, 0.0
  %v253 = vmax.f32 %v109, 0.0
  %v254 = vmax.f32 %v110, 0.0
  %v255 = vmax.f32 %v111, 0.0
  %v256 = vmax.f32 %v112, 0.0
  %v257 = vmax.f32 %v113, 0.0
  %v258 = vmax.f32 %v114, 0.0
  %v259 = vmax.f32 %v115, 0.0
  %v260 = vmax.f32 %v116, 0.0
  %v261 = vmax.f32 %v117, 0.0
  %v262 = vmax.f32 %v118, 0.0
  %v263 = vmax.f32 %v119, 0.0
  %v264 = vmax.f32 %v120, 0.0
  %v265 = vmax.f32 %v121, 0.0
  %v266 = vmax.f32 %v122, 0.0
  %v267 = vmax.f32 %v123, 0.0
  %v268 = vmax.f32 %v124, 0.0
  %v269 = vmax.f32 %v125, 0.0
  %v270 = vmax.f32 %v126, 0.0
  %v271 = vmax.f32 %v127, 0.0
  %v272 = vmax.f32 %v128, 0.0
  %v273 = vmax.f32 %v129, 0.0
  %v274 = vmax.f32 %v130, 0.0
  %v275 = vmax.f32 %v131, 0.0
  %v276 = vmax.f32 %v132, 0.0
  %v277 = vmax.f32 %v133, 0.0
  %v278 = vmax.f32 %v134, 0.0
  %v279 = vmax.f32 %v135, 0.0
  %v280 = vmax.f32 %v136, 0.0
  %v281 = vmax.f32 %v137, 0.0
  %v282 = vmax.f32 %v138, 0.0
  %v283 = vmax.f32 %v139, 0.0
  %v284 = vmax.f32 %v140, 0.0
  %v285 = vmax.f32 %v141, 0.0
  %v286 = vmax.f32 %v142, 0.0
  %v287 = vmax.f32 %v143, 0.0
  %v288 = vmax.f32 %v144, 0.0
  %v289 = vmax.f32 %v145, 0.0
  %v290 = vmax.f32 %v146, 0.0
  %v291 = vmax.f32 %v147, 0.0
  %v292 = vmax.f32 %v148, 0.0
  %v293 = vmax.f32 %v149, 0.0
  %v294 = vmax.f32 %v150, 0.0
  %v295 = vmax.f32 %v151, 0.0
  %v296 = vmax.f32 %v152, 0.0
  %v297 = vmax.f32 %v153, 0.0
  %v298 = vmax.f32 %v154, 0.0
  %v299 = vmax.f32 %v155, 0.0
  %v300 = vmax.f32 %v156, 0.0
  %v301 = vmax.f32 %v157, 0.0
  %v302 = vmax.f32 %v158, 0.0
  %v303 = vmax.f32 %v159, 0.0
  %v304 = vmax.f32 %v160, 0.0
  %v305 = vld [vmem:[%s0] sm:$0xff]
  %v306 = vld [vmem:[%s0 + $0x8] sm:$0xff]
  %v307 = vld [vmem:[%s0 + $0x10] sm:$0xff]
  %vm308 = vcmask 261120
  %v310 = vsel %vm308, %v307, 0
  %312 = vmatprep.subr.mxu0 %v162
  %313 = vmatpush1.msra.mxu0 %v161
  %314 = vmatprep.subr.mxu0 %v166
  %315 = vmatpush1.msra.mxu0 %v165
  %316 = vmatprep.subr.mxu0 %v170
  %317 = vmatpush1.msra.mxu0 %v169
  %318 = vmatprep.subr.mxu0 %v174
  %319 = vmatpush1.msra.mxu0 %v173
  %320 = vmatprep.subr.mxu0 %v178
  %321 = vmatpush1.msra.mxu0 %v177
  %322 = vmatprep.subr.mxu0 %v182
  %323 = vmatpush1.msra.mxu0 %v181
  %324 = vmatprep.subr.mxu0 %v186
  %325 = vmatpush1.msra.mxu0 %v185
  %326 = vmatprep.subr.mxu0 %v190
  %327 = vmatpush1.msra.mxu0 %v189
  %328 = vmatprep.subr.mxu0 %v194
  %329 = vmatpush1.msra.mxu0 %v193
  %330 = vmatprep.subr.mxu0 %v198
  %331 = vmatpush1.msra.mxu0 %v197
  %332 = vmatprep.subr.mxu0 %v202
  %333 = vmatpush1.msra.mxu0 %v201
  %334 = vmatprep.subr.mxu0 %v206
  %335 = vmatpush1.msra.mxu0 %v205
  %336 = vmatprep.subr.mxu0 %v210
  %337 = vmatpush1.msra.mxu0 %v209
  %338 = vmatprep.subr.mxu0 %v214
  %339 = vmatpush1.msra.mxu0 %v213
  %340 = vmatprep.subr.mxu0 %v218
  %341 = vmatpush1.msra.mxu0 %v217
  %342 = vmatprep.subr.mxu0 %v222
  %343 = vmatpush1.msra.mxu0 %v221
  %344 = vmatprep.subr.mxu0 %v226
  %345 = vmatpush1.msra.mxu0 %v225
  %346 = vmatprep.subr.mxu0 %v230
  %347 = vmatpush1.msra.mxu0 %v229
  %348 = vmatprep.subr.mxu0 %v234
  %349 = vmatpush1.msra.mxu0 %v233
  %350 = vmatprep.subr.mxu0 %v238
  %351 = vmatpush1.msra.mxu0 %v237
  %352 = vmatprep.subr.mxu0 %v242
  %353 = vmatpush1.msra.mxu0 %v241
  %354 = vmatprep.subr.mxu0 %v246
  %355 = vmatpush1.msra.mxu0 %v245
  %356 = vmatprep.subr.mxu0 %v250
  %357 = vmatpush1.msra.mxu0 %v249
  %358 = vmatprep.subr.mxu0 %v254
  %359 = vmatpush1.msra.mxu0 %v253
  %360 = vmatprep.subr.mxu0 %v258
  %361 = vmatpush1.msra.mxu0 %v257
  %362 = vmatprep.subr.mxu0 %v262
  %363 = vmatpush1.msra.mxu0 %v261
  %364 = vmatprep.subr.mxu0 %v266
  %365 = vmatpush1.msra.mxu0 %v265
  %366 = vmatprep.subr.mxu0 %v270
  %367 = vmatpush1.msra.mxu0 %v269
  %368 = vmatprep.subr.mxu0 %v274
  %369 = vmatpush1.msra.mxu0 %v273
  %370 = vmatprep.subr.mxu0 %v278
  %371 = vmatpush1.msra.mxu0 %v277
  %372 = vmatprep.subr.mxu0 %v282
  %373 = vmatpush1.msra.mxu0 %v281
  %374 = vmatprep.subr.mxu0 %v286
  %375 = vmatpush1.msra.mxu0 %v285
  %376 = vmatprep.mubr.f32.mxu0 %v306
  %377 = vmatmul.mubr.f32.gmra.mrb[0].mxu0 %v305
  %v378 = vpop.f32.mrb[0].mxu0
  %v379 = vadd.f32 0.0, %v378
  %v380 = vpop.f32.mrb[0].mxu0
  %v381 = vadd.f32 0.0, %v380
  %382 = vdwg.mxu0
  %383 = vmatprep.subr.mxu0 %v290
  %384 = vmatpush1.msra.mxu0 %v289
  %385 = vmatprep.subr.mxu0 %v294
  %386 = vmatpush1.msra.mxu0 %v293
  %387 = vmatprep.subr.mxu0 %v298
  %388 = vmatpush1.msra.mxu0 %v297
  %389 = vmatprep.subr.mxu0 %v302
  %390 = vmatpush1.msra.mxu0 %v301
  %391 = vmatprep.subr.mxu0 0.0
  %392 = vmatpush1.msra.mxu0 0.0
  %393 = vmatprep.subr.mxu0 0.0
  %394 = vmatpush1.msra.mxu0 0.0
  %395 = vmatprep.subr.mxu0 0.0
  %396 = vmatpush1.msra.mxu0 0.0
  %397 = vmatprep.subr.mxu0 0.0
  %398 = vmatpush1.msra.mxu0 0.0
  %399 = vmatprep.subr.mxu0 0.0
  %400 = vmatpush1.msra.mxu0 0.0
  %401 = vmatprep.subr.mxu0 0.0
  %402 = vmatpush1.msra.mxu0 0.0
  %403 = vmatprep.subr.mxu0 0.0
  %404 = vmatpush1.msra.mxu0 0.0
  %405 = vmatprep.subr.mxu0 0.0
  %406 = vmatpush1.msra.mxu0 0.0
  %407 = vmatprep.subr.mxu0 0.0
  %408 = vmatpush1.msra.mxu0 0.0
  %409 = vmatprep.subr.mxu0 0.0
  %410 = vmatpush1.msra.mxu0 0.0
  %411 = vmatprep.subr.mxu0 0.0
  %412 = vmatpush1.msra.mxu0 0.0
  %413 = vmatprep.subr.mxu0 0.0
  %414 = vmatpush1.msra.mxu0 0.0
  %415 = vmatprep.subr.mxu0 0.0
  %416 = vmatpush1.msra.mxu0 0.0
  %417 = vmatprep.subr.mxu0 0.0
  %418 = vmatpush1.msra.mxu0 0.0
  %419 = vmatprep.subr.mxu0 0.0
  %420 = vmatpush1.msra.mxu0 0.0
  %421 = vmatprep.subr.mxu0 0.0
  %422 = vmatpush1.msra.mxu0 0.0
  %423 = vmatprep.subr.mxu0 0.0
  %424 = vmatpush1.msra.mxu0 0.0
  %425 = vmatprep.subr.mxu0 0.0
  %426 = vmatpush1.msra.mxu0 0.0
  %427 = vmatprep.subr.mxu0 0.0
  %428 = vmatpush1.msra.mxu0 0.0
  %429 = vmatprep.subr.mxu0 0.0
  %430 = vmatpush1.msra.mxu0 0.0
  %431 = vmatprep.subr.mxu0 0.0
  %432 = vmatpush1.msra.mxu0 0.0
  %433 = vmatprep.subr.mxu0 0.0
  %434 = vmatpush1.msra.mxu0 0.0
  %435 = vmatprep.subr.mxu0 0.0
  %436 = vmatpush1.msra.mxu0 0.0
  %437 = vmatprep.subr.mxu0 0.0
  %438 = vmatpush1.msra.mxu0 0.0
  %439 = vmatprep.subr.mxu0 0.0
  %440 = vmatpush1.msra.mxu0 0.0
  %441 = vmatprep.subr.mxu0 0.0
  %442 = vmatpush1.msra.mxu0 0.0
  %443 = vmatprep.subr.mxu0 0.0
  %444 = vmatpush1.msra.mxu0 0.0
  %445 = vmatprep.subr.mxu0 0.0
  %446 = vmatpush1.msra.mxu0 0.0
  %447 = vmatprep.mubr.f32.mxu0 0.0
  %448 = vmatmul.mubr.f32.gmra.mrb[0].mxu0 %v310
  %v449 = vpop.f32.mrb[0].mxu0
  %v450 = vadd.f32 %v379, %v449
  %v451 = vpop.f32.mrb[0].mxu0
  %v452 = vadd.f32 %v381, %v451
  %453 = vdwg.mxu0
  %454 = vmatprep.subr.mxu0 %v164
  %455 = vmatpush1.msra.mxu0 %v163
  %456 = vmatprep.subr.mxu0 %v168
  %457 = vmatpush1.msra.mxu0 %v167
  %458 = vmatprep.subr.mxu0 %v172
  %459 = vmatpush1.msra.mxu0 %v171
  %460 = vmatprep.subr.mxu0 %v176
  %461 = vmatpush1.msra.mxu0 %v175
  %462 = vmatprep.subr.mxu0 %v180
  %463 = vmatpush1.msra.mxu0 %v179
  %464 = vmatprep.subr.mxu0 %v184
  %465 = vmatpush1.msra.mxu0 %v183
  %466 = vmatprep.subr.mxu0 %v188
  %467 = vmatpush1.msra.mxu0 %v187
  %468 = vmatprep.subr.mxu0 %v192
  %469 = vmatpush1.msra.mxu0 %v191
  %470 = vmatprep.subr.mxu0 %v196
  %471 = vmatpush1.msra.mxu0 %v195
  %472 = vmatprep.subr.mxu0 %v200
  %473 = vmatpush1.msra.mxu0 %v199
  %474 = vmatprep.subr.mxu0 %v204
  %475 = vmatpush1.msra.mxu0 %v203
  %476 = vmatprep.subr.mxu0 %v208
  %477 = vmatpush1.msra.mxu0 %v207
  %478 = vmatprep.subr.mxu0 %v212
  %479 = vmatpush1.msra.mxu0 %v211
  %480 = vmatprep.subr.mxu0 %v216
  %481 = vmatpush1.msra.mxu0 %v215
  %482 = vmatprep.subr.mxu0 %v220
  %483 = vmatpush1.msra.mxu0 %v219
  %484 = vmatprep.subr.mxu0 %v224
  %485 = vmatpush1.msra.mxu0 %v223
  %486 = vmatprep.subr.mxu0 %v228
  %487 = vmatpush1.msra.mxu0 %v227
  %488 = vmatprep.subr.mxu0 %v232
  %489 = vmatpush1.msra.mxu0 %v231
  %490 = vmatprep.subr.mxu0 %v236
  %491 = vmatpush1.msra.mxu0 %v235
  %492 = vmatprep.subr.mxu0 %v240
  %493 = vmatpush1.msra.mxu0 %v239
  %494 = vmatprep.subr.mxu0 %v244
  %495 = vmatpush1.msra.mxu0 %v243
  %496 = vmatprep.subr.mxu0 %v248
  %497 = vmatpush1.msra.mxu0 %v247
  %498 = vmatprep.subr.mxu0 %v252
  %499 = vmatpush1.msra.mxu0 %v251
  %500 = vmatprep.subr.mxu0 %v256
  %501 = vmatpush1.msra.mxu0 %v255
  %502 = vmatprep.subr.mxu0 %v260
  %503 = vmatpush1.msra.mxu0 %v259
  %504 = vmatprep.subr.mxu0 %v264
  %505 = vmatpush1.msra.mxu0 %v263
  %506 = vmatprep.subr.mxu0 %v268
  %507 = vmatpush1.msra.mxu0 %v267
  %508 = vmatprep.subr.mxu0 %v272
  %509 = vmatpush1.msra.mxu0 %v271
  %510 = vmatprep.subr.mxu0 %v276
  %511 = vmatpush1.msra.mxu0 %v275
  %512 = vmatprep.subr.mxu0 %v280
  %513 = vmatpush1.msra.mxu0 %v279
  %514 = vmatprep.subr.mxu0 %v284
  %515 = vmatpush1.msra.mxu0 %v283
  %516 = vmatprep.subr.mxu0 %v288
  %517 = vmatpush1.msra.mxu0 %v287
  %518 = vmatprep.mubr.f32.mxu0 %v306
  %519 = vmatmul.mubr.f32.gmra.mrb[0].mxu0 %v305
  %v520 = vpop.f32.mrb[0].mxu0
  %v521 = vadd.f32 0.0, %v520
  %v522 = vpop.f32.mrb[0].mxu0
  %v523 = vadd.f32 0.0, %v522
  %524 = vdwg.mxu0
  %525 = vmatprep.subr.mxu0 %v292
  %526 = vmatpush1.msra.mxu0 %v291
  %527 = vmatprep.subr.mxu0 %v296
  %528 = vmatpush1.msra.mxu0 %v295
  %529 = vmatprep.subr.mxu0 %v300
  %530 = vmatpush1.msra.mxu0 %v299
  %531 = vmatprep.subr.mxu0 %v304
  %532 = vmatpush1.msra.mxu0 %v303
  %533 = vmatprep.subr.mxu0 0.0
  %534 = vmatpush1.msra.mxu0 0.0
  %535 = vmatprep.subr.mxu0 0.0
  %536 = vmatpush1.msra.mxu0 0.0
  %537 = vmatprep.subr.mxu0 0.0
  %538 = vmatpush1.msra.mxu0 0.0
  %539 = vmatprep.subr.mxu0 0.0
  %540 = vmatpush1.msra.mxu0 0.0
  %541 = vmatprep.subr.mxu0 0.0
  %542 = vmatpush1.msra.mxu0 0.0
  %543 = vmatprep.subr.mxu0 0.0
  %544 = vmatpush1.msra.mxu0 0.0
  %545 = vmatprep.subr.mxu0 0.0
  %546 = vmatpush1.msra.mxu0 0.0
  %547 = vmatprep.subr.mxu0 0.0
  %548 = vmatpush1.msra.mxu0 0.0
  %549 = vmatprep.subr.mxu0 0.0
  %550 = vmatpush1.msra.mxu0 0.0
  %551 = vmatprep.subr.mxu0 0.0
  %552 = vmatpush1.msra.mxu0 0.0
  %553 = vmatprep.subr.mxu0 0.0
  %554 = vmatpush1.msra.mxu0 0.0
  %555 = vmatprep.subr.mxu0 0.0
  %556 = vmatpush1.msra.mxu0 0.0
  %557 = vmatprep.subr.mxu0 0.0
  %558 = vmatpush1.msra.mxu0 0.0
  %559 = vmatprep.subr.mxu0 0.0
  %560 = vmatpush1.msra.mxu0 0.0
  %561 = vmatprep.subr.mxu0 0.0
  %562 = vmatpush1.msra.mxu0 0.0
  %563 = vmatprep.subr.mxu0 0.0
  %564 = vmatpush1.msra.mxu0 0.0
  %565 = vmatprep.subr.mxu0 0.0
  %566 = vmatpush1.msra.mxu0 0.0
  %567 = vmatprep.subr.mxu0 0.0
  %568 = vmatpush1.msra.mxu0 0.0
  %569 = vmatprep.subr.mxu0 0.0
  %570 = vmatpush1.msra.mxu0 0.0
  %571 = vmatprep.subr.mxu0 0.0
  %572 = vmatpush1.msra.mxu0 0.0
  %573 = vmatprep.subr.mxu0 0.0
  %574 = vmatpush1.msra.mxu0 0.0
  %575 = vmatprep.subr.mxu0 0.0
  %576 = vmatpush1.msra.mxu0 0.0
  %577 = vmatprep.subr.mxu0 0.0
  %578 = vmatpush1.msra.mxu0 0.0
  %579 = vmatprep.subr.mxu0 0.0
  %580 = vmatpush1.msra.mxu0 0.0
  %581 = vmatprep.subr.mxu0 0.0
  %582 = vmatpush1.msra.mxu0 0.0
  %583 = vmatprep.subr.mxu0 0.0
  %584 = vmatpush1.msra.mxu0 0.0
  %585 = vmatprep.subr.mxu0 0.0
  %586 = vmatpush1.msra.mxu0 0.0
  %587 = vmatprep.subr.mxu0 0.0
  %588 = vmatpush1.msra.mxu0 0.0
  %589 = vmatprep.mubr.f32.mxu0 0.0
  %590 = vmatmul.mubr.f32.gmra.mrb[0].mxu0 %v310
  %v591 = vpop.f32.mrb[0].mxu0
  %v592 = vadd.f32 %v521, %v591
  %v593 = vpop.f32.mrb[0].mxu0
  %v594 = vadd.f32 %v523, %v593
  %595 = vdwg.mxu0
  %v596 = vmax.f32 %v450, 0.0
  %v597 = vmax.f32 %v452, 0.0
  %v598 = vmax.f32 %v592, 0.0
  %v599 = vmax.f32 %v594, 0.0
  %v600 = vld [vmem:[%s3] sm:$0xff]
  %v601 = vld [vmem:[%s3 + $0x8] sm:$0xff]
  %v602 = vld [vmem:[%s3 + $0x10] sm:$0xff]
  %v603 = vld [vmem:[%s3 + $0x18] sm:$0xff]
  %v604 = vld [vmem:[%s3 + $0x20] sm:$0xff]
  %v605 = vld [vmem:[%s3 + $0x28] sm:$0xff]
  %v606 = vld [vmem:[%s3 + $0x30] sm:$0xff]
  %v607 = vld [vmem:[%s3 + $0x38] sm:$0xff]
  %v608 = vld [vmem:[%s3 + $0x40] sm:$0xff]
  %v609 = vld [vmem:[%s3 + $0x48] sm:$0xff]
  %v610 = vld [vmem:[%s3 + $0x50] sm:$0xff]
  %v611 = vld [vmem:[%s3 + $0x58] sm:$0xff]
  %v612 = vld [vmem:[%s3 + $0x60] sm:$0xff]
  %v613 = vld [vmem:[%s3 + $0x68] sm:$0xff]
  %v614 = vld [vmem:[%s3 + $0x70] sm:$0xff]
  %v615 = vld [vmem:[%s3 + $0x78] sm:$0xff]
  %v616 = vld [vmem:[%s1] sm:$0xff]
  %v617 = vld [vmem:[%s1 + $0x8] sm:$0xff]
  %v618 = vld [vmem:[%s1 + $0x10] sm:$0xff]
  %v619 = vld [vmem:[%s1 + $0x18] sm:$0xff]
  %vm620 = vcmask 64512
  %v622 = vsel %vm620, %v616, 0
  %v625 = vsel %vm620, %v617, 0
  %v628 = vsel %vm620, %v618, 0
  %v631 = vsel %vm620, %v619, 0
  %633 = vmatprep.subr.mxu0 %v597
  %634 = vmatpush1.msra.mxu0 %v596
  %635 = vmatprep.subr.mxu0 0.0
  %636 = vmatpush1.msra.mxu0 0.0
  %637 = vmatprep.subr.mxu0 0.0
  %638 = vmatpush1.msra.mxu0 0.0
  %639 = vmatprep.subr.mxu0 0.0
  %640 = vmatpush1.msra.mxu0 0.0
  %641 = vmatprep.subr.mxu0 0.0
  %642 = vmatpush1.msra.mxu0 0.0
  %643 = vmatprep.subr.mxu0 0.0
  %644 = vmatpush1.msra.mxu0 0.0
  %645 = vmatprep.subr.mxu0 0.0
  %646 = vmatpush1.msra.mxu0 0.0
  %647 = vmatprep.subr.mxu0 0.0
  %648 = vmatpush1.msra.mxu0 0.0
  %649 = vmatprep.subr.mxu0 0.0
  %650 = vmatpush1.msra.mxu0 0.0
  %651 = vmatprep.subr.mxu0 0.0
  %652 = vmatpush1.msra.mxu0 0.0
  %653 = vmatprep.subr.mxu0 0.0
  %654 = vmatpush1.msra.mxu0 0.0
  %655 = vmatprep.subr.mxu0 0.0
  %656 = vmatpush1.msra.mxu0 0.0
  %657 = vmatprep.subr.mxu0 0.0
  %658 = vmatpush1.msra.mxu0 0.0
  %659 = vmatprep.subr.mxu0 0.0
  %660 = vmatpush1.msra.mxu0 0.0
  %661 = vmatprep.subr.mxu0 0.0
  %662 = vmatpush1.msra.mxu0 0.0
  %663 = vmatprep.subr.mxu0 0.0
  %664 = vmatpush1.msra.mxu0 0.0
  %665 = vmatprep.subr.mxu0 0.0
  %666 = vmatpush1.msra.mxu0 0.0
  %667 = vmatprep.subr.mxu0 0.0
  %668 = vmatpush1.msra.mxu0 0.0
  %669 = vmatprep.subr.mxu0 0.0
  %670 = vmatpush1.msra.mxu0 0.0
  %671 = vmatprep.subr.mxu0 0.0
  %672 = vmatpush1.msra.mxu0 0.0
  %673 = vmatprep.subr.mxu0 0.0
  %674 = vmatpush1.msra.mxu0 0.0
  %675 = vmatprep.subr.mxu0 0.0
  %676 = vmatpush1.msra.mxu0 0.0
  %677 = vmatprep.subr.mxu0 0.0
  %678 = vmatpush1.msra.mxu0 0.0
  %679 = vmatprep.subr.mxu0 0.0
  %680 = vmatpush1.msra.mxu0 0.0
  %681 = vmatprep.subr.mxu0 0.0
  %682 = vmatpush1.msra.mxu0 0.0
  %683 = vmatprep.subr.mxu0 0.0
  %684 = vmatpush1.msra.mxu0 0.0
  %685 = vmatprep.subr.mxu0 0.0
  %686 = vmatpush1.msra.mxu0 0.0
  %687 = vmatprep.subr.mxu0 0.0
  %688 = vmatpush1.msra.mxu0 0.0
  %689 = vmatprep.subr.mxu0 0.0
  %690 = vmatpush1.msra.mxu0 0.0
  %691 = vmatprep.subr.mxu0 0.0
  %692 = vmatpush1.msra.mxu0 0.0
  %693 = vmatprep.subr.mxu0 0.0
  %694 = vmatpush1.msra.mxu0 0.0
  %695 = vmatprep.subr.mxu0 0.0
  %696 = vmatpush1.msra.mxu0 0.0
  %697 = vmatprep.mubr.f32.mxu0 0.0
  %698 = vmatmul.mubr.f32.gmra.mrb[0].mxu0 %v622
  %v699 = vpop.f32.mrb[0].mxu0
  %v700 = vadd.f32 0.0, %v699
  %v701 = vpop.f32.mrb[0].mxu0
  %v702 = vadd.f32 0.0, %v701
  %703 = vmatprep.mubr.f32.mxu0 0.0
  %704 = vmatmul.mubr.f32.gmra.mrb[0].mxu0 %v625
  %v705 = vpop.f32.mrb[0].mxu0
  %v706 = vadd.f32 0.0, %v705
  %v707 = vpop.f32.mrb[0].mxu0
  %v708 = vadd.f32 0.0, %v707
  %709 = vmatprep.mubr.f32.mxu0 0.0
  %710 = vmatmul.mubr.f32.gmra.mrb[0].mxu0 %v628
  %v711 = vpop.f32.mrb[0].mxu0
  %v712 = vadd.f32 0.0, %v711
  %v713 = vpop.f32.mrb[0].mxu0
  %v714 = vadd.f32 0.0, %v713
  %715 = vmatprep.mubr.f32.mxu0 0.0
  %716 = vmatmul.mubr.f32.gmra.mrb[0].mxu0 %v631
  %v717 = vpop.f32.mrb[0].mxu0
  %v718 = vadd.f32 0.0, %v717
  %v719 = vpop.f32.mrb[0].mxu0
  %v720 = vadd.f32 0.0, %v719
  %721 = vdwg.mxu0
  %722 = vmatprep.subr.mxu0 %v599
  %723 = vmatpush1.msra.mxu0 %v598
  %724 = vmatprep.subr.mxu0 0.0
  %725 = vmatpush1.msra.mxu0 0.0
  %726 = vmatprep.subr.mxu0 0.0
  %727 = vmatpush1.msra.mxu0 0.0
  %728 = vmatprep.subr.mxu0 0.0
  %729 = vmatpush1.msra.mxu0 0.0
  %730 = vmatprep.subr.mxu0 0.0
  %731 = vmatpush1.msra.mxu0 0.0
  %732 = vmatprep.subr.mxu0 0.0
  %733 = vmatpush1.msra.mxu0 0.0
  %734 = vmatprep.subr.mxu0 0.0
  %735 = vmatpush1.msra.mxu0 0.0
  %736 = vmatprep.subr.mxu0 0.0
  %737 = vmatpush1.msra.mxu0 0.0
  %738 = vmatprep.subr.mxu0 0.0
  %739 = vmatpush1.msra.mxu0 0.0
  %740 = vmatprep.subr.mxu0 0.0
  %741 = vmatpush1.msra.mxu0 0.0
  %742 = vmatprep.subr.mxu0 0.0
  %743 = vmatpush1.msra.mxu0 0.0
  %744 = vmatprep.subr.mxu0 0.0
  %745 = vmatpush1.msra.mxu0 0.0
  %746 = vmatprep.subr.mxu0 0.0
  %747 = vmatpush1.msra.mxu0 0.0
  %748 = vmatprep.subr.mxu0 0.0
  %749 = vmatpush1.msra.mxu0 0.0
  %750 = vmatprep.subr.mxu0 0.0
  %751 = vmatpush1.msra.mxu0 0.0
  %752 = vmatprep.subr.mxu0 0.0
  %753 = vmatpush1.msra.mxu0 0.0
  %754 = vmatprep.subr.mxu0 0.0
  %755 = vmatpush1.msra.mxu0 0.0
  %756 = vmatprep.subr.mxu0 0.0
  %757 = vmatpush1.msra.mxu0 0.0
  %758 = vmatprep.subr.mxu0 0.0
  %759 = vmatpush1.msra.mxu0 0.0
  %760 = vmatprep.subr.mxu0 0.0
  %761 = vmatpush1.msra.mxu0 0.0
  %762 = vmatprep.subr.mxu0 0.0
  %763 = vmatpush1.msra.mxu0 0.0
  %764 = vmatprep.subr.mxu0 0.0
  %765 = vmatpush1.msra.mxu0 0.0
  %766 = vmatprep.subr.mxu0 0.0
  %767 = vmatpush1.msra.mxu0 0.0
  %768 = vmatprep.subr.mxu0 0.0
  %769 = vmatpush1.msra.mxu0 0.0
  %770 = vmatprep.subr.mxu0 0.0
  %771 = vmatpush1.msra.mxu0 0.0
  %772 = vmatprep.subr.mxu0 0.0
  %773 = vmatpush1.msra.mxu0 0.0
  %774 = vmatprep.subr.mxu0 0.0
  %775 = vmatpush1.msra.mxu0 0.0
  %776 = vmatprep.subr.mxu0 0.0
  %777 = vmatpush1.msra.mxu0 0.0
  %778 = vmatprep.subr.mxu0 0.0
  %779 = vmatpush1.msra.mxu0 0.0
  %780 = vmatprep.subr.mxu0 0.0
  %781 = vmatpush1.msra.mxu0 0.0
  %782 = vmatprep.subr.mxu0 0.0
  %783 = vmatpush1.msra.mxu0 0.0
  %784 = vmatprep.subr.mxu0 0.0
  %785 = vmatpush1.msra.mxu0 0.0
  %786 = vmatprep.mubr.f32.mxu0 0.0
  %787 = vmatmul.mubr.f32.gmra.mrb[0].mxu0 %v622
  %v788 = vpop.f32.mrb[0].mxu0
  %v789 = vadd.f32 0.0, %v788
  %v790 = vpop.f32.mrb[0].mxu0
  %v791 = vadd.f32 0.0, %v790
  %792 = vmatprep.mubr.f32.mxu0 0.0
  %793 = vmatmul.mubr.f32.gmra.mrb[0].mxu0 %v625
  %v794 = vpop.f32.mrb[0].mxu0
  %v795 = vadd.f32 0.0, %v794
  %v796 = vpop.f32.mrb[0].mxu0
  %v797 = vadd.f32 0.0, %v796
  %798 = vmatprep.mubr.f32.mxu0 0.0
  %799 = vmatmul.mubr.f32.gmra.mrb[0].mxu0 %v628
  %v800 = vpop.f32.mrb[0].mxu0
  %v801 = vadd.f32 0.0, %v800
  %v802 = vpop.f32.mrb[0].mxu0
  %v803 = vadd.f32 0.0, %v802
  %804 = vmatprep.mubr.f32.mxu0 0.0
  %805 = vmatmul.mubr.f32.gmra.mrb[0].mxu0 %v631
  %v806 = vpop.f32.mrb[0].mxu0
  %v807 = vadd.f32 0.0, %v806
  %v808 = vpop.f32.mrb[0].mxu0
  %v809 = vadd.f32 0.0, %v808
  %810 = vdwg.mxu0
  %v811 = vadd.f32 %v600, %v700
  %v812 = vadd.f32 %v601, %v702
  %v813 = vadd.f32 %v602, %v789
  %v814 = vadd.f32 %v603, %v791
  %v815 = vadd.f32 %v604, %v706
  %v816 = vadd.f32 %v605, %v708
  %v817 = vadd.f32 %v606, %v795
  %v818 = vadd.f32 %v607, %v797
  %v819 = vadd.f32 %v608, %v712
  %v820 = vadd.f32 %v609, %v714
  %v821 = vadd.f32 %v610, %v801
  %v822 = vadd.f32 %v611, %v803
  %v823 = vadd.f32 %v612, %v718
  %v824 = vadd.f32 %v613, %v720
  %v825 = vadd.f32 %v614, %v807
  %v826 = vadd.f32 %v615, %v809
  %v827 = vmax.f32 %v811, 0.0
  %v828 = vmax.f32 %v812, 0.0
  %v829 = vmax.f32 %v813, 0.0
  %v830 = vmax.f32 %v814, 0.0
  %v831 = vmax.f32 %v815, 0.0
  %v832 = vmax.f32 %v816, 0.0
  %v833 = vmax.f32 %v817, 0.0
  %v834 = vmax.f32 %v818, 0.0
  %v835 = vmax.f32 %v819, 0.0
  %v836 = vmax.f32 %v820, 0.0
  %v837 = vmax.f32 %v821, 0.0
  %v838 = vmax.f32 %v822, 0.0
  %v839 = vmax.f32 %v823, 0.0
  %v840 = vmax.f32 %v824, 0.0
  %v841 = vmax.f32 %v825, 0.0
  %v842 = vmax.f32 %v826, 0.0
  %843 = vst [vmem:[%s4] sm:$0xff] %v827
  %844 = vst [vmem:[%s4 + $0x8] sm:$0xff] %v828
  %845 = vst [vmem:[%s4 + $0x10] sm:$0xff] %v829
  %846 = vst [vmem:[%s4 + $0x18] sm:$0xff] %v830
  %847 = vst [vmem:[%s4 + $0x20] sm:$0xff] %v831
  %848 = vst [vmem:[%s4 + $0x28] sm:$0xff] %v832
  %849 = vst [vmem:[%s4 + $0x30] sm:$0xff] %v833
  %850 = vst [vmem:[%s4 + $0x38] sm:$0xff] %v834
  %851 = vst [vmem:[%s4 + $0x40] sm:$0xff] %v835
  %852 = vst [vmem:[%s4 + $0x48] sm:$0xff] %v836
  %853 = vst [vmem:[%s4 + $0x50] sm:$0xff] %v837
  %854 = vst [vmem:[%s4 + $0x58] sm:$0xff] %v838
  %855 = vst [vmem:[%s4 + $0x60] sm:$0xff] %v839
  %856 = vst [vmem:[%s4 + $0x68] sm:$0xff] %v840
  %857 = vst [vmem:[%s4 + $0x70] sm:$0xff] %v841
  %858 = vst [vmem:[%s4 + $0x78] sm:$0xff] %v842
  // Predicated region
  $region18: #{decoder_forward.7} parent=0 // pred_check
    _
  $region19: #{decoder_forward.7} parent=0 // pred_check_branch
    %860 = sbr.rel (0) target = $region21
  $region20: #{decoder_forward.7} parent=0 // pred_region
    _
  $region21: #{decoder_forward.7} parent=0 // pred_fallthru
    _
  // Predicated region
  $region22: #{decoder_forward.7} parent=0 // pred_check
    _
  $region23: #{decoder_forward.7} parent=0 // pred_check_branch
    %862 = sbr.rel (0) target = $region25
  $region24: #{decoder_forward.7} parent=0 // pred_region
    _
  $region25: #{decoder_forward.7} parent=0 // pred_fallthru
    _

// kernel: tile.13
$region0: #{tile.13}
  #allocation0 [shape = 's32[1]{0}', space=sflag, size = 0x4, scoped, tag = 'scoped memory for tile.13']
  %s0 = inlined_call_operand.vmem [shape: f32[16], index: 0, kind: input, shape index: {}]
  %s1 = inlined_call_operand.vmem [shape: f32[4,16], index: 1, kind: output, shape index: {}]
  // Predicated region
  $region2: #{tile.13} parent=0 // pred_check
    _
  $region3: #{tile.13} parent=0 // pred_check_branch
    %3 = sbr.rel (0) target = $region5
  $region4: #{tile.13} parent=0 // pred_region
    _
  $region5: #{tile.13} parent=0 // pred_fallthru
    _
  %v4 = vld [vmem:[%s0] ss:$0 sm:$0xff]
  %5 = vst [vmem:[%s1] sm:$0xf] %v4

// kernel: tile.0
$region0: #{tile.0}
  %s0 = inlined_call_operand.vmem [shape: f32[4,16], index: 0, kind: input, shape index: {}]
  %s1 = inlined_call_operand.vmem [shape: f32[64,1], index: 1, kind: output, shape index: {}]
  $region1: #{tile.0} parent=0
    #allocation0 [shape = 'u8[4096]{0}', space=vmem, size = 0x1000, scoped, tag = 'scoped mem for input reshape']
    %s3 = sshllo.u32 0, 4
    %v4 = vld [vmem:[%s0] sm:%s3]
    %5 = vst [vmem:[#allocation0] sm:%s3] %v4
    %v6 = vld [vmem:[#allocation0] sm:$0xf]
    %vm7 = vcmask 7168
    %8 = vst.msk [vmem:[%s1] ss:$16 sm:$0x3] %vm7, %v6
    %9 = vst.msk [vmem:[%s1] ss:$16 sm:$0xc] %vm7, %v6
    %v10 = vld [vmem:[#allocation0] sm:$0xf]
    %11 = vrot.lane.b32.xlu0 %v10, 127
    %v12 = vpop.permute.xlu0 %11
    %vm13 = vcmask 7168
    %s14 = scalar_lea.vmem %s1, 1
    %15 = vst.msk [vmem:[%s14] ss:$16 sm:$0x3] %vm13, %v12
    %s16 = scalar_lea.vmem %s1, 1
    %17 = vst.msk [vmem:[%s16] ss:$16 sm:$0xc] %vm13, %v12
    %v18 = vld [vmem:[#allocation0] sm:$0xf]
    %19 = vrot.lane.b32.xlu0 %v18, 126
    %v20 = vpop.permute.xlu0 %19
    %vm21 = vcmask 7168
    %s22 = scalar_lea.vmem %s1, 2
    %23 = vst.msk [vmem:[%s22] ss:$16 sm:$0x3] %vm21, %v20
    %s24 = scalar_lea.vmem %s1, 2
    %25 = vst.msk [vmem:[%s24] ss:$16 sm:$0xc] %vm21, %v20
    %v26 = vld [vmem:[#allocation0] sm:$0xf]
    %27 = vrot.lane.b32.xlu0 %v26, 125
    %v28 = vpop.permute.xlu0 %27
    %vm29 = vcmask 7168
    %s30 = scalar_lea.vmem %s1, 3
    %31 = vst.msk [vmem:[%s30] ss:$16 sm:$0x3] %vm29, %v28
    %s32 = scalar_lea.vmem %s1, 3
    %33 = vst.msk [vmem:[%s32] ss:$16 sm:$0xc] %vm29, %v28
    %v34 = vld [vmem:[#allocation0] sm:$0xf]
    %35 = vrot.lane.b32.xlu0 %v34, 124
    %v36 = vpop.permute.xlu0 %35
    %vm37 = vcmask 7168
    %s38 = scalar_lea.vmem %s1, 4
    %39 = vst.msk [vmem:[%s38] ss:$16 sm:$0x3] %vm37, %v36
    %s40 = scalar_lea.vmem %s1, 4
    %41 = vst.msk [vmem:[%s40] ss:$16 sm:$0xc] %vm37, %v36
    %v42 = vld [vmem:[#allocation0] sm:$0xf]
    %43 = vrot.lane.b32.xlu0 %v42, 123
    %v44 = vpop.permute.xlu0 %43
    %vm45 = vcmask 7168
    %s46 = scalar_lea.vmem %s1, 5
    %47 = vst.msk [vmem:[%s46] ss:$16 sm:$0x3] %vm45, %v44
    %s48 = scalar_lea.vmem %s1, 5
    %49 = vst.msk [vmem:[%s48] ss:$16 sm:$0xc] %vm45, %v44
    %v50 = vld [vmem:[#allocation0] sm:$0xf]
    %51 = vrot.lane.b32.xlu0 %v50, 122
    %v52 = vpop.permute.xlu0 %51
    %vm53 = vcmask 7168
    %s54 = scalar_lea.vmem %s1, 6
    %55 = vst.msk [vmem:[%s54] ss:$16 sm:$0x3] %vm53, %v52
    %s56 = scalar_lea.vmem %s1, 6
    %57 = vst.msk [vmem:[%s56] ss:$16 sm:$0xc] %vm53, %v52
    %v58 = vld [vmem:[#allocation0] sm:$0xf]
    %59 = vrot.lane.b32.xlu0 %v58, 121
    %v60 = vpop.permute.xlu0 %59
    %vm61 = vcmask 7168
    %s62 = scalar_lea.vmem %s1, 7
    %63 = vst.msk [vmem:[%s62] ss:$16 sm:$0x3] %vm61, %v60
    %s64 = scalar_lea.vmem %s1, 7
    %65 = vst.msk [vmem:[%s64] ss:$16 sm:$0xc] %vm61, %v60
    %v66 = vld [vmem:[#allocation0] sm:$0xf]
    %67 = vrot.lane.b32.xlu0 %v66, 120
    %v68 = vpop.permute.xlu0 %67
    %vm69 = vcmask 7168
    %s70 = scalar_lea.vmem %s1, 8
    %71 = vst.msk [vmem:[%s70] ss:$16 sm:$0x3] %vm69, %v68
    %s72 = scalar_lea.vmem %s1, 8
    %73 = vst.msk [vmem:[%s72] ss:$16 sm:$0xc] %vm69, %v68
    %v74 = vld [vmem:[#allocation0] sm:$0xf]
    %75 = vrot.lane.b32.xlu0 %v74, 119
    %v76 = vpop.permute.xlu0 %75
    %vm77 = vcmask 7168
    %s78 = scalar_lea.vmem %s1, 9
    %79 = vst.msk [vmem:[%s78] ss:$16 sm:$0x3] %vm77, %v76
    %s80 = scalar_lea.vmem %s1, 9
    %81 = vst.msk [vmem:[%s80] ss:$16 sm:$0xc] %vm77, %v76
    %v82 = vld [vmem:[#allocation0] sm:$0xf]
    %83 = vrot.lane.b32.xlu0 %v82, 118
    %v84 = vpop.permute.xlu0 %83
    %vm85 = vcmask 7168
    %s86 = scalar_lea.vmem %s1, 10
    %87 = vst.msk [vmem:[%s86] ss:$16 sm:$0x3] %vm85, %v84
    %s88 = scalar_lea.vmem %s1, 10
    %89 = vst.msk [vmem:[%s88] ss:$16 sm:$0xc] %vm85, %v84
    %v90 = vld [vmem:[#allocation0] sm:$0xf]
    %91 = vrot.lane.b32.xlu0 %v90, 117
    %v92 = vpop.permute.xlu0 %91
    %vm93 = vcmask 7168
    %s94 = scalar_lea.vmem %s1, 11
    %95 = vst.msk [vmem:[%s94] ss:$16 sm:$0x3] %vm93, %v92
    %s96 = scalar_lea.vmem %s1, 11
    %97 = vst.msk [vmem:[%s96] ss:$16 sm:$0xc] %vm93, %v92
    %v98 = vld [vmem:[#allocation0] sm:$0xf]
    %99 = vrot.lane.b32.xlu0 %v98, 116
    %v100 = vpop.permute.xlu0 %99
    %vm101 = vcmask 7168
    %s102 = scalar_lea.vmem %s1, 12
    %103 = vst.msk [vmem:[%s102] ss:$16 sm:$0x3] %vm101, %v100
    %s104 = scalar_lea.vmem %s1, 12
    %105 = vst.msk [vmem:[%s104] ss:$16 sm:$0xc] %vm101, %v100
    %v106 = vld [vmem:[#allocation0] sm:$0xf]
    %107 = vrot.lane.b32.xlu0 %v106, 115
    %v108 = vpop.permute.xlu0 %107
    %vm109 = vcmask 7168
    %s110 = scalar_lea.vmem %s1, 13
    %111 = vst.msk [vmem:[%s110] ss:$16 sm:$0x3] %vm109, %v108
    %s112 = scalar_lea.vmem %s1, 13
    %113 = vst.msk [vmem:[%s112] ss:$16 sm:$0xc] %vm109, %v108
    %v114 = vld [vmem:[#allocation0] sm:$0xf]
    %115 = vrot.lane.b32.xlu0 %v114, 114
    %v116 = vpop.permute.xlu0 %115
    %vm117 = vcmask 7168
    %s118 = scalar_lea.vmem %s1, 14
    %119 = vst.msk [vmem:[%s118] ss:$16 sm:$0x3] %vm117, %v116
    %s120 = scalar_lea.vmem %s1, 14
    %121 = vst.msk [vmem:[%s120] ss:$16 sm:$0xc] %vm117, %v116
    %v122 = vld [vmem:[#allocation0] sm:$0xf]
    %123 = vrot.lane.b32.xlu0 %v122, 113
    %v124 = vpop.permute.xlu0 %123
    %vm125 = vcmask 7168
    %s126 = scalar_lea.vmem %s1, 15
    %127 = vst.msk [vmem:[%s126] ss:$16 sm:$0x3] %vm125, %v124
    %s128 = scalar_lea.vmem %s1, 15
    %129 = vst.msk [vmem:[%s128] ss:$16 sm:$0xc] %vm125, %v124

// kernel: decoder_forward.8
$region0: #{decoder_forward.8}
  #allocation0 [shape = 'u32[]', space=smem, size = 0x4, offset = 0x4, fixed_abs, tag = 'smem constant byte address 0x4 - core index']
  #allocation1 [shape = 'u32[144,128]{1,0:T(1,128)}', space=vmem, size = 0x12000, scoped, tag = 'internal scratch']
  %s0 = inlined_call_operand.vmem [shape: f32[64,288], index: 0, kind: input, shape index: {}]
  %s1 = inlined_call_operand.vmem [shape: f32[288,512], index: 1, kind: input, shape index: {}]
  %s2 = inlined_call_operand.vmem [shape: f32[64,1], index: 2, kind: input, shape index: {}]
  %s3 = inlined_call_operand.vmem [shape: f32[64,512], index: 3, kind: output, shape index: {}]
  %s4 = sld [smem:[#allocation0]]
  $region22: #{decoder_forward.8} parent=0
    _
  %s6 = ssub.s32 1, %s4
  %s7 = scalar_select 0, %s6, %s4
  // Predicated region
  $region2: #{decoder_forward.8} parent=0 // pred_check
    _
  $region3: #{decoder_forward.8} parent=0 // pred_check_branch
    %9 = sbr.rel (0) target = $region5
  $region4: #{decoder_forward.8} parent=0 // pred_region
    _
  $region5: #{decoder_forward.8} parent=0 // pred_fallthru
    _
  // Predicated region
  $region6: #{decoder_forward.8} parent=0 // pred_check
    _
  $region7: #{decoder_forward.8} parent=0 // pred_check_branch
    %11 = sbr.rel (0) target = $region9
  $region8: #{decoder_forward.8} parent=0 // pred_region
    _
  $region9: #{decoder_forward.8} parent=0 // pred_fallthru
    _
  // Predicated region
  $region10: #{decoder_forward.8} parent=0 // pred_check
    _
  $region11: #{decoder_forward.8} parent=0 // pred_check_branch
    %13 = sbr.rel (0) target = $region13
  $region12: #{decoder_forward.8} parent=0 // pred_region
    _
  $region13: #{decoder_forward.8} parent=0 // pred_fallthru
    _
  %v14 = vld [vmem:[%s1] sm:$0xff]
  %v15 = vld [vmem:[%s1 + $0x8] sm:$0xff]
  %v16 = vld [vmem:[%s1 + $0x10] sm:$0xff]
  %v17 = vld [vmem:[%s1 + $0x18] sm:$0xff]
  %v18 = vld [vmem:[%s1 + $0x20] sm:$0xff]
  %v19 = vld [vmem:[%s1 + $0x28] sm:$0xff]
  %v20 = vld [vmem:[%s1 + $0x30] sm:$0xff]
  %v21 = vld [vmem:[%s1 + $0x38] sm:$0xff]
  %v22 = vld [vmem:[%s1 + $0x40] sm:$0xff]
  %v23 = vld [vmem:[%s1 + $0x48] sm:$0xff]
  %v24 = vld [vmem:[%s1 + $0x50] sm:$0xff]
  %v25 = vld [vmem:[%s1 + $0x58] sm:$0xff]
  %v26 = vld [vmem:[%s1 + $0x60] sm:$0xff]
  %v27 = vld [vmem:[%s1 + $0x68] sm:$0xff]
  %v28 = vld [vmem:[%s1 + $0x70] sm:$0xff]
  %v29 = vld [vmem:[%s1 + $0x78] sm:$0xff]
  %v30 = vld [vmem:[%s1 + $0x80] sm:$0xff]
  %v31 = vld [vmem:[%s1 + $0x88] sm:$0xff]
  %v32 = vld [vmem:[%s1 + $0x90] sm:$0xff]
  %v33 = vld [vmem:[%s1 + $0x98] sm:$0xff]
  %v34 = vld [vmem:[%s1 + $0xa0] sm:$0xff]
  %v35 = vld [vmem:[%s1 + $0xa8] sm:$0xff]
  %v36 = vld [vmem:[%s1 + $0xb0] sm:$0xff]
  %v37 = vld [vmem:[%s1 + $0xb8] sm:$0xff]
  %v38 = vld [vmem:[%s1 + $0xc0] sm:$0xff]
  %v39 = vld [vmem:[%s1 + $0xc8] sm:$0xff]
  %v40 = vld [vmem:[%s1 + $0xd0] sm:$0xff]
  %v41 = vld [vmem:[%s1 + $0xd8] sm:$0xff]
  %v42 = vld [vmem:[%s1 + $0xe0] sm:$0xff]
  %v43 = vld [vmem:[%s1 + $0xe8] sm:$0xff]
  %v44 = vld [vmem:[%s1 + $0xf0] sm:$0xff]
  %v45 = vld [vmem:[%s1 + $0xf8] sm:$0xff]
  %v46 = vld [vmem:[%s1 + $0x100] sm:$0xff]
  %v47 = vld [vmem:[%s1 + $0x108] sm:$0xff]
  %v48 = vld [vmem:[%s1 + $0x110] sm:$0xff]
  %v49 = vld [vmem:[%s1 + $0x118] sm:$0xff]
  %v50 = vld [vmem:[%s1 + $0x120] sm:$0xff]
  %v51 = vld [vmem:[%s1 + $0x128] sm:$0xff]
  %v52 = vld [vmem:[%s1 + $0x130] sm:$0xff]
  %v53 = vld [vmem:[%s1 + $0x138] sm:$0xff]
  %v54 = vld [vmem:[%s1 + $0x140] sm:$0xff]
  %v55 = vld [vmem:[%s1 + $0x148] sm:$0xff]
  %v56 = vld [vmem:[%s1 + $0x150] sm:$0xff]
  %v57 = vld [vmem:[%s1 + $0x158] sm:$0xff]
  %v58 = vld [vmem:[%s1 + $0x160] sm:$0xff]
  %v59 = vld [vmem:[%s1 + $0x168] sm:$0xff]
  %v60 = vld [vmem:[%s1 + $0x170] sm:$0xff]
  %v61 = vld [vmem:[%s1 + $0x178] sm:$0xff]
  %v62 = vld [vmem:[%s1 + $0x180] sm:$0xff]
  %v63 = vld [vmem:[%s1 + $0x188] sm:$0xff]
  %v64 = vld [vmem:[%s1 + $0x190] sm:$0xff]
  %v65 = vld [vmem:[%s1 + $0x198] sm:$0xff]
  %v66 = vld [vmem:[%s1 + $0x1a0] sm:$0xff]
  %v67 = vld [vmem:[%s1 + $0x1a8] sm:$0xff]
  %v68 = vld [vmem:[%s1 + $0x1b0] sm:$0xff]
  %v69 = vld [vmem:[%s1 + $0x1b8] sm:$0xff]
  %v70 = vld [vmem:[%s1 + $0x1c0] sm:$0xff]
  %v71 = vld [vmem:[%s1 + $0x1c8] sm:$0xff]
  %v72 = vld [vmem:[%s1 + $0x1d0] sm:$0xff]
  %v73 = vld [vmem:[%s1 + $0x1d8] sm:$0xff]
  %v74 = vld [vmem:[%s1 + $0x1e0] sm:$0xff]
  %v75 = vld [vmem:[%s1 + $0x1e8] sm:$0xff]
  %v76 = vld [vmem:[%s1 + $0x1f0] sm:$0xff]
  %v77 = vld [vmem:[%s1 + $0x1f8] sm:$0xff]
  %v78 = vld [vmem:[%s1 + $0x200] sm:$0xff]
  %v79 = vld [vmem:[%s1 + $0x208] sm:$0xff]
  %v80 = vld [vmem:[%s1 + $0x210] sm:$0xff]
  %v81 = vld [vmem:[%s1 + $0x218] sm:$0xff]
  %v82 = vld [vmem:[%s1 + $0x220] sm:$0xff]
  %v83 = vld [vmem:[%s1 + $0x228] sm:$0xff]
  %v84 = vld [vmem:[%s1 + $0x230] sm:$0xff]
  %v85 = vld [vmem:[%s1 + $0x238] sm:$0xff]
  %v86 = vld [vmem:[%s1 + $0x240] sm:$0xff]
  %v87 = vld [vmem:[%s1 + $0x248] sm:$0xff]
  %v88 = vld [vmem:[%s1 + $0x250] sm:$0xff]
  %v89 = vld [vmem:[%s1 + $0x258] sm:$0xff]
  %v90 = vld [vmem:[%s1 + $0x260] sm:$0xff]
  %v91 = vld [vmem:[%s1 + $0x268] sm:$0xff]
  %v92 = vld [vmem:[%s1 + $0x270] sm:$0xff]
  %v93 = vld [vmem:[%s1 + $0x278] sm:$0xff]
  %v94 = vld [vmem:[%s1 + $0x280] sm:$0xff]
  %v95 = vld [vmem:[%s1 + $0x288] sm:$0xff]
  %v96 = vld [vmem:[%s1 + $0x290] sm:$0xff]
  %v97 = vld [vmem:[%s1 + $0x298] sm:$0xff]
  %v98 = vld [vmem:[%s1 + $0x2a0] sm:$0xff]
  %v99 = vld [vmem:[%s1 + $0x2a8] sm:$0xff]
  %v100 = vld [vmem:[%s1 + $0x2b0] sm:$0xff]
  %v101 = vld [vmem:[%s1 + $0x2b8] sm:$0xff]
  %v102 = vld [vmem:[%s1 + $0x2c0] sm:$0xff]
  %v103 = vld [vmem:[%s1 + $0x2c8] sm:$0xff]
  %v104 = vld [vmem:[%s1 + $0x2d0] sm:$0xff]
  %v105 = vld [vmem:[%s1 + $0x2d8] sm:$0xff]
  %v106 = vld [vmem:[%s1 + $0x2e0] sm:$0xff]
  %v107 = vld [vmem:[%s1 + $0x2e8] sm:$0xff]
  %v108 = vld [vmem:[%s1 + $0x2f0] sm:$0xff]
  %v109 = vld [vmem:[%s1 + $0x2f8] sm:$0xff]
  %v110 = vld [vmem:[%s1 + $0x300] sm:$0xff]
  %v111 = vld [vmem:[%s1 + $0x308] sm:$0xff]
  %v112 = vld [vmem:[%s1 + $0x310] sm:$0xff]
  %v113 = vld [vmem:[%s1 + $0x318] sm:$0xff]
  %v114 = vld [vmem:[%s1 + $0x320] sm:$0xff]
  %v115 = vld [vmem:[%s1 + $0x328] sm:$0xff]
  %v116 = vld [vmem:[%s1 + $0x330] sm:$0xff]
  %v117 = vld [vmem:[%s1 + $0x338] sm:$0xff]
  %v118 = vld [vmem:[%s1 + $0x340] sm:$0xff]
  %v119 = vld [vmem:[%s1 + $0x348] sm:$0xff]
  %v120 = vld [vmem:[%s1 + $0x350] sm:$0xff]
  %v121 = vld [vmem:[%s1 + $0x358] sm:$0xff]
  %v122 = vld [vmem:[%s1 + $0x360] sm:$0xff]
  %v123 = vld [vmem:[%s1 + $0x368] sm:$0xff]
  %v124 = vld [vmem:[%s1 + $0x370] sm:$0xff]
  %v125 = vld [vmem:[%s1 + $0x378] sm:$0xff]
  %v126 = vld [vmem:[%s1 + $0x380] sm:$0xff]
  %v127 = vld [vmem:[%s1 + $0x388] sm:$0xff]
  %v128 = vld [vmem:[%s1 + $0x390] sm:$0xff]
  %v129 = vld [vmem:[%s1 + $0x398] sm:$0xff]
  %v130 = vld [vmem:[%s1 + $0x3a0] sm:$0xff]
  %v131 = vld [vmem:[%s1 + $0x3a8] sm:$0xff]
  %v132 = vld [vmem:[%s1 + $0x3b0] sm:$0xff]
  %v133 = vld [vmem:[%s1 + $0x3b8] sm:$0xff]
  %v134 = vld [vmem:[%s1 + $0x3c0] sm:$0xff]
  %v135 = vld [vmem:[%s1 + $0x3c8] sm:$0xff]
  %v136 = vld [vmem:[%s1 + $0x3d0] sm:$0xff]
  %v137 = vld [vmem:[%s1 + $0x3d8] sm:$0xff]
  %v138 = vld [vmem:[%s1 + $0x3e0] sm:$0xff]
  %v139 = vld [vmem:[%s1 + $0x3e8] sm:$0xff]
  %v140 = vld [vmem:[%s1 + $0x3f0] sm:$0xff]
  %v141 = vld [vmem:[%s1 + $0x3f8] sm:$0xff]
  %v142 = vld [vmem:[%s1 + $0x400] sm:$0xff]
  %v143 = vld [vmem:[%s1 + $0x408] sm:$0xff]
  %v144 = vld [vmem:[%s1 + $0x410] sm:$0xff]
  %v145 = vld [vmem:[%s1 + $0x418] sm:$0xff]
  %v146 = vld [vmem:[%s1 + $0x420] sm:$0xff]
  %v147 = vld [vmem:[%s1 + $0x428] sm:$0xff]
  %v148 = vld [vmem:[%s1 + $0x430] sm:$0xff]
  %v149 = vld [vmem:[%s1 + $0x438] sm:$0xff]
  %v150 = vld [vmem:[%s1 + $0x440] sm:$0xff]
  %v151 = vld [vmem:[%s1 + $0x448] sm:$0xff]
  %v152 = vld [vmem:[%s1 + $0x450] sm:$0xff]
  %v153 = vld [vmem:[%s1 + $0x458] sm:$0xff]
  %v154 = vld [vmem:[%s1 + $0x460] sm:$0xff]
  %v155 = vld [vmem:[%s1 + $0x468] sm:$0xff]
  %v156 = vld [vmem:[%s1 + $0x470] sm:$0xff]
  %v157 = vld [vmem:[%s1 + $0x478] sm:$0xff]
  %v158 = vld [vmem:[%s0] sm:$0xff]
  %v159 = vld [vmem:[%s0 + $0x8] sm:$0xff]
  %v160 = vld [vmem:[%s0 + $0x10] sm:$0xff]
  %v161 = vld [vmem:[%s0 + $0x18] sm:$0xff]
  %v162 = vld [vmem:[%s0 + $0x20] sm:$0xff]
  %v163 = vld [vmem:[%s0 + $0x28] sm:$0xff]
  %v164 = vld [vmem:[%s0 + $0x30] sm:$0xff]
  %v165 = vld [vmem:[%s0 + $0x38] sm:$0xff]
  %v166 = vld [vmem:[%s0 + $0x40] sm:$0xff]
  %v167 = vld [vmem:[%s0 + $0x48] sm:$0xff]
  %v168 = vld [vmem:[%s0 + $0x50] sm:$0xff]
  %v169 = vld [vmem:[%s0 + $0x58] sm:$0xff]
  %v170 = vld [vmem:[%s0 + $0x60] sm:$0xff]
  %v171 = vld [vmem:[%s0 + $0x68] sm:$0xff]
  %v172 = vld [vmem:[%s0 + $0x70] sm:$0xff]
  %v173 = vld [vmem:[%s0 + $0x78] sm:$0xff]
  %v174 = vld [vmem:[%s0 + $0x80] sm:$0xff]
  %v175 = vld [vmem:[%s0 + $0x88] sm:$0xff]
  %v176 = vld [vmem:[%s0 + $0x90] sm:$0xff]
  %v177 = vld [vmem:[%s0 + $0x98] sm:$0xff]
  %v178 = vld [vmem:[%s0 + $0xa0] sm:$0xff]
  %v179 = vld [vmem:[%s0 + $0xa8] sm:$0xff]
  %v180 = vld [vmem:[%s0 + $0xb0] sm:$0xff]
  %v181 = vld [vmem:[%s0 + $0xb8] sm:$0xff]
  %v182 = vld [vmem:[%s2] sm:$0xff]
  %v183 = vld [vmem:[%s2 + $0x8] sm:$0xff]
  %v184 = vld [vmem:[%s2 + $0x10] sm:$0xff]
  %v185 = vld [vmem:[%s2 + $0x18] sm:$0xff]
  %v186 = vld [vmem:[%s2 + $0x20] sm:$0xff]
  %v187 = vld [vmem:[%s2 + $0x28] sm:$0xff]
  %v188 = vld [vmem:[%s2 + $0x30] sm:$0xff]
  %v189 = vld [vmem:[%s2 + $0x38] sm:$0xff]
  %191 = vset.pattern.permute.xlu0 0
  %192 = vperm.xlu0 %191, %v182
  %v193 = vpop.permute.xlu0 %192
  %196 = vset.pattern.permute.xlu0 0
  %197 = vperm.xlu0 %196, %v183
  %v198 = vpop.permute.xlu0 %197
  %201 = vset.pattern.permute.xlu0 0
  %202 = vperm.xlu0 %201, %v184
  %v203 = vpop.permute.xlu0 %202
  %206 = vset.pattern.permute.xlu0 0
  %207 = vperm.xlu0 %206, %v185
  %v208 = vpop.permute.xlu0 %207
  %211 = vset.pattern.permute.xlu0 0
  %212 = vperm.xlu0 %211, %v186
  %v213 = vpop.permute.xlu0 %212
  %216 = vset.pattern.permute.xlu0 0
  %217 = vperm.xlu0 %216, %v187
  %v218 = vpop.permute.xlu0 %217
  %221 = vset.pattern.permute.xlu0 0
  %222 = vperm.xlu0 %221, %v188
  %v223 = vpop.permute.xlu0 %222
  %226 = vset.pattern.permute.xlu0 0
  %227 = vperm.xlu0 %226, %v189
  %v228 = vpop.permute.xlu0 %227
  %vm230 = vcmask 261120
  %v232 = vsel %vm230, %v160, 0
  %v235 = vsel %vm230, %v163, 0
  %v238 = vsel %vm230, %v166, 0
  %v241 = vsel %vm230, %v169, 0
  %v244 = vsel %vm230, %v172, 0
  %v247 = vsel %vm230, %v175, 0
  %v250 = vsel %vm230, %v178, 0
  %v253 = vsel %vm230, %v181, 0
  %255 = vmatprep.subr.mxu0 %v15
  %256 = vmatpush1.msra.mxu0 %v14
  %257 = vmatprep.subr.mxu0 %v19
  %258 = vmatpush1.msra.mxu0 %v18
  %259 = vmatprep.subr.mxu0 %v23
  %260 = vmatpush1.msra.mxu0 %v22
  %261 = vmatprep.subr.mxu0 %v27
  %262 = vmatpush1.msra.mxu0 %v26
  %263 = vmatprep.subr.mxu0 %v31
  %264 = vmatpush1.msra.mxu0 %v30
  %265 = vmatprep.subr.mxu0 %v35
  %266 = vmatpush1.msra.mxu0 %v34
  %267 = vmatprep.subr.mxu0 %v39
  %268 = vmatpush1.msra.mxu0 %v38
  %269 = vmatprep.subr.mxu0 %v43
  %270 = vmatpush1.msra.mxu0 %v42
  %271 = vmatprep.subr.mxu0 %v47
  %272 = vmatpush1.msra.mxu0 %v46
  %273 = vmatprep.subr.mxu0 %v51
  %274 = vmatpush1.msra.mxu0 %v50
  %275 = vmatprep.subr.mxu0 %v55
  %276 = vmatpush1.msra.mxu0 %v54
  %277 = vmatprep.subr.mxu0 %v59
  %278 = vmatpush1.msra.mxu0 %v58
  %279 = vmatprep.subr.mxu0 %v63
  %280 = vmatpush1.msra.mxu0 %v62
  %281 = vmatprep.subr.mxu0 %v67
  %282 = vmatpush1.msra.mxu0 %v66
  %283 = vmatprep.subr.mxu0 %v71
  %284 = vmatpush1.msra.mxu0 %v70
  %285 = vmatprep.subr.mxu0 %v75
  %286 = vmatpush1.msra.mxu0 %v74
  %287 = vmatprep.subr.mxu0 %v79
  %288 = vmatpush1.msra.mxu0 %v78
  %289 = vmatprep.subr.mxu0 %v83
  %290 = vmatpush1.msra.mxu0 %v82
  %291 = vmatprep.subr.mxu0 %v87
  %292 = vmatpush1.msra.mxu0 %v86
  %293 = vmatprep.subr.mxu0 %v91
  %294 = vmatpush1.msra.mxu0 %v90
  %295 = vmatprep.subr.mxu0 %v95
  %296 = vmatpush1.msra.mxu0 %v94
  %297 = vmatprep.subr.mxu0 %v99
  %298 = vmatpush1.msra.mxu0 %v98
  %299 = vmatprep.subr.mxu0 %v103
  %300 = vmatpush1.msra.mxu0 %v102
  %301 = vmatprep.subr.mxu0 %v107
  %302 = vmatpush1.msra.mxu0 %v106
  %303 = vmatprep.subr.mxu0 %v111
  %304 = vmatpush1.msra.mxu0 %v110
  %305 = vmatprep.subr.mxu0 %v115
  %306 = vmatpush1.msra.mxu0 %v114
  %307 = vmatprep.subr.mxu0 %v119
  %308 = vmatpush1.msra.mxu0 %v118
  %309 = vmatprep.subr.mxu0 %v123
  %310 = vmatpush1.msra.mxu0 %v122
  %311 = vmatprep.subr.mxu0 %v127
  %312 = vmatpush1.msra.mxu0 %v126
  %313 = vmatprep.subr.mxu0 %v131
  %314 = vmatpush1.msra.mxu0 %v130
  %315 = vmatprep.subr.mxu0 %v135
  %316 = vmatpush1.msra.mxu0 %v134
  %317 = vmatprep.subr.mxu0 %v139
  %318 = vmatpush1.msra.mxu0 %v138
  %319 = vmatprep.mubr.f32.mxu0 %v159
  %320 = vmatmul.mubr.f32.gmra.mrb[0].mxu0 %v158
  %v321 = vpop.f32.mrb[0].mxu0
  %v322 = vadd.f32 %v193, %v321
  %v323 = vpop.f32.mrb[0].mxu0
  %v324 = vadd.f32 %v193, %v323
  %325 = vmatprep.mubr.f32.mxu0 %v162
  %326 = vmatmul.mubr.f32.gmra.mrb[0].mxu0 %v161
  %v327 = vpop.f32.mrb[0].mxu0
  %v328 = vadd.f32 %v198, %v327
  %v329 = vpop.f32.mrb[0].mxu0
  %v330 = vadd.f32 %v198, %v329
  %331 = vmatprep.mubr.f32.mxu0 %v165
  %332 = vmatmul.mubr.f32.gmra.mrb[0].mxu0 %v164
  %v333 = vpop.f32.mrb[0].mxu0
  %v334 = vadd.f32 %v203, %v333
  %v335 = vpop.f32.mrb[0].mxu0
  %v336 = vadd.f32 %v203, %v335
  %337 = vmatprep.mubr.f32.mxu0 %v168
  %338 = vmatmul.mubr.f32.gmra.mrb[0].mxu0 %v167
  %v339 = vpop.f32.mrb[0].mxu0
  %v340 = vadd.f32 %v208, %v339
  %v341 = vpop.f32.mrb[0].mxu0
  %v342 = vadd.f32 %v208, %v341
  %343 = vmatprep.mubr.f32.mxu0 %v171
  %344 = vmatmul.mubr.f32.gmra.mrb[0].mxu0 %v170
  %v345 = vpop.f32.mrb[0].mxu0
  %v346 = vadd.f32 %v213, %v345
  %v347 = vpop.f32.mrb[0].mxu0
  %v348 = vadd.f32 %v213, %v347
  %349 = vmatprep.mubr.f32.mxu0 %v174
  %350 = vmatmul.mubr.f32.gmra.mrb[0].mxu0 %v173
  %v351 = vpop.f32.mrb[0].mxu0
  %v352 = vadd.f32 %v218, %v351
  %v353 = vpop.f32.mrb[0].mxu0
  %v354 = vadd.f32 %v218, %v353
  %355 = vmatprep.mubr.f32.mxu0 %v177
  %356 = vmatmul.mubr.f32.gmra.mrb[0].mxu0 %v176
  %v357 = vpop.f32.mrb[0].mxu0
  %v358 = vadd.f32 %v223, %v357
  %v359 = vpop.f32.mrb[0].mxu0
  %v360 = vadd.f32 %v223, %v359
  %361 = vmatprep.mubr.f32.mxu0 %v180
  %362 = vmatmul.mubr.f32.gmra.mrb[0].mxu0 %v179
  %v363 = vpop.f32.mrb[0].mxu0
  %v364 = vadd.f32 %v228, %v363
  %v365 = vpop.f32.mrb[0].mxu0
  %v366 = vadd.f32 %v228, %v365
  %367 = vdwg.mxu0
  %368 = vmatprep.subr.mxu0 %v143
  %369 = vmatpush1.msra.mxu0 %v142
  %370 = vmatprep.subr.mxu0 %v147
  %371 = vmatpush1.msra.mxu0 %v146
  %372 = vmatprep.subr.mxu0 %v151
  %373 = vmatpush1.msra.mxu0 %v150
  %374 = vmatprep.subr.mxu0 %v155
  %375 = vmatpush1.msra.mxu0 %v154
  %376 = vmatprep.subr.mxu0 0.0
  %377 = vmatpush1.msra.mxu0 0.0
  %378 = vmatprep.subr.mxu0 0.0
  %379 = vmatpush1.msra.mxu0 0.0
  %380 = vmatprep.subr.mxu0 0.0
  %381 = vmatpush1.msra.mxu0 0.0
  %382 = vmatprep.subr.mxu0 0.0
  %383 = vmatpush1.msra.mxu0 0.0
  %384 = vmatprep.subr.mxu0 0.0
  %385 = vmatpush1.msra.mxu0 0.0
  %386 = vmatprep.subr.mxu0 0.0
  %387 = vmatpush1.msra.mxu0 0.0
  %388 = vmatprep.subr.mxu0 0.0
  %389 = vmatpush1.msra.mxu0 0.0
  %390 = vmatprep.subr.mxu0 0.0
  %391 = vmatpush1.msra.mxu0 0.0
  %392 = vmatprep.subr.mxu0 0.0
  %393 = vmatpush1.msra.mxu0 0.0
  %394 = vmatprep.subr.mxu0 0.0
  %395 = vmatpush1.msra.mxu0 0.0
  %396 = vmatprep.subr.mxu0 0.0
  %397 = vmatpush1.msra.mxu0 0.0
  %398 = vmatprep.subr.mxu0 0.0
  %399 = vmatpush1.msra.mxu0 0.0
  %400 = vmatprep.subr.mxu0 0.0
  %401 = vmatpush1.msra.mxu0 0.0
  %402 = vmatprep.subr.mxu0 0.0
  %403 = vmatpush1.msra.mxu0 0.0
  %404 = vmatprep.subr.mxu0 0.0
  %405 = vmatpush1.msra.mxu0 0.0
  %406 = vmatprep.subr.mxu0 0.0
  %407 = vmatpush1.msra.mxu0 0.0
  %408 = vmatprep.subr.mxu0 0.0
  %409 = vmatpush1.msra.mxu0 0.0
  %410 = vmatprep.subr.mxu0 0.0
  %411 = vmatpush1.msra.mxu0 0.0
  %412 = vmatprep.subr.mxu0 0.0
  %413 = vmatpush1.msra.mxu0 0.0
  %414 = vmatprep.subr.mxu0 0.0
  %415 = vmatpush1.msra.mxu0 0.0
  %416 = vmatprep.subr.mxu0 0.0
  %417 = vmatpush1.msra.mxu0 0.0
  %418 = vmatprep.subr.mxu0 0.0
  %419 = vmatpush1.msra.mxu0 0.0
  %420 = vmatprep.subr.mxu0 0.0
  %421 = vmatpush1.msra.mxu0 0.0
  %422 = vmatprep.subr.mxu0 0.0
  %423 = vmatpush1.msra.mxu0 0.0
  %424 = vmatprep.subr.mxu0 0.0
  %425 = vmatpush1.msra.mxu0 0.0
  %426 = vmatprep.subr.mxu0 0.0
  %427 = vmatpush1.msra.mxu0 0.0
  %428 = vmatprep.subr.mxu0 0.0
  %429 = vmatpush1.msra.mxu0 0.0
  %430 = vmatprep.subr.mxu0 0.0
  %431 = vmatpush1.msra.mxu0 0.0
  %432 = vmatprep.mubr.f32.mxu0 0.0
  %433 = vmatmul.mubr.f32.gmra.mrb[0].mxu0 %v232
  %v434 = vpop.f32.mrb[0].mxu0
  %v435 = vadd.f32 %v322, %v434
  %v436 = vpop.f32.mrb[0].mxu0
  %v437 = vadd.f32 %v324, %v436
  %438 = vmatprep.mubr.f32.mxu0 0.0
  %439 = vmatmul.mubr.f32.gmra.mrb[0].mxu0 %v235
  %v440 = vpop.f32.mrb[0].mxu0
  %v441 = vadd.f32 %v328, %v440
  %v442 = vpop.f32.mrb[0].mxu0
  %v443 = vadd.f32 %v330, %v442
  %444 = vmatprep.mubr.f32.mxu0 0.0
  %445 = vmatmul.mubr.f32.gmra.mrb[0].mxu0 %v238
  %v446 = vpop.f32.mrb[0].mxu0
  %v447 = vadd.f32 %v334, %v446
  %v448 = vpop.f32.mrb[0].mxu0
  %v449 = vadd.f32 %v336, %v448
  %450 = vmatprep.mubr.f32.mxu0 0.0
  %451 = vmatmul.mubr.f32.gmra.mrb[0].mxu0 %v241
  %v452 = vpop.f32.mrb[0].mxu0
  %v453 = vadd.f32 %v340, %v452
  %v454 = vpop.f32.mrb[0].mxu0
  %v455 = vadd.f32 %v342, %v454
  %456 = vmatprep.mubr.f32.mxu0 0.0
  %457 = vmatmul.mubr.f32.gmra.mrb[0].mxu0 %v244
  %v458 = vpop.f32.mrb[0].mxu0
  %v459 = vadd.f32 %v346, %v458
  %v460 = vpop.f32.mrb[0].mxu0
  %v461 = vadd.f32 %v348, %v460
  %462 = vmatprep.mubr.f32.mxu0 0.0
  %463 = vmatmul.mubr.f32.gmra.mrb[0].mxu0 %v247
  %v464 = vpop.f32.mrb[0].mxu0
  %v465 = vadd.f32 %v352, %v464
  %v466 = vpop.f32.mrb[0].mxu0
  %v467 = vadd.f32 %v354, %v466
  %468 = vmatprep.mubr.f32.mxu0 0.0
  %469 = vmatmul.mubr.f32.gmra.mrb[0].mxu0 %v250
  %v470 = vpop.f32.mrb[0].mxu0
  %v471 = vadd.f32 %v358, %v470
  %v472 = vpop.f32.mrb[0].mxu0
  %v473 = vadd.f32 %v360, %v472
  %474 = vmatprep.mubr.f32.mxu0 0.0
  %475 = vmatmul.mubr.f32.gmra.mrb[0].mxu0 %v253
  %v476 = vpop.f32.mrb[0].mxu0
  %v477 = vadd.f32 %v364, %v476
  %v478 = vpop.f32.mrb[0].mxu0
  %v479 = vadd.f32 %v366, %v478
  %480 = vdwg.mxu0
  %481 = vmatprep.subr.mxu0 %v17
  %482 = vmatpush1.msra.mxu0 %v16
  %483 = vmatprep.subr.mxu0 %v21
  %484 = vmatpush1.msra.mxu0 %v20
  %485 = vmatprep.subr.mxu0 %v25
  %486 = vmatpush1.msra.mxu0 %v24
  %487 = vmatprep.subr.mxu0 %v29
  %488 = vmatpush1.msra.mxu0 %v28
  %489 = vmatprep.subr.mxu0 %v33
  %490 = vmatpush1.msra.mxu0 %v32
  %491 = vmatprep.subr.mxu0 %v37
  %492 = vmatpush1.msra.mxu0 %v36
  %493 = vmatprep.subr.mxu0 %v41
  %494 = vmatpush1.msra.mxu0 %v40
  %495 = vmatprep.subr.mxu0 %v45
  %496 = vmatpush1.msra.mxu0 %v44
  %497 = vmatprep.subr.mxu0 %v49
  %498 = vmatpush1.msra.mxu0 %v48
  %499 = vmatprep.subr.mxu0 %v53
  %500 = vmatpush1.msra.mxu0 %v52
  %501 = vmatprep.subr.mxu0 %v57
  %502 = vmatpush1.msra.mxu0 %v56
  %503 = vmatprep.subr.mxu0 %v61
  %504 = vmatpush1.msra.mxu0 %v60
  %505 = vmatprep.subr.mxu0 %v65
  %506 = vmatpush1.msra.mxu0 %v64
  %507 = vmatprep.subr.mxu0 %v69
  %508 = vmatpush1.msra.mxu0 %v68
  %509 = vmatprep.subr.mxu0 %v73
  %510 = vmatpush1.msra.mxu0 %v72
  %511 = vmatprep.subr.mxu0 %v77
  %512 = vmatpush1.msra.mxu0 %v76
  %513 = vmatprep.subr.mxu0 %v81
  %514 = vmatpush1.msra.mxu0 %v80
  %515 = vmatprep.subr.mxu0 %v85
  %516 = vmatpush1.msra.mxu0 %v84
  %517 = vmatprep.subr.mxu0 %v89
  %518 = vmatpush1.msra.mxu0 %v88
  %519 = vmatprep.subr.mxu0 %v93
  %520 = vmatpush1.msra.mxu0 %v92
  %521 = vmatprep.subr.mxu0 %v97
  %522 = vmatpush1.msra.mxu0 %v96
  %523 = vmatprep.subr.mxu0 %v101
  %524 = vmatpush1.msra.mxu0 %v100
  %525 = vmatprep.subr.mxu0 %v105
  %526 = vmatpush1.msra.mxu0 %v104
  %527 = vmatprep.subr.mxu0 %v109
  %528 = vmatpush1.msra.mxu0 %v108
  %529 = vmatprep.subr.mxu0 %v113
  %530 = vmatpush1.msra.mxu0 %v112
  %531 = vmatprep.subr.mxu0 %v117
  %532 = vmatpush1.msra.mxu0 %v116
  %533 = vmatprep.subr.mxu0 %v121
  %534 = vmatpush1.msra.mxu0 %v120
  %535 = vmatprep.subr.mxu0 %v125
  %536 = vmatpush1.msra.mxu0 %v124
  %537 = vmatprep.subr.mxu0 %v129
  %538 = vmatpush1.msra.mxu0 %v128
  %539 = vmatprep.subr.mxu0 %v133
  %540 = vmatpush1.msra.mxu0 %v132
  %541 = vmatprep.subr.mxu0 %v137
  %542 = vmatpush1.msra.mxu0 %v136
  %543 = vmatprep.subr.mxu0 %v141
  %544 = vmatpush1.msra.mxu0 %v140
  %545 = vmatprep.mubr.f32.mxu0 %v159
  %546 = vmatmul.mubr.f32.gmra.mrb[0].mxu0 %v158
  %v547 = vpop.f32.mrb[0].mxu0
  %v548 = vadd.f32 %v193, %v547
  %v549 = vpop.f32.mrb[0].mxu0
  %v550 = vadd.f32 %v193, %v549
  %551 = vmatprep.mubr.f32.mxu0 %v162
  %552 = vmatmul.mubr.f32.gmra.mrb[0].mxu0 %v161
  %v553 = vpop.f32.mrb[0].mxu0
  %v554 = vadd.f32 %v198, %v553
  %v555 = vpop.f32.mrb[0].mxu0
  %v556 = vadd.f32 %v198, %v555
  %557 = vmatprep.mubr.f32.mxu0 %v165
  %558 = vmatmul.mubr.f32.gmra.mrb[0].mxu0 %v164
  %v559 = vpop.f32.mrb[0].mxu0
  %v560 = vadd.f32 %v203, %v559
  %v561 = vpop.f32.mrb[0].mxu0
  %v562 = vadd.f32 %v203, %v561
  %563 = vmatprep.mubr.f32.mxu0 %v168
  %564 = vmatmul.mubr.f32.gmra.mrb[0].mxu0 %v167
  %v565 = vpop.f32.mrb[0].mxu0
  %v566 = vadd.f32 %v208, %v565
  %v567 = vpop.f32.mrb[0].mxu0
  %v568 = vadd.f32 %v208, %v567
  %569 = vmatprep.mubr.f32.mxu0 %v171
  %570 = vmatmul.mubr.f32.gmra.mrb[0].mxu0 %v170
  %v571 = vpop.f32.mrb[0].mxu0
  %v572 = vadd.f32 %v213, %v571
  %v573 = vpop.f32.mrb[0].mxu0
  %v574 = vadd.f32 %v213, %v573
  %575 = vmatprep.mubr.f32.mxu0 %v174
  %576 = vmatmul.mubr.f32.gmra.mrb[0].mxu0 %v173
  %v577 = vpop.f32.mrb[0].mxu0
  %v578 = vadd.f32 %v218, %v577
  %v579 = vpop.f32.mrb[0].mxu0
  %v580 = vadd.f32 %v218, %v579
  %581 = vmatprep.mubr.f32.mxu0 %v177
  %582 = vmatmul.mubr.f32.gmra.mrb[0].mxu0 %v176
  %v583 = vpop.f32.mrb[0].mxu0
  %v584 = vadd.f32 %v223, %v583
  %v585 = vpop.f32.mrb[0].mxu0
  %v586 = vadd.f32 %v223, %v585
  %587 = vmatprep.mubr.f32.mxu0 %v180
  %588 = vmatmul.mubr.f32.gmra.mrb[0].mxu0 %v179
  %v589 = vpop.f32.mrb[0].mxu0
  %v590 = vadd.f32 %v228, %v589
  %v591 = vpop.f32.mrb[0].mxu0
  %v592 = vadd.f32 %v228, %v591
  %593 = vdwg.mxu0
  %594 = vmatprep.subr.mxu0 %v145
  %595 = vmatpush1.msra.mxu0 %v144
  %596 = vmatprep.subr.mxu0 %v149
  %597 = vmatpush1.msra.mxu0 %v148
  %598 = vmatprep.subr.mxu0 %v153
  %599 = vmatpush1.msra.mxu0 %v152
  %600 = vmatprep.subr.mxu0 %v157
  %601 = vmatpush1.msra.mxu0 %v156
  %602 = vmatprep.subr.mxu0 0.0
  %603 = vmatpush1.msra.mxu0 0.0
  %604 = vmatprep.subr.mxu0 0.0
  %605 = vmatpush1.msra.mxu0 0.0
  %606 = vmatprep.subr.mxu0 0.0
  %607 = vmatpush1.msra.mxu0 0.0
  %608 = vmatprep.subr.mxu0 0.0
  %609 = vmatpush1.msra.mxu0 0.0
  %610 = vmatprep.subr.mxu0 0.0
  %611 = vmatpush1.msra.mxu0 0.0
  %612 = vmatprep.subr.mxu0 0.0
  %613 = vmatpush1.msra.mxu0 0.0
  %614 = vmatprep.subr.mxu0 0.0
  %615 = vmatpush1.msra.mxu0 0.0
  %616 = vmatprep.subr.mxu0 0.0
  %617 = vmatpush1.msra.mxu0 0.0
  %618 = vmatprep.subr.mxu0 0.0
  %619 = vmatpush1.msra.mxu0 0.0
  %620 = vmatprep.subr.mxu0 0.0
  %621 = vmatpush1.msra.mxu0 0.0
  %622 = vmatprep.subr.mxu0 0.0
  %623 = vmatpush1.msra.mxu0 0.0
  %624 = vmatprep.subr.mxu0 0.0
  %625 = vmatpush1.msra.mxu0 0.0
  %626 = vmatprep.subr.mxu0 0.0
  %627 = vmatpush1.msra.mxu0 0.0
  %628 = vmatprep.subr.mxu0 0.0
  %629 = vmatpush1.msra.mxu0 0.0
  %630 = vmatprep.subr.mxu0 0.0
  %631 = vmatpush1.msra.mxu0 0.0
  %632 = vmatprep.subr.mxu0 0.0
  %633 = vmatpush1.msra.mxu0 0.0
  %634 = vmatprep.subr.mxu0 0.0
  %635 = vmatpush1.msra.mxu0 0.0
  %636 = vmatprep.subr.mxu0 0.0
  %637 = vmatpush1.msra.mxu0 0.0
  %638 = vmatprep.subr.mxu0 0.0
  %639 = vmatpush1.msra.mxu0 0.0
  %640 = vmatprep.subr.mxu0 0.0
  %641 = vmatpush1.msra.mxu0 0.0
  %642 = vmatprep.subr.mxu0 0.0
  %643 = vmatpush1.msra.mxu0 0.0
  %644 = vmatprep.subr.mxu0 0.0
  %645 = vmatpush1.msra.mxu0 0.0
  %646 = vmatprep.subr.mxu0 0.0
  %647 = vmatpush1.msra.mxu0 0.0
  %648 = vmatprep.subr.mxu0 0.0
  %649 = vmatpush1.msra.mxu0 0.0
  %650 = vmatprep.subr.mxu0 0.0
  %651 = vmatpush1.msra.mxu0 0.0
  %652 = vmatprep.subr.mxu0 0.0
  %653 = vmatpush1.msra.mxu0 0.0
  %654 = vmatprep.subr.mxu0 0.0
  %655 = vmatpush1.msra.mxu0 0.0
  %656 = vmatprep.subr.mxu0 0.0
  %657 = vmatpush1.msra.mxu0 0.0
  %658 = vmatprep.mubr.f32.mxu0 0.0
  %659 = vmatmul.mubr.f32.gmra.mrb[0].mxu0 %v232
  %v660 = vpop.f32.mrb[0].mxu0
  %v661 = vadd.f32 %v548, %v660
  %v662 = vpop.f32.mrb[0].mxu0
  %v663 = vadd.f32 %v550, %v662
  %664 = vmatprep.mubr.f32.mxu0 0.0
  %665 = vmatmul.mubr.f32.gmra.mrb[0].mxu0 %v235
  %v666 = vpop.f32.mrb[0].mxu0
  %v667 = vadd.f32 %v554, %v666
  %v668 = vpop.f32.mrb[0].mxu0
  %v669 = vadd.f32 %v556, %v668
  %670 = vmatprep.mubr.f32.mxu0 0.0
  %671 = vmatmul.mubr.f32.gmra.mrb[0].mxu0 %v238
  %v672 = vpop.f32.mrb[0].mxu0
  %v673 = vadd.f32 %v560, %v672
  %v674 = vpop.f32.mrb[0].mxu0
  %v675 = vadd.f32 %v562, %v674
  %676 = vmatprep.mubr.f32.mxu0 0.0
  %677 = vmatmul.mubr.f32.gmra.mrb[0].mxu0 %v241
  %v678 = vpop.f32.mrb[0].mxu0
  %v679 = vadd.f32 %v566, %v678
  %v680 = vpop.f32.mrb[0].mxu0
  %v681 = vadd.f32 %v568, %v680
  %682 = vmatprep.mubr.f32.mxu0 0.0
  %683 = vmatmul.mubr.f32.gmra.mrb[0].mxu0 %v244
  %v684 = vpop.f32.mrb[0].mxu0
  %v685 = vadd.f32 %v572, %v684
  %v686 = vpop.f32.mrb[0].mxu0
  %v687 = vadd.f32 %v574, %v686
  %688 = vmatprep.mubr.f32.mxu0 0.0
  %689 = vmatmul.mubr.f32.gmra.mrb[0].mxu0 %v247
  %v690 = vpop.f32.mrb[0].mxu0
  %v691 = vadd.f32 %v578, %v690
  %v692 = vpop.f32.mrb[0].mxu0
  %v693 = vadd.f32 %v580, %v692
  %694 = vmatprep.mubr.f32.mxu0 0.0
  %695 = vmatmul.mubr.f32.gmra.mrb[0].mxu0 %v250
  %v696 = vpop.f32.mrb[0].mxu0
  %v697 = vadd.f32 %v584, %v696
  %v698 = vpop.f32.mrb[0].mxu0
  %v699 = vadd.f32 %v586, %v698
  %700 = vmatprep.mubr.f32.mxu0 0.0
  %701 = vmatmul.mubr.f32.gmra.mrb[0].mxu0 %v253
  %v702 = vpop.f32.mrb[0].mxu0
  %v703 = vadd.f32 %v590, %v702
  %v704 = vpop.f32.mrb[0].mxu0
  %v705 = vadd.f32 %v592, %v704
  %706 = vdwg.mxu0
  %v707 = vmax.f32 %v435, 0.0
  %v708 = vmax.f32 %v437, 0.0
  %v709 = vmax.f32 %v661, 0.0
  %v710 = vmax.f32 %v663, 0.0
  %v711 = vmax.f32 %v441, 0.0
  %v712 = vmax.f32 %v443, 0.0
  %v713 = vmax.f32 %v667, 0.0
  %v714 = vmax.f32 %v669, 0.0
  %v715 = vmax.f32 %v447, 0.0
  %v716 = vmax.f32 %v449, 0.0
  %v717 = vmax.f32 %v673, 0.0
  %v718 = vmax.f32 %v675, 0.0
  %v719 = vmax.f32 %v453, 0.0
  %v720 = vmax.f32 %v455, 0.0
  %v721 = vmax.f32 %v679, 0.0
  %v722 = vmax.f32 %v681, 0.0
  %v723 = vmax.f32 %v459, 0.0
  %v724 = vmax.f32 %v461, 0.0
  %v725 = vmax.f32 %v685, 0.0
  %v726 = vmax.f32 %v687, 0.0
  %v727 = vmax.f32 %v465, 0.0
  %v728 = vmax.f32 %v467, 0.0
  %v729 = vmax.f32 %v691, 0.0
  %v730 = vmax.f32 %v693, 0.0
  %v731 = vmax.f32 %v471, 0.0
  %v732 = vmax.f32 %v473, 0.0
  %v733 = vmax.f32 %v697, 0.0
  %v734 = vmax.f32 %v699, 0.0
  %v735 = vmax.f32 %v477, 0.0
  %v736 = vmax.f32 %v479, 0.0
  %v737 = vmax.f32 %v703, 0.0
  %v738 = vmax.f32 %v705, 0.0
  %739 = vst [vmem:[%s3] sm:$0xff] %v707
  %740 = vst [vmem:[%s3 + $0x8] sm:$0xff] %v708
  %741 = vst [vmem:[%s3 + $0x10] sm:$0xff] %v709
  %742 = vst [vmem:[%s3 + $0x18] sm:$0xff] %v710
  %743 = vst [vmem:[%s3 + $0x20] sm:$0xff] %v711
  %744 = vst [vmem:[%s3 + $0x28] sm:$0xff] %v712
  %745 = vst [vmem:[%s3 + $0x30] sm:$0xff] %v713
  %746 = vst [vmem:[%s3 + $0x38] sm:$0xff] %v714
  %747 = vst [vmem:[%s3 + $0x40] sm:$0xff] %v715
  %748 = vst [vmem:[%s3 + $0x48] sm:$0xff] %v716
  %749 = vst [vmem:[%s3 + $0x50] sm:$0xff] %v717
  %750 = vst [vmem:[%s3 + $0x58] sm:$0xff] %v718
  %751 = vst [vmem:[%s3 + $0x60] sm:$0xff] %v719
  %752 = vst [vmem:[%s3 + $0x68] sm:$0xff] %v720
  %753 = vst [vmem:[%s3 + $0x70] sm:$0xff] %v721
  %754 = vst [vmem:[%s3 + $0x78] sm:$0xff] %v722
  %755 = vst [vmem:[%s3 + $0x80] sm:$0xff] %v723
  %756 = vst [vmem:[%s3 + $0x88] sm:$0xff] %v724
  %757 = vst [vmem:[%s3 + $0x90] sm:$0xff] %v725
  %758 = vst [vmem:[%s3 + $0x98] sm:$0xff] %v726
  %759 = vst [vmem:[%s3 + $0xa0] sm:$0xff] %v727
  %760 = vst [vmem:[%s3 + $0xa8] sm:$0xff] %v728
  %761 = vst [vmem:[%s3 + $0xb0] sm:$0xff] %v729
  %762 = vst [vmem:[%s3 + $0xb8] sm:$0xff] %v730
  %763 = vst [vmem:[%s3 + $0xc0] sm:$0xff] %v731
  %764 = vst [vmem:[%s3 + $0xc8] sm:$0xff] %v732
  %765 = vst [vmem:[%s3 + $0xd0] sm:$0xff] %v733
  %766 = vst [vmem:[%s3 + $0xd8] sm:$0xff] %v734
  %767 = vst [vmem:[%s3 + $0xe0] sm:$0xff] %v735
  %768 = vst [vmem:[%s3 + $0xe8] sm:$0xff] %v736
  %769 = vst [vmem:[%s3 + $0xf0] sm:$0xff] %v737
  %770 = vst [vmem:[%s3 + $0xf8] sm:$0xff] %v738
  // Predicated region
  $region14: #{decoder_forward.8} parent=0 // pred_check
    _
  $region15: #{decoder_forward.8} parent=0 // pred_check_branch
    %772 = sbr.rel (0) target = $region17
  $region16: #{decoder_forward.8} parent=0 // pred_region
    _
  $region17: #{decoder_forward.8} parent=0 // pred_fallthru
    _
  // Predicated region
  $region18: #{decoder_forward.8} parent=0 // pred_check
    _
  $region19: #{decoder_forward.8} parent=0 // pred_check_branch
    %774 = sbr.rel (0) target = $region21
  $region20: #{decoder_forward.8} parent=0 // pred_region
    _
  $region21: #{decoder_forward.8} parent=0 // pred_fallthru
    _

// kernel: tile.18
$region0: #{tile.18}
  #allocation0 [shape = 's32[1]{0}', space=sflag, size = 0x4, scoped, tag = 'scoped memory for tile.18']
  %s0 = inlined_call_operand.vmem [shape: f32[3], index: 0, kind: input, shape index: {}]
  %s1 = inlined_call_operand.vmem [shape: f32[4,3], index: 1, kind: output, shape index: {}]
  // Predicated region
  $region2: #{tile.18} parent=0 // pred_check
    _
  $region3: #{tile.18} parent=0 // pred_check_branch
    %3 = sbr.rel (0) target = $region5
  $region4: #{tile.18} parent=0 // pred_region
    _
  $region5: #{tile.18} parent=0 // pred_fallthru
    _
  %v4 = vld [vmem:[%s0] ss:$0 sm:$0xff]
  %5 = vst [vmem:[%s1] sm:$0xf] %v4

// kernel: tile.1
$region0: #{tile.1}
  %s0 = inlined_call_operand.vmem [shape: f32[4,3], index: 0, kind: input, shape index: {}]
  %s1 = inlined_call_operand.vmem [shape: f32[12,1], index: 1, kind: output, shape index: {}]
  $region1: #{tile.1} parent=0
    #allocation0 [shape = 'u8[4096]{0}', space=vmem, size = 0x1000, scoped, tag = 'scoped mem for input reshape']
    %s3 = sshllo.u32 0, 4
    %v4 = vld [vmem:[%s0] sm:%s3]
    %5 = vst [vmem:[#allocation0] sm:%s3] %v4
    %v6 = vld [vmem:[#allocation0] sm:$0xf]
    %vm7 = vcmask 7168
    %8 = vst.msk [vmem:[%s1] ss:$3 sm:$0xf] %vm7, %v6
    %v9 = vld [vmem:[#allocation0] sm:$0xf]
    %10 = vrot.lane.b32.xlu0 %v9, 127
    %v11 = vpop.permute.xlu0 %10
    %vm12 = vcmask 7168
    %s13 = scalar_lea.vmem %s1, 1
    %14 = vst.msk [vmem:[%s13] ss:$3 sm:$0xf] %vm12, %v11
    %v15 = vld [vmem:[#allocation0] sm:$0xf]
    %16 = vrot.lane.b32.xlu0 %v15, 126
    %v17 = vpop.permute.xlu0 %16
    %vm18 = vcmask 7168
    %s19 = scalar_lea.vmem %s1, 2
    %20 = vst.msk [vmem:[%s19] ss:$3 sm:$0xf] %vm18, %v17

// kernel: decoder_forward.9
$region0: #{decoder_forward.9}
  #allocation0 [shape = 'u32[]', space=smem, size = 0x4, offset = 0x4, fixed_abs, tag = 'smem constant byte address 0x4 - core index']
  #allocation1 [shape = 'u32[144,128]{1,0:T(1,128)}', space=vmem, size = 0x12000, scoped, tag = 'internal scratch']
  %s0 = inlined_call_operand.vmem [shape: f32[12,144], index: 0, kind: input, shape index: {}]
  %s1 = inlined_call_operand.vmem [shape: f32[144,2048], index: 1, kind: input, shape index: {}]
  %s2 = inlined_call_operand.vmem [shape: f32[12,1], index: 2, kind: input, shape index: {}]
  %s3 = inlined_call_operand.vmem [shape: f32[12,2048], index: 3, kind: output, shape index: {}]
  %s4 = sld [smem:[#allocation0]]
  $region87: #{decoder_forward.9} parent=0
    _
  %s6 = ssub.s32 1, %s4
  %s7 = scalar_select 0, %s6, %s4
  $region1: #{decoder_forward.9} parent=0
    #allocation2 [shape = 'u8[1179648]{0}', space=vmem, size = 0x120000, scoped, tag = 'input window, operand 1']
    #allocation3 [shape = 'u8[131072]{0}', space=vmem, size = 0x20000, scoped, tag = 'output window, operand 0']
    loop: start=0, step=1, limit=4
    $region2: #{decoder_forward.9} parent=1 // loop_pre_header
      _
    $region3: #{decoder_forward.9} parent=1 // loop_header
      %s9 = sphi 0, %s13
      %p10 = scmp.ge.s32.totalorder %s9, 4
      %s17 = sphi 0, %s17
      %s19 = sphi 0, %s17
      %s20 = sphi 0, %s19
      %s34 = sphi 0, %s20
      %s40 = sphi 0, %s42
      %s43 = sphi 0, %s40
      %s44 = sphi 0, %s43
      %s60 = sphi 0, %s44
      %s64 = sphi 0, %s64
      %s66 = sphi 0, %s64
      %s67 = sphi 0, %s66
      %s81 = sphi 0, %s67
      %s87 = sphi 0, %s89
      %s90 = sphi 0, %s87
      %s91 = sphi 0, %s90
      %s107 = sphi 0, %s91
    $region4: #{decoder_forward.9} parent=1 // loop_header_branch
      %12 = sbr.rel (%p10) target = $region8
    $region5: #{decoder_forward.9} parent=1 // loop_body
      %s14 = ssub.s32 %s9, 1
      %s15 = ssub.s32 %s9, 2
      %s16 = sadd.s32 %s9, 1
      %s18 = sadd.s32 %s17, 1
      %p21 = scmp.eq.s32.totalorder %s9, 1
      %p22 = scmp.ne.s32.totalorder %s17, %s19
      %p23 = scmp.eq.s32.totalorder %s9, 0
      %p24 = por %p22, %p23
      %p25 = scmp.ne.s32.totalorder %s17, %s19
      %p26 = scmp.eq.s32.totalorder %s14, 1
      %p27 = por %p25, %p26
      %p28 = scmp.ne.s32.totalorder %s19, %s20
      %p29 = scmp.eq.s32.totalorder %s14, 0
      %p30 = por %p28, %p29
      %p31 = scmp.ne.s32.totalorder %s19, %s20
      %p32 = scmp.eq.s32.totalorder %s15, 1
      %p33 = por %p31, %p32
      %p35 = scmp.ne.s32.totalorder %s20, %s34
      %p36 = scmp.eq.s32.totalorder %s15, 0
      %p37 = por %p35, %p36
      %s38 = ssub.s32 %s9, %s16
      %p39 = scmp.eq.s32.totalorder %s38, 0
      %s41 = sadd.s32 %s40, 1
      %s42 = scalar_select %p39, %s40, %s41
      %p45 = pneg %p39
      %p46 = scmp.eq.s32.totalorder %s9, 1
      %p47 = por %p45, %p46
      %p48 = scmp.ne.s32.totalorder %s40, %s43
      %p49 = scmp.eq.s32.totalorder %s9, 0
      %p50 = por %p48, %p49
      %p51 = scmp.ne.s32.totalorder %s40, %s43
      %p52 = scmp.eq.s32.totalorder %s14, 1
      %p53 = por %p51, %p52
      %p54 = scmp.ne.s32.totalorder %s43, %s44
      %p55 = scmp.eq.s32.totalorder %s14, 0
      %p56 = por %p54, %p55
      %p57 = scmp.ne.s32.totalorder %s43, %s44
      %p58 = scmp.eq.s32.totalorder %s15, 1
      %p59 = por %p57, %p58
      %p61 = scmp.ne.s32.totalorder %s44, %s60
      %p62 = scmp.eq.s32.totalorder %s15, 0
      %p63 = por %p61, %p62
      %s65 = sadd.s32 %s64, 1
      %p68 = scmp.eq.s32.totalorder %s9, 1
      %p69 = scmp.ne.s32.totalorder %s64, %s66
      %p70 = scmp.eq.s32.totalorder %s9, 0
      %p71 = por %p69, %p70
      %p72 = scmp.ne.s32.totalorder %s64, %s66
      %p73 = scmp.eq.s32.totalorder %s14, 1
      %p74 = por %p72, %p73
      %p75 = scmp.ne.s32.totalorder %s66, %s67
      %p76 = scmp.eq.s32.totalorder %s14, 0
      %p77 = por %p75, %p76
      %p78 = scmp.ne.s32.totalorder %s66, %s67
      %p79 = scmp.eq.s32.totalorder %s15, 1
      %p80 = por %p78, %p79
      %p82 = scmp.ne.s32.totalorder %s67, %s81
      %p83 = scmp.eq.s32.totalorder %s15, 0
      %p84 = por %p82, %p83
      %s85 = ssub.s32 %s9, %s16
      %p86 = scmp.eq.s32.totalorder %s85, 0
      %s88 = sadd.s32 %s87, 1
      %s89 = scalar_select %p86, %s87, %s88
      %p92 = pneg %p86
      %p93 = scmp.eq.s32.totalorder %s9, 1
      %p94 = por %p92, %p93
      %p95 = scmp.ne.s32.totalorder %s87, %s90
      %p96 = scmp.eq.s32.totalorder %s9, 0
      %p97 = por %p95, %p96
      %p98 = scmp.ne.s32.totalorder %s87, %s90
      %p99 = scmp.eq.s32.totalorder %s14, 1
      %p100 = por %p98, %p99
      %p101 = scmp.ne.s32.totalorder %s90, %s91
      %p102 = scmp.eq.s32.totalorder %s14, 0
      %p103 = por %p101, %p102
      %p104 = scmp.ne.s32.totalorder %s90, %s91
      %p105 = scmp.eq.s32.totalorder %s15, 1
      %p106 = por %p104, %p105
      %p108 = scmp.ne.s32.totalorder %s91, %s107
      %p109 = scmp.eq.s32.totalorder %s15, 0
      %p110 = por %p108, %p109
      %p111 = scmp.le.s32.totalorder 1, %s9
      %p112 = scmp.lt.s32.totalorder %s9, 3
      %p113 = pnand %p111, %p112
      %p114 = pneg %p113
      // Predicated region
      $region9: #{decoder_forward.9} parent=5 // pred_check
        _
      $region10: #{decoder_forward.9} parent=5 // pred_check_branch
        %116 = sbr.rel (%p113) target = $region12
      $region11: #{decoder_forward.9} parent=5 // pred_region
        %s117 = ssub.s32 %s9, 1
        // Predicated region
        $region13: #{decoder_forward.9} parent=11 // pred_check
          %p118 = pneg %p30
        $region14: #{decoder_forward.9} parent=11 // pred_check_branch
          %120 = sbr.rel (%p118) target = $region16
        $region15: #{decoder_forward.9} parent=11 // pred_region
          _
        $region16: #{decoder_forward.9} parent=11 // pred_fallthru
          _
        // Predicated region
        $region17: #{decoder_forward.9} parent=11 // pred_check
          %p121 = pneg %p77
        $region18: #{decoder_forward.9} parent=11 // pred_check_branch
          %123 = sbr.rel (%p121) target = $region20
        $region19: #{decoder_forward.9} parent=11 // pred_region
          _
        $region20: #{decoder_forward.9} parent=11 // pred_fallthru
          _
      $region12: #{decoder_forward.9} parent=5 // pred_fallthru
        _
      %p124 = scmp.lt.s32.totalorder %s9, 2
      // Predicated region
      $region21: #{decoder_forward.9} parent=5 // pred_check
        %p125 = pneg %p124
      $region22: #{decoder_forward.9} parent=5 // pred_check_branch
        %127 = sbr.rel (%p125) target = $region24
      $region23: #{decoder_forward.9} parent=5 // pred_region
        // Predicated region
        $region25: #{decoder_forward.9} parent=23 // pred_check
          %p128 = pneg %p50
        $region26: #{decoder_forward.9} parent=23 // pred_check_branch
          %130 = sbr.rel (%p128) target = $region28
        $region27: #{decoder_forward.9} parent=23 // pred_region
          %s131 = sand.u32 %s40, 1
          %s132 = sand.u32 %s40, 1
          %s133 = smul.addr %s132, 1152
          %s134 = scalar_lea.vmem [#allocation2], %s133
          %s135 = smul.u32 8, %s9
          %s136 = smul.addr %s135, 8
          %s137 = scalar_lea.vmem %s1, %s136
          // Predicated region
          $region29: #{decoder_forward.9} parent=27 // pred_check
            _
          $region30: #{decoder_forward.9} parent=27 // pred_check_branch
            %139 = sbr.rel (0) target = $region32
          $region31: #{decoder_forward.9} parent=27 // pred_region
            // Predicated region
            $region33: #{decoder_forward.9} parent=31 // pred_check
              _
            $region34: #{decoder_forward.9} parent=31 // pred_check_branch
              %141 = sbr.rel (0) target = $region36
            $region35: #{decoder_forward.9} parent=31 // pred_region
              loop: start=0, step=1, limit=1
              $region37: #{decoder_forward.9} parent=35 // loop_pre_header
                _
              $region38: #{decoder_forward.9} parent=35 // loop_header
                %s143 = sphi 0, %s147
                %p144 = scmp.ge.s32.totalorder %s143, 1
                %s148 = sphi %s137, %s137
                %s149 = sphi %s134, %s134
              $region39: #{decoder_forward.9} parent=35 // loop_header_branch
                %146 = sbr.rel (%p144) target = $region43
              $region40: #{decoder_forward.9} parent=35 // loop_body
                %v150 = vld [vmem:[%s148] sm:$0xff]
                %151 = vst [vmem:[%s149] sm:$0xff] %v150
                %v152 = vld [vmem:[%s148 + $0x8] sm:$0xff]
                %153 = vst [vmem:[%s149 + $0x8] sm:$0xff] %v152
                %v154 = vld [vmem:[%s148 + $0x10] sm:$0xff]
                %155 = vst [vmem:[%s149 + $0x10] sm:$0xff] %v154
                %v156 = vld [vmem:[%s148 + $0x18] sm:$0xff]
                %157 = vst [vmem:[%s149 + $0x18] sm:$0xff] %v156
                %v158 = vld [vmem:[%s148 + $0x20] sm:$0xff]
                %159 = vst [vmem:[%s149 + $0x20] sm:$0xff] %v158
                %v160 = vld [vmem:[%s148 + $0x28] sm:$0xff]
                %161 = vst [vmem:[%s149 + $0x28] sm:$0xff] %v160
                %v162 = vld [vmem:[%s148 + $0x30] sm:$0xff]
                %163 = vst [vmem:[%s149 + $0x30] sm:$0xff] %v162
                %v164 = vld [vmem:[%s148 + $0x38] sm:$0xff]
                %165 = vst [vmem:[%s149 + $0x38] sm:$0xff] %v164
                %v166 = vld [vmem:[%s148 + $0x80] sm:$0xff]
                %167 = vst [vmem:[%s149 + $0x40] sm:$0xff] %v166
                %v168 = vld [vmem:[%s148 + $0x88] sm:$0xff]
                %169 = vst [vmem:[%s149 + $0x48] sm:$0xff] %v168
                %v170 = vld [vmem:[%s148 + $0x90] sm:$0xff]
                %171 = vst [vmem:[%s149 + $0x50] sm:$0xff] %v170
                %v172 = vld [vmem:[%s148 + $0x98] sm:$0xff]
                %173 = vst [vmem:[%s149 + $0x58] sm:$0xff] %v172
                %v174 = vld [vmem:[%s148 + $0xa0] sm:$0xff]
                %175 = vst [vmem:[%s149 + $0x60] sm:$0xff] %v174
                %v176 = vld [vmem:[%s148 + $0xa8] sm:$0xff]
                %177 = vst [vmem:[%s149 + $0x68] sm:$0xff] %v176
                %v178 = vld [vmem:[%s148 + $0xb0] sm:$0xff]
                %179 = vst [vmem:[%s149 + $0x70] sm:$0xff] %v178
                %v180 = vld [vmem:[%s148 + $0xb8] sm:$0xff]
                %181 = vst [vmem:[%s149 + $0x78] sm:$0xff] %v180
                %v182 = vld [vmem:[%s148 + $0x100] sm:$0xff]
                %183 = vst [vmem:[%s149 + $0x80] sm:$0xff] %v182
                %v184 = vld [vmem:[%s148 + $0x108] sm:$0xff]
                %185 = vst [vmem:[%s149 + $0x88] sm:$0xff] %v184
                %v186 = vld [vmem:[%s148 + $0x110] sm:$0xff]
                %187 = vst [vmem:[%s149 + $0x90] sm:$0xff] %v186
                %v188 = vld [vmem:[%s148 + $0x118] sm:$0xff]
                %189 = vst [vmem:[%s149 + $0x98] sm:$0xff] %v188
                %v190 = vld [vmem:[%s148 + $0x120] sm:$0xff]
                %191 = vst [vmem:[%s149 + $0xa0] sm:$0xff] %v190
                %v192 = vld [vmem:[%s148 + $0x128] sm:$0xff]
                %193 = vst [vmem:[%s149 + $0xa8] sm:$0xff] %v192
                %v194 = vld [vmem:[%s148 + $0x130] sm:$0xff]
                %195 = vst [vmem:[%s149 + $0xb0] sm:$0xff] %v194
                %v196 = vld [vmem:[%s148 + $0x138] sm:$0xff]
                %197 = vst [vmem:[%s149 + $0xb8] sm:$0xff] %v196
                %v198 = vld [vmem:[%s148 + $0x180] sm:$0xff]
                %199 = vst [vmem:[%s149 + $0xc0] sm:$0xff] %v198
                %v200 = vld [vmem:[%s148 + $0x188] sm:$0xff]
                %201 = vst [vmem:[%s149 + $0xc8] sm:$0xff] %v200
                %v202 = vld [vmem:[%s148 + $0x190] sm:$0xff]
                %203 = vst [vmem:[%s149 + $0xd0] sm:$0xff] %v202
                %v204 = vld [vmem:[%s148 + $0x198] sm:$0xff]
                %205 = vst [vmem:[%s149 + $0xd8] sm:$0xff] %v204
                %v206 = vld [vmem:[%s148 + $0x1a0] sm:$0xff]
                %207 = vst [vmem:[%s149 + $0xe0] sm:$0xff] %v206
                %v208 = vld [vmem:[%s148 + $0x1a8] sm:$0xff]
                %209 = vst [vmem:[%s149 + $0xe8] sm:$0xff] %v208
                %v210 = vld [vmem:[%s148 + $0x1b0] sm:$0xff]
                %211 = vst [vmem:[%s149 + $0xf0] sm:$0xff] %v210
                %v212 = vld [vmem:[%s148 + $0x1b8] sm:$0xff]
                %213 = vst [vmem:[%s149 + $0xf8] sm:$0xff] %v212
                %v214 = vld [vmem:[%s148 + $0x200] sm:$0xff]
                %215 = vst [vmem:[%s149 + $0x100] sm:$0xff] %v214
                %v216 = vld [vmem:[%s148 + $0x208] sm:$0xff]
                %217 = vst [vmem:[%s149 + $0x108] sm:$0xff] %v216
                %v218 = vld [vmem:[%s148 + $0x210] sm:$0xff]
                %219 = vst [vmem:[%s149 + $0x110] sm:$0xff] %v218
                %v220 = vld [vmem:[%s148 + $0x218] sm:$0xff]
                %221 = vst [vmem:[%s149 + $0x118] sm:$0xff] %v220
                %v222 = vld [vmem:[%s148 + $0x220] sm:$0xff]
                %223 = vst [vmem:[%s149 + $0x120] sm:$0xff] %v222
                %v224 = vld [vmem:[%s148 + $0x228] sm:$0xff]
                %225 = vst [vmem:[%s149 + $0x128] sm:$0xff] %v224
                %v226 = vld [vmem:[%s148 + $0x230] sm:$0xff]
                %227 = vst [vmem:[%s149 + $0x130] sm:$0xff] %v226
                %v228 = vld [vmem:[%s148 + $0x238] sm:$0xff]
                %229 = vst [vmem:[%s149 + $0x138] sm:$0xff] %v228
                %v230 = vld [vmem:[%s148 + $0x280] sm:$0xff]
                %231 = vst [vmem:[%s149 + $0x140] sm:$0xff] %v230
                %v232 = vld [vmem:[%s148 + $0x288] sm:$0xff]
                %233 = vst [vmem:[%s149 + $0x148] sm:$0xff] %v232
                %v234 = vld [vmem:[%s148 + $0x290] sm:$0xff]
                %235 = vst [vmem:[%s149 + $0x150] sm:$0xff] %v234
                %v236 = vld [vmem:[%s148 + $0x298] sm:$0xff]
                %237 = vst [vmem:[%s149 + $0x158] sm:$0xff] %v236
                %v238 = vld [vmem:[%s148 + $0x2a0] sm:$0xff]
                %239 = vst [vmem:[%s149 + $0x160] sm:$0xff] %v238
                %v240 = vld [vmem:[%s148 + $0x2a8] sm:$0xff]
                %241 = vst [vmem:[%s149 + $0x168] sm:$0xff] %v240
                %v242 = vld [vmem:[%s148 + $0x2b0] sm:$0xff]
                %243 = vst [vmem:[%s149 + $0x170] sm:$0xff] %v242
                %v244 = vld [vmem:[%s148 + $0x2b8] sm:$0xff]
                %245 = vst [vmem:[%s149 + $0x178] sm:$0xff] %v244
                %v246 = vld [vmem:[%s148 + $0x300] sm:$0xff]
                %247 = vst [vmem:[%s149 + $0x180] sm:$0xff] %v246
                %v248 = vld [vmem:[%s148 + $0x308] sm:$0xff]
                %249 = vst [vmem:[%s149 + $0x188] sm:$0xff] %v248
                %v250 = vld [vmem:[%s148 + $0x310] sm:$0xff]
                %251 = vst [vmem:[%s149 + $0x190] sm:$0xff] %v250
                %v252 = vld [vmem:[%s148 + $0x318] sm:$0xff]
                %253 = vst [vmem:[%s149 + $0x198] sm:$0xff] %v252
                %v254 = vld [vmem:[%s148 + $0x320] sm:$0xff]
                %255 = vst [vmem:[%s149 + $0x1a0] sm:$0xff] %v254
                %v256 = vld [vmem:[%s148 + $0x328] sm:$0xff]
                %257 = vst [vmem:[%s149 + $0x1a8] sm:$0xff] %v256
                %v258 = vld [vmem:[%s148 + $0x330] sm:$0xff]
                %259 = vst [vmem:[%s149 + $0x1b0] sm:$0xff] %v258
                %v260 = vld [vmem:[%s148 + $0x338] sm:$0xff]
                %261 = vst [vmem:[%s149 + $0x1b8] sm:$0xff] %v260
                %v262 = vld [vmem:[%s148 + $0x380] sm:$0xff]
                %263 = vst [vmem:[%s149 + $0x1c0] sm:$0xff] %v262
                %v264 = vld [vmem:[%s148 + $0x388] sm:$0xff]
                %265 = vst [vmem:[%s149 + $0x1c8] sm:$0xff] %v264
                %v266 = vld [vmem:[%s148 + $0x390] sm:$0xff]
                %267 = vst [vmem:[%s149 + $0x1d0] sm:$0xff] %v266
                %v268 = vld [vmem:[%s148 + $0x398] sm:$0xff]
                %269 = vst [vmem:[%s149 + $0x1d8] sm:$0xff] %v268
                %v270 = vld [vmem:[%s148 + $0x3a0] sm:$0xff]
                %271 = vst [vmem:[%s149 + $0x1e0] sm:$0xff] %v270
                %v272 = vld [vmem:[%s148 + $0x3a8] sm:$0xff]
                %273 = vst [vmem:[%s149 + $0x1e8] sm:$0xff] %v272
                %v274 = vld [vmem:[%s148 + $0x3b0] sm:$0xff]
                %275 = vst [vmem:[%s149 + $0x1f0] sm:$0xff] %v274
                %v276 = vld [vmem:[%s148 + $0x3b8] sm:$0xff]
                %277 = vst [vmem:[%s149 + $0x1f8] sm:$0xff] %v276
                %v278 = vld [vmem:[%s148 + $0x400] sm:$0xff]
                %279 = vst [vmem:[%s149 + $0x200] sm:$0xff] %v278
                %v280 = vld [vmem:[%s148 + $0x408] sm:$0xff]
                %281 = vst [vmem:[%s149 + $0x208] sm:$0xff] %v280
                %v282 = vld [vmem:[%s148 + $0x410] sm:$0xff]
                %283 = vst [vmem:[%s149 + $0x210] sm:$0xff] %v282
                %v284 = vld [vmem:[%s148 + $0x418] sm:$0xff]
                %285 = vst [vmem:[%s149 + $0x218] sm:$0xff] %v284
                %v286 = vld [vmem:[%s148 + $0x420] sm:$0xff]
                %287 = vst [vmem:[%s149 + $0x220] sm:$0xff] %v286
                %v288 = vld [vmem:[%s148 + $0x428] sm:$0xff]
                %289 = vst [vmem:[%s149 + $0x228] sm:$0xff] %v288
                %v290 = vld [vmem:[%s148 + $0x430] sm:$0xff]
                %291 = vst [vmem:[%s149 + $0x230] sm:$0xff] %v290
                %v292 = vld [vmem:[%s148 + $0x438] sm:$0xff]
                %293 = vst [vmem:[%s149 + $0x238] sm:$0xff] %v292
                %v294 = vld [vmem:[%s148 + $0x480] sm:$0xff]
                %295 = vst [vmem:[%s149 + $0x240] sm:$0xff] %v294
                %v296 = vld [vmem:[%s148 + $0x488] sm:$0xff]
                %297 = vst [vmem:[%s149 + $0x248] sm:$0xff] %v296
                %v298 = vld [vmem:[%s148 + $0x490] sm:$0xff]
                %299 = vst [vmem:[%s149 + $0x250] sm:$0xff] %v298
                %v300 = vld [vmem:[%s148 + $0x498] sm:$0xff]
                %301 = vst [vmem:[%s149 + $0x258] sm:$0xff] %v300
                %v302 = vld [vmem:[%s148 + $0x4a0] sm:$0xff]
                %303 = vst [vmem:[%s149 + $0x260] sm:$0xff] %v302
                %v304 = vld [vmem:[%s148 + $0x4a8] sm:$0xff]
                %305 = vst [vmem:[%s149 + $0x268] sm:$0xff] %v304
                %v306 = vld [vmem:[%s148 + $0x4b0] sm:$0xff]
                %307 = vst [vmem:[%s149 + $0x270] sm:$0xff] %v306
                %v308 = vld [vmem:[%s148 + $0x4b8] sm:$0xff]
                %309 = vst [vmem:[%s149 + $0x278] sm:$0xff] %v308
                %v310 = vld [vmem:[%s148 + $0x500] sm:$0xff]
                %311 = vst [vmem:[%s149 + $0x280] sm:$0xff] %v310
                %v312 = vld [vmem:[%s148 + $0x508] sm:$0xff]
                %313 = vst [vmem:[%s149 + $0x288] sm:$0xff] %v312
                %v314 = vld [vmem:[%s148 + $0x510] sm:$0xff]
                %315 = vst [vmem:[%s149 + $0x290] sm:$0xff] %v314
                %v316 = vld [vmem:[%s148 + $0x518] sm:$0xff]
                %317 = vst [vmem:[%s149 + $0x298] sm:$0xff] %v316
                %v318 = vld [vmem:[%s148 + $0x520] sm:$0xff]
                %319 = vst [vmem:[%s149 + $0x2a0] sm:$0xff] %v318
                %v320 = vld [vmem:[%s148 + $0x528] sm:$0xff]
                %321 = vst [vmem:[%s149 + $0x2a8] sm:$0xff] %v320
                %v322 = vld [vmem:[%s148 + $0x530] sm:$0xff]
                %323 = vst [vmem:[%s149 + $0x2b0] sm:$0xff] %v322
                %v324 = vld [vmem:[%s148 + $0x538] sm:$0xff]
                %325 = vst [vmem:[%s149 + $0x2b8] sm:$0xff] %v324
                %v326 = vld [vmem:[%s148 + $0x580] sm:$0xff]
                %327 = vst [vmem:[%s149 + $0x2c0] sm:$0xff] %v326
                %v328 = vld [vmem:[%s148 + $0x588] sm:$0xff]
                %329 = vst [vmem:[%s149 + $0x2c8] sm:$0xff] %v328
                %v330 = vld [vmem:[%s148 + $0x590] sm:$0xff]
                %331 = vst [vmem:[%s149 + $0x2d0] sm:$0xff] %v330
                %v332 = vld [vmem:[%s148 + $0x598] sm:$0xff]
                %333 = vst [vmem:[%s149 + $0x2d8] sm:$0xff] %v332
                %v334 = vld [vmem:[%s148 + $0x5a0] sm:$0xff]
                %335 = vst [vmem:[%s149 + $0x2e0] sm:$0xff] %v334
                %v336 = vld [vmem:[%s148 + $0x5a8] sm:$0xff]
                %337 = vst [vmem:[%s149 + $0x2e8] sm:$0xff] %v336
                %v338 = vld [vmem:[%s148 + $0x5b0] sm:$0xff]
                %339 = vst [vmem:[%s149 + $0x2f0] sm:$0xff] %v338
                %v340 = vld [vmem:[%s148 + $0x5b8] sm:$0xff]
                %341 = vst [vmem:[%s149 + $0x2f8] sm:$0xff] %v340
                %v342 = vld [vmem:[%s148 + $0x600] sm:$0xff]
                %343 = vst [vmem:[%s149 + $0x300] sm:$0xff] %v342
                %v344 = vld [vmem:[%s148 + $0x608] sm:$0xff]
                %345 = vst [vmem:[%s149 + $0x308] sm:$0xff] %v344
                %v346 = vld [vmem:[%s148 + $0x610] sm:$0xff]
                %347 = vst [vmem:[%s149 + $0x310] sm:$0xff] %v346
                %v348 = vld [vmem:[%s148 + $0x618] sm:$0xff]
                %349 = vst [vmem:[%s149 + $0x318] sm:$0xff] %v348
                %v350 = vld [vmem:[%s148 + $0x620] sm:$0xff]
                %351 = vst [vmem:[%s149 + $0x320] sm:$0xff] %v350
                %v352 = vld [vmem:[%s148 + $0x628] sm:$0xff]
                %353 = vst [vmem:[%s149 + $0x328] sm:$0xff] %v352
                %v354 = vld [vmem:[%s148 + $0x630] sm:$0xff]
                %355 = vst [vmem:[%s149 + $0x330] sm:$0xff] %v354
                %v356 = vld [vmem:[%s148 + $0x638] sm:$0xff]
                %357 = vst [vmem:[%s149 + $0x338] sm:$0xff] %v356
                %v358 = vld [vmem:[%s148 + $0x680] sm:$0xff]
                %359 = vst [vmem:[%s149 + $0x340] sm:$0xff] %v358
                %v360 = vld [vmem:[%s148 + $0x688] sm:$0xff]
                %361 = vst [vmem:[%s149 + $0x348] sm:$0xff] %v360
                %v362 = vld [vmem:[%s148 + $0x690] sm:$0xff]
                %363 = vst [vmem:[%s149 + $0x350] sm:$0xff] %v362
                %v364 = vld [vmem:[%s148 + $0x698] sm:$0xff]
                %365 = vst [vmem:[%s149 + $0x358] sm:$0xff] %v364
                %v366 = vld [vmem:[%s148 + $0x6a0] sm:$0xff]
                %367 = vst [vmem:[%s149 + $0x360] sm:$0xff] %v366
                %v368 = vld [vmem:[%s148 + $0x6a8] sm:$0xff]
                %369 = vst [vmem:[%s149 + $0x368] sm:$0xff] %v368
                %v370 = vld [vmem:[%s148 + $0x6b0] sm:$0xff]
                %371 = vst [vmem:[%s149 + $0x370] sm:$0xff] %v370
                %v372 = vld [vmem:[%s148 + $0x6b8] sm:$0xff]
                %373 = vst [vmem:[%s149 + $0x378] sm:$0xff] %v372
                %v374 = vld [vmem:[%s148 + $0x700] sm:$0xff]
                %375 = vst [vmem:[%s149 + $0x380] sm:$0xff] %v374
                %v376 = vld [vmem:[%s148 + $0x708] sm:$0xff]
                %377 = vst [vmem:[%s149 + $0x388] sm:$0xff] %v376
                %v378 = vld [vmem:[%s148 + $0x710] sm:$0xff]
                %379 = vst [vmem:[%s149 + $0x390] sm:$0xff] %v378
                %v380 = vld [vmem:[%s148 + $0x718] sm:$0xff]
                %381 = vst [vmem:[%s149 + $0x398] sm:$0xff] %v380
                %v382 = vld [vmem:[%s148 + $0x720] sm:$0xff]
                %383 = vst [vmem:[%s149 + $0x3a0] sm:$0xff] %v382
                %v384 = vld [vmem:[%s148 + $0x728] sm:$0xff]
                %385 = vst [vmem:[%s149 + $0x3a8] sm:$0xff] %v384
                %v386 = vld [vmem:[%s148 + $0x730] sm:$0xff]
                %387 = vst [vmem:[%s149 + $0x3b0] sm:$0xff] %v386
                %v388 = vld [vmem:[%s148 + $0x738] sm:$0xff]
                %389 = vst [vmem:[%s149 + $0x3b8] sm:$0xff] %v388
                %v390 = vld [vmem:[%s148 + $0x780] sm:$0xff]
                %391 = vst [vmem:[%s149 + $0x3c0] sm:$0xff] %v390
                %v392 = vld [vmem:[%s148 + $0x788] sm:$0xff]
                %393 = vst [vmem:[%s149 + $0x3c8] sm:$0xff] %v392
                %v394 = vld [vmem:[%s148 + $0x790] sm:$0xff]
                %395 = vst [vmem:[%s149 + $0x3d0] sm:$0xff] %v394
                %v396 = vld [vmem:[%s148 + $0x798] sm:$0xff]
                %397 = vst [vmem:[%s149 + $0x3d8] sm:$0xff] %v396
                %v398 = vld [vmem:[%s148 + $0x7a0] sm:$0xff]
                %399 = vst [vmem:[%s149 + $0x3e0] sm:$0xff] %v398
                %v400 = vld [vmem:[%s148 + $0x7a8] sm:$0xff]
                %401 = vst [vmem:[%s149 + $0x3e8] sm:$0xff] %v400
                %v402 = vld [vmem:[%s148 + $0x7b0] sm:$0xff]
                %403 = vst [vmem:[%s149 + $0x3f0] sm:$0xff] %v402
                %v404 = vld [vmem:[%s148 + $0x7b8] sm:$0xff]
                %405 = vst [vmem:[%s149 + $0x3f8] sm:$0xff] %v404
                %v406 = vld [vmem:[%s148 + $0x800] sm:$0xff]
                %407 = vst [vmem:[%s149 + $0x400] sm:$0xff] %v406
                %v408 = vld [vmem:[%s148 + $0x808] sm:$0xff]
                %409 = vst [vmem:[%s149 + $0x408] sm:$0xff] %v408
                %v410 = vld [vmem:[%s148 + $0x810] sm:$0xff]
                %411 = vst [vmem:[%s149 + $0x410] sm:$0xff] %v410
                %v412 = vld [vmem:[%s148 + $0x818] sm:$0xff]
                %413 = vst [vmem:[%s149 + $0x418] sm:$0xff] %v412
                %v414 = vld [vmem:[%s148 + $0x820] sm:$0xff]
                %415 = vst [vmem:[%s149 + $0x420] sm:$0xff] %v414
                %v416 = vld [vmem:[%s148 + $0x828] sm:$0xff]
                %417 = vst [vmem:[%s149 + $0x428] sm:$0xff] %v416
                %v418 = vld [vmem:[%s148 + $0x830] sm:$0xff]
                %419 = vst [vmem:[%s149 + $0x430] sm:$0xff] %v418
                %v420 = vld [vmem:[%s148 + $0x838] sm:$0xff]
                %421 = vst [vmem:[%s149 + $0x438] sm:$0xff] %v420
                %v422 = vld [vmem:[%s148 + $0x880] sm:$0xff]
                %423 = vst [vmem:[%s149 + $0x440] sm:$0xff] %v422
                %v424 = vld [vmem:[%s148 + $0x888] sm:$0xff]
                %425 = vst [vmem:[%s149 + $0x448] sm:$0xff] %v424
                %v426 = vld [vmem:[%s148 + $0x890] sm:$0xff]
                %427 = vst [vmem:[%s149 + $0x450] sm:$0xff] %v426
                %v428 = vld [vmem:[%s148 + $0x898] sm:$0xff]
                %429 = vst [vmem:[%s149 + $0x458] sm:$0xff] %v428
                %v430 = vld [vmem:[%s148 + $0x8a0] sm:$0xff]
                %431 = vst [vmem:[%s149 + $0x460] sm:$0xff] %v430
                %v432 = vld [vmem:[%s148 + $0x8a8] sm:$0xff]
                %433 = vst [vmem:[%s149 + $0x468] sm:$0xff] %v432
                %v434 = vld [vmem:[%s148 + $0x8b0] sm:$0xff]
                %435 = vst [vmem:[%s149 + $0x470] sm:$0xff] %v434
                %v436 = vld [vmem:[%s148 + $0x8b8] sm:$0xff]
                %437 = vst [vmem:[%s149 + $0x478] sm:$0xff] %v436
              $region41: #{decoder_forward.9} parent=35 // loop_footer
                %s147 = sadd.s32 1, %s143
              $region42: #{decoder_forward.9} parent=35 // loop_footer_branch
                %142 = sbr.rel target = $region38
              $region43: #{decoder_forward.9} parent=35 // loop_exit
                _
            $region36: #{decoder_forward.9} parent=31 // pred_fallthru
              _
            // Predicated region
            $region44: #{decoder_forward.9} parent=31 // pred_check
              _
            $region45: #{decoder_forward.9} parent=31 // pred_check_branch
              %439 = sbr.rel target = $region47
            $region46: #{decoder_forward.9} parent=31 // pred_region
              _
            $region47: #{decoder_forward.9} parent=31 // pred_fallthru
              _
          $region32: #{decoder_forward.9} parent=27 // pred_fallthru
            _
          %440 = vnop
        $region28: #{decoder_forward.9} parent=23 // pred_fallthru
          _
      $region24: #{decoder_forward.9} parent=5 // pred_fallthru
        _
      %p441 = scmp.le.s32.totalorder 1, %s9
      %p442 = scmp.lt.s32.totalorder %s9, 3
      %p443 = pnand %p441, %p442
      %p444 = pneg %p443
      // Predicated region
      $region48: #{decoder_forward.9} parent=5 // pred_check
        _
      $region49: #{decoder_forward.9} parent=5 // pred_check_branch
        %446 = sbr.rel (%p443) target = $region51
      $region50: #{decoder_forward.9} parent=5 // pred_region
        %s447 = ssub.s32 %s9, 1
        %s448 = sand.u32 %s43, 1
        %s449 = sand.u32 %s43, 1
        %s450 = smul.addr %s449, 1152
        %s451 = scalar_lea.vmem [#allocation2], %s450
        // Predicated region
        $region52: #{decoder_forward.9} parent=50 // pred_check
          %p452 = pneg %p56
        $region53: #{decoder_forward.9} parent=50 // pred_check_branch
          %454 = sbr.rel (%p452) target = $region55
        $region54: #{decoder_forward.9} parent=50 // pred_region
          _
        $region55: #{decoder_forward.9} parent=50 // pred_fallthru
          _
        %p455 = pneg %p30
        %p456 = pneg %p27
        %s457 = sand.u32 %s43, 1
        %s458 = sand.u32 %s43, 1
        %s459 = smul.addr %s458, 1152
        %s460 = scalar_lea.vmem [#allocation2], %s459
        %p461 = pneg %p56
        %p462 = pneg %p53
        %p463 = pneg %p77
        %p464 = pneg %p74
        %p465 = pneg %p103
        %p466 = pneg %p100
        %s467 = sand.u32 %s90, 1
        %s468 = sand.u32 %s90, 1
        %s469 = smul.addr %s468, 128
        %s470 = scalar_lea.vmem [#allocation3], %s469
        %s471 = smul.u32 8, %s14
        %s472 = smul.u32 8, %s14
        %v473 = vld [vmem:[%s451] sm:$0xff]
        %v474 = vld [vmem:[%s451 + $0x8] sm:$0xff]
        %v475 = vld [vmem:[%s451 + $0x10] sm:$0xff]
        %v476 = vld [vmem:[%s451 + $0x18] sm:$0xff]
        %v477 = vld [vmem:[%s451 + $0x20] sm:$0xff]
        %v478 = vld [vmem:[%s451 + $0x28] sm:$0xff]
        %v479 = vld [vmem:[%s451 + $0x30] sm:$0xff]
        %v480 = vld [vmem:[%s451 + $0x38] sm:$0xff]
        %v481 = vld [vmem:[%s451 + $0x40] sm:$0xff]
        %v482 = vld [vmem:[%s451 + $0x48] sm:$0xff]
        %v483 = vld [vmem:[%s451 + $0x50] sm:$0xff]
        %v484 = vld [vmem:[%s451 + $0x58] sm:$0xff]
        %v485 = vld [vmem:[%s451 + $0x60] sm:$0xff]
        %v486 = vld [vmem:[%s451 + $0x68] sm:$0xff]
        %v487 = vld [vmem:[%s451 + $0x70] sm:$0xff]
        %v488 = vld [vmem:[%s451 + $0x78] sm:$0xff]
        %v489 = vld [vmem:[%s451 + $0x80] sm:$0xff]
        %v490 = vld [vmem:[%s451 + $0x88] sm:$0xff]
        %v491 = vld [vmem:[%s451 + $0x90] sm:$0xff]
        %v492 = vld [vmem:[%s451 + $0x98] sm:$0xff]
        %v493 = vld [vmem:[%s451 + $0xa0] sm:$0xff]
        %v494 = vld [vmem:[%s451 + $0xa8] sm:$0xff]
        %v495 = vld [vmem:[%s451 + $0xb0] sm:$0xff]
        %v496 = vld [vmem:[%s451 + $0xb8] sm:$0xff]
        %v497 = vld [vmem:[%s451 + $0xc0] sm:$0xff]
        %v498 = vld [vmem:[%s451 + $0xc8] sm:$0xff]
        %v499 = vld [vmem:[%s451 + $0xd0] sm:$0xff]
        %v500 = vld [vmem:[%s451 + $0xd8] sm:$0xff]
        %v501 = vld [vmem:[%s451 + $0xe0] sm:$0xff]
        %v502 = vld [vmem:[%s451 + $0xe8] sm:$0xff]
        %v503 = vld [vmem:[%s451 + $0xf0] sm:$0xff]
        %v504 = vld [vmem:[%s451 + $0xf8] sm:$0xff]
        %v505 = vld [vmem:[%s451 + $0x100] sm:$0xff]
        %v506 = vld [vmem:[%s451 + $0x108] sm:$0xff]
        %v507 = vld [vmem:[%s451 + $0x110] sm:$0xff]
        %v508 = vld [vmem:[%s451 + $0x118] sm:$0xff]
        %v509 = vld [vmem:[%s451 + $0x120] sm:$0xff]
        %v510 = vld [vmem:[%s451 + $0x128] sm:$0xff]
        %v511 = vld [vmem:[%s451 + $0x130] sm:$0xff]
        %v512 = vld [vmem:[%s451 + $0x138] sm:$0xff]
        %v513 = vld [vmem:[%s451 + $0x140] sm:$0xff]
        %v514 = vld [vmem:[%s451 + $0x148] sm:$0xff]
        %v515 = vld [vmem:[%s451 + $0x150] sm:$0xff]
        %v516 = vld [vmem:[%s451 + $0x158] sm:$0xff]
        %v517 = vld [vmem:[%s451 + $0x160] sm:$0xff]
        %v518 = vld [vmem:[%s451 + $0x168] sm:$0xff]
        %v519 = vld [vmem:[%s451 + $0x170] sm:$0xff]
        %v520 = vld [vmem:[%s451 + $0x178] sm:$0xff]
        %v521 = vld [vmem:[%s451 + $0x180] sm:$0xff]
        %v522 = vld [vmem:[%s451 + $0x188] sm:$0xff]
        %v523 = vld [vmem:[%s451 + $0x190] sm:$0xff]
        %v524 = vld [vmem:[%s451 + $0x198] sm:$0xff]
        %v525 = vld [vmem:[%s451 + $0x1a0] sm:$0xff]
        %v526 = vld [vmem:[%s451 + $0x1a8] sm:$0xff]
        %v527 = vld [vmem:[%s451 + $0x1b0] sm:$0xff]
        %v528 = vld [vmem:[%s451 + $0x1b8] sm:$0xff]
        %v529 = vld [vmem:[%s451 + $0x1c0] sm:$0xff]
        %v530 = vld [vmem:[%s451 + $0x1c8] sm:$0xff]
        %v531 = vld [vmem:[%s451 + $0x1d0] sm:$0xff]
        %v532 = vld [vmem:[%s451 + $0x1d8] sm:$0xff]
        %v533 = vld [vmem:[%s451 + $0x1e0] sm:$0xff]
        %v534 = vld [vmem:[%s451 + $0x1e8] sm:$0xff]
        %v535 = vld [vmem:[%s451 + $0x1f0] sm:$0xff]
        %v536 = vld [vmem:[%s451 + $0x1f8] sm:$0xff]
        %v537 = vld [vmem:[%s451 + $0x200] sm:$0xff]
        %v538 = vld [vmem:[%s451 + $0x208] sm:$0xff]
        %v539 = vld [vmem:[%s451 + $0x210] sm:$0xff]
        %v540 = vld [vmem:[%s451 + $0x218] sm:$0xff]
        %v541 = vld [vmem:[%s451 + $0x220] sm:$0xff]
        %v542 = vld [vmem:[%s451 + $0x228] sm:$0xff]
        %v543 = vld [vmem:[%s451 + $0x230] sm:$0xff]
        %v544 = vld [vmem:[%s451 + $0x238] sm:$0xff]
        %v545 = vld [vmem:[%s451 + $0x240] sm:$0xff]
        %v546 = vld [vmem:[%s451 + $0x248] sm:$0xff]
        %v547 = vld [vmem:[%s451 + $0x250] sm:$0xff]
        %v548 = vld [vmem:[%s451 + $0x258] sm:$0xff]
        %v549 = vld [vmem:[%s451 + $0x260] sm:$0xff]
        %v550 = vld [vmem:[%s451 + $0x268] sm:$0xff]
        %v551 = vld [vmem:[%s451 + $0x270] sm:$0xff]
        %v552 = vld [vmem:[%s451 + $0x278] sm:$0xff]
        %v553 = vld [vmem:[%s451 + $0x280] sm:$0xff]
        %v554 = vld [vmem:[%s451 + $0x288] sm:$0xff]
        %v555 = vld [vmem:[%s451 + $0x290] sm:$0xff]
        %v556 = vld [vmem:[%s451 + $0x298] sm:$0xff]
        %v557 = vld [vmem:[%s451 + $0x2a0] sm:$0xff]
        %v558 = vld [vmem:[%s451 + $0x2a8] sm:$0xff]
        %v559 = vld [vmem:[%s451 + $0x2b0] sm:$0xff]
        %v560 = vld [vmem:[%s451 + $0x2b8] sm:$0xff]
        %v561 = vld [vmem:[%s451 + $0x2c0] sm:$0xff]
        %v562 = vld [vmem:[%s451 + $0x2c8] sm:$0xff]
        %v563 = vld [vmem:[%s451 + $0x2d0] sm:$0xff]
        %v564 = vld [vmem:[%s451 + $0x2d8] sm:$0xff]
        %v565 = vld [vmem:[%s451 + $0x2e0] sm:$0xff]
        %v566 = vld [vmem:[%s451 + $0x2e8] sm:$0xff]
        %v567 = vld [vmem:[%s451 + $0x2f0] sm:$0xff]
        %v568 = vld [vmem:[%s451 + $0x2f8] sm:$0xff]
        %v569 = vld [vmem:[%s451 + $0x300] sm:$0xff]
        %v570 = vld [vmem:[%s451 + $0x308] sm:$0xff]
        %v571 = vld [vmem:[%s451 + $0x310] sm:$0xff]
        %v572 = vld [vmem:[%s451 + $0x318] sm:$0xff]
        %v573 = vld [vmem:[%s451 + $0x320] sm:$0xff]
        %v574 = vld [vmem:[%s451 + $0x328] sm:$0xff]
        %v575 = vld [vmem:[%s451 + $0x330] sm:$0xff]
        %v576 = vld [vmem:[%s451 + $0x338] sm:$0xff]
        %v577 = vld [vmem:[%s451 + $0x340] sm:$0xff]
        %v578 = vld [vmem:[%s451 + $0x348] sm:$0xff]
        %v579 = vld [vmem:[%s451 + $0x350] sm:$0xff]
        %v580 = vld [vmem:[%s451 + $0x358] sm:$0xff]
        %v581 = vld [vmem:[%s451 + $0x360] sm:$0xff]
        %v582 = vld [vmem:[%s451 + $0x368] sm:$0xff]
        %v583 = vld [vmem:[%s451 + $0x370] sm:$0xff]
        %v584 = vld [vmem:[%s451 + $0x378] sm:$0xff]
        %v585 = vld [vmem:[%s451 + $0x380] sm:$0xff]
        %v586 = vld [vmem:[%s451 + $0x388] sm:$0xff]
        %v587 = vld [vmem:[%s451 + $0x390] sm:$0xff]
        %v588 = vld [vmem:[%s451 + $0x398] sm:$0xff]
        %v589 = vld [vmem:[%s451 + $0x3a0] sm:$0xff]
        %v590 = vld [vmem:[%s451 + $0x3a8] sm:$0xff]
        %v591 = vld [vmem:[%s451 + $0x3b0] sm:$0xff]
        %v592 = vld [vmem:[%s451 + $0x3b8] sm:$0xff]
        %v593 = vld [vmem:[%s451 + $0x3c0] sm:$0xff]
        %v594 = vld [vmem:[%s451 + $0x3c8] sm:$0xff]
        %v595 = vld [vmem:[%s451 + $0x3d0] sm:$0xff]
        %v596 = vld [vmem:[%s451 + $0x3d8] sm:$0xff]
        %v597 = vld [vmem:[%s451 + $0x3e0] sm:$0xff]
        %v598 = vld [vmem:[%s451 + $0x3e8] sm:$0xff]
        %v599 = vld [vmem:[%s451 + $0x3f0] sm:$0xff]
        %v600 = vld [vmem:[%s451 + $0x3f8] sm:$0xff]
        %v601 = vld [vmem:[%s451 + $0x400] sm:$0xff]
        %v602 = vld [vmem:[%s451 + $0x408] sm:$0xff]
        %v603 = vld [vmem:[%s451 + $0x410] sm:$0xff]
        %v604 = vld [vmem:[%s451 + $0x418] sm:$0xff]
        %v605 = vld [vmem:[%s451 + $0x420] sm:$0xff]
        %v606 = vld [vmem:[%s451 + $0x428] sm:$0xff]
        %v607 = vld [vmem:[%s451 + $0x430] sm:$0xff]
        %v608 = vld [vmem:[%s451 + $0x438] sm:$0xff]
        %v609 = vld [vmem:[%s451 + $0x440] sm:$0xff]
        %v610 = vld [vmem:[%s451 + $0x448] sm:$0xff]
        %v611 = vld [vmem:[%s451 + $0x450] sm:$0xff]
        %v612 = vld [vmem:[%s451 + $0x458] sm:$0xff]
        %v613 = vld [vmem:[%s451 + $0x460] sm:$0xff]
        %v614 = vld [vmem:[%s451 + $0x468] sm:$0xff]
        %v615 = vld [vmem:[%s451 + $0x470] sm:$0xff]
        %v616 = vld [vmem:[%s451 + $0x478] sm:$0xff]
        %v617 = vld [vmem:[%s0] sm:$0xff]
        %v618 = vld [vmem:[%s0 + $0x8] sm:$0xff]
        %v619 = vld [vmem:[%s0 + $0x10] sm:$0xf]
        %v620 = vld [vmem:[%s0 + $0x18] sm:$0xf]
        %v621 = vld [vmem:[%s2] sm:$0xff]
        %v622 = vld [vmem:[%s2 + $0x8] sm:$0xf]
        %624 = vset.pattern.permute.xlu0 0
        %625 = vperm.xlu0 %624, %v621
        %v626 = vpop.permute.xlu0 %625
        %629 = vset.pattern.permute.xlu0 0
        %630 = vperm.xlu0 %629, %v622
        %v631 = vpop.permute.xlu0 %630
        %vm633 = vcmask 130048
        %v635 = vsel %vm633, %v618, 0
        %v638 = vsel %vm633, %v620, 0
        %640 = vmatprep.subr.mxu0 %v474
        %641 = vmatpush1.msra.mxu0 %v473
        %642 = vmatprep.subr.mxu0 %v482
        %643 = vmatpush1.msra.mxu0 %v481
        %644 = vmatprep.subr.mxu0 %v490
        %645 = vmatpush1.msra.mxu0 %v489
        %646 = vmatprep.subr.mxu0 %v498
        %647 = vmatpush1.msra.mxu0 %v497
        %648 = vmatprep.subr.mxu0 %v506
        %649 = vmatpush1.msra.mxu0 %v505
        %650 = vmatprep.subr.mxu0 %v514
        %651 = vmatpush1.msra.mxu0 %v513
        %652 = vmatprep.subr.mxu0 %v522
        %653 = vmatpush1.msra.mxu0 %v521
        %654 = vmatprep.subr.mxu0 %v530
        %655 = vmatpush1.msra.mxu0 %v529
        %656 = vmatprep.subr.mxu0 %v538
        %657 = vmatpush1.msra.mxu0 %v537
        %658 = vmatprep.subr.mxu0 %v546
        %659 = vmatpush1.msra.mxu0 %v545
        %660 = vmatprep.subr.mxu0 %v554
        %661 = vmatpush1.msra.mxu0 %v553
        %662 = vmatprep.subr.mxu0 %v562
        %663 = vmatpush1.msra.mxu0 %v561
        %664 = vmatprep.subr.mxu0 %v570
        %665 = vmatpush1.msra.mxu0 %v569
        %666 = vmatprep.subr.mxu0 %v578
        %667 = vmatpush1.msra.mxu0 %v577
        %668 = vmatprep.subr.mxu0 %v586
        %669 = vmatpush1.msra.mxu0 %v585
        %670 = vmatprep.subr.mxu0 %v594
        %671 = vmatpush1.msra.mxu0 %v593
        %672 = vmatprep.subr.mxu0 %v602
        %673 = vmatpush1.msra.mxu0 %v601
        %674 = vmatprep.subr.mxu0 %v610
        %675 = vmatpush1.msra.mxu0 %v609
        %676 = vmatprep.subr.mxu0 0.0
        %677 = vmatpush1.msra.mxu0 0.0
        %678 = vmatprep.subr.mxu0 0.0
        %679 = vmatpush1.msra.mxu0 0.0
        %680 = vmatprep.subr.mxu0 0.0
        %681 = vmatpush1.msra.mxu0 0.0
        %682 = vmatprep.subr.mxu0 0.0
        %683 = vmatpush1.msra.mxu0 0.0
        %684 = vmatprep.subr.mxu0 0.0
        %685 = vmatpush1.msra.mxu0 0.0
        %686 = vmatprep.subr.mxu0 0.0
        %687 = vmatpush1.msra.mxu0 0.0
        %688 = vmatprep.subr.mxu0 0.0
        %689 = vmatpush1.msra.mxu0 0.0
        %690 = vmatprep.subr.mxu0 0.0
        %691 = vmatpush1.msra.mxu0 0.0
        %692 = vmatprep.subr.mxu0 0.0
        %693 = vmatpush1.msra.mxu0 0.0
        %694 = vmatprep.subr.mxu0 0.0
        %695 = vmatpush1.msra.mxu0 0.0
        %696 = vmatprep.subr.mxu0 0.0
        %697 = vmatpush1.msra.mxu0 0.0
        %698 = vmatprep.subr.mxu0 0.0
        %699 = vmatpush1.msra.mxu0 0.0
        %700 = vmatprep.subr.mxu0 0.0
        %701 = vmatpush1.msra.mxu0 0.0
        %702 = vmatprep.subr.mxu0 0.0
        %703 = vmatpush1.msra.mxu0 0.0
        %704 = vmatprep.mubr.f32.mxu0 %v635
        %705 = vmatmul.mubr.f32.gmra.mrb[0].mxu0 %v617
        %v706 = vpop.f32.mrb[0].mxu0
        %v707 = vadd.f32 %v626, %v706
        %v708 = vpop.f32.mrb[0].mxu0
        %v709 = vadd.f32 %v626, %v708
        %710 = vmatprep.mubr.f32.mxu0 %v638
        %711 = vmatmul.mubr.f32.gmra.mrb[0].mxu0 %v619
        %v712 = vpop.f32.mrb[0].mxu0
        %v713 = vadd.f32 %v631, %v712
        %v714 = vpop.f32.mrb[0].mxu0
        %v715 = vadd.f32 %v631, %v714
        %716 = vdwg.mxu0
        %717 = vmatprep.subr.mxu0 %v476
        %718 = vmatpush1.msra.mxu0 %v475
        %719 = vmatprep.subr.mxu0 %v484
        %720 = vmatpush1.msra.mxu0 %v483
        %721 = vmatprep.subr.mxu0 %v492
        %722 = vmatpush1.msra.mxu0 %v491
        %723 = vmatprep.subr.mxu0 %v500
        %724 = vmatpush1.msra.mxu0 %v499
        %725 = vmatprep.subr.mxu0 %v508
        %726 = vmatpush1.msra.mxu0 %v507
        %727 = vmatprep.subr.mxu0 %v516
        %728 = vmatpush1.msra.mxu0 %v515
        %729 = vmatprep.subr.mxu0 %v524
        %730 = vmatpush1.msra.mxu0 %v523
        %731 = vmatprep.subr.mxu0 %v532
        %732 = vmatpush1.msra.mxu0 %v531
        %733 = vmatprep.subr.mxu0 %v540
        %734 = vmatpush1.msra.mxu0 %v539
        %735 = vmatprep.subr.mxu0 %v548
        %736 = vmatpush1.msra.mxu0 %v547
        %737 = vmatprep.subr.mxu0 %v556
        %738 = vmatpush1.msra.mxu0 %v555
        %739 = vmatprep.subr.mxu0 %v564
        %740 = vmatpush1.msra.mxu0 %v563
        %741 = vmatprep.subr.mxu0 %v572
        %742 = vmatpush1.msra.mxu0 %v571
        %743 = vmatprep.subr.mxu0 %v580
        %744 = vmatpush1.msra.mxu0 %v579
        %745 = vmatprep.subr.mxu0 %v588
        %746 = vmatpush1.msra.mxu0 %v587
        %747 = vmatprep.subr.mxu0 %v596
        %748 = vmatpush1.msra.mxu0 %v595
        %749 = vmatprep.subr.mxu0 %v604
        %750 = vmatpush1.msra.mxu0 %v603
        %751 = vmatprep.subr.mxu0 %v612
        %752 = vmatpush1.msra.mxu0 %v611
        %753 = vmatprep.subr.mxu0 0.0
        %754 = vmatpush1.msra.mxu0 0.0
        %755 = vmatprep.subr.mxu0 0.0
        %756 = vmatpush1.msra.mxu0 0.0
        %757 = vmatprep.subr.mxu0 0.0
        %758 = vmatpush1.msra.mxu0 0.0
        %759 = vmatprep.subr.mxu0 0.0
        %760 = vmatpush1.msra.mxu0 0.0
        %761 = vmatprep.subr.mxu0 0.0
        %762 = vmatpush1.msra.mxu0 0.0
        %763 = vmatprep.subr.mxu0 0.0
        %764 = vmatpush1.msra.mxu0 0.0
        %765 = vmatprep.subr.mxu0 0.0
        %766 = vmatpush1.msra.mxu0 0.0
        %767 = vmatprep.subr.mxu0 0.0
        %768 = vmatpush1.msra.mxu0 0.0
        %769 = vmatprep.subr.mxu0 0.0
        %770 = vmatpush1.msra.mxu0 0.0
        %771 = vmatprep.subr.mxu0 0.0
        %772 = vmatpush1.msra.mxu0 0.0
        %773 = vmatprep.subr.mxu0 0.0
        %774 = vmatpush1.msra.mxu0 0.0
        %775 = vmatprep.subr.mxu0 0.0
        %776 = vmatpush1.msra.mxu0 0.0
        %777 = vmatprep.subr.mxu0 0.0
        %778 = vmatpush1.msra.mxu0 0.0
        %779 = vmatprep.subr.mxu0 0.0
        %780 = vmatpush1.msra.mxu0 0.0
        %781 = vmatprep.mubr.f32.mxu0 %v635
        %782 = vmatmul.mubr.f32.gmra.mrb[0].mxu0 %v617
        %v783 = vpop.f32.mrb[0].mxu0
        %v784 = vadd.f32 %v626, %v783
        %v785 = vpop.f32.mrb[0].mxu0
        %v786 = vadd.f32 %v626, %v785
        %787 = vmatprep.mubr.f32.mxu0 %v638
        %788 = vmatmul.mubr.f32.gmra.mrb[0].mxu0 %v619
        %v789 = vpop.f32.mrb[0].mxu0
        %v790 = vadd.f32 %v631, %v789
        %v791 = vpop.f32.mrb[0].mxu0
        %v792 = vadd.f32 %v631, %v791
        %793 = vdwg.mxu0
        %794 = vmatprep.subr.mxu0 %v478
        %795 = vmatpush1.msra.mxu0 %v477
        %796 = vmatprep.subr.mxu0 %v486
        %797 = vmatpush1.msra.mxu0 %v485
        %798 = vmatprep.subr.mxu0 %v494
        %799 = vmatpush1.msra.mxu0 %v493
        %800 = vmatprep.subr.mxu0 %v502
        %801 = vmatpush1.msra.mxu0 %v501
        %802 = vmatprep.subr.mxu0 %v510
        %803 = vmatpush1.msra.mxu0 %v509
        %804 = vmatprep.subr.mxu0 %v518
        %805 = vmatpush1.msra.mxu0 %v517
        %806 = vmatprep.subr.mxu0 %v526
        %807 = vmatpush1.msra.mxu0 %v525
        %808 = vmatprep.subr.mxu0 %v534
        %809 = vmatpush1.msra.mxu0 %v533
        %810 = vmatprep.subr.mxu0 %v542
        %811 = vmatpush1.msra.mxu0 %v541
        %812 = vmatprep.subr.mxu0 %v550
        %813 = vmatpush1.msra.mxu0 %v549
        %814 = vmatprep.subr.mxu0 %v558
        %815 = vmatpush1.msra.mxu0 %v557
        %816 = vmatprep.subr.mxu0 %v566
        %817 = vmatpush1.msra.mxu0 %v565
        %818 = vmatprep.subr.mxu0 %v574
        %819 = vmatpush1.msra.mxu0 %v573
        %820 = vmatprep.subr.mxu0 %v582
        %821 = vmatpush1.msra.mxu0 %v581
        %822 = vmatprep.subr.mxu0 %v590
        %823 = vmatpush1.msra.mxu0 %v589
        %824 = vmatprep.subr.mxu0 %v598
        %825 = vmatpush1.msra.mxu0 %v597
        %826 = vmatprep.subr.mxu0 %v606
        %827 = vmatpush1.msra.mxu0 %v605
        %828 = vmatprep.subr.mxu0 %v614
        %829 = vmatpush1.msra.mxu0 %v613
        %830 = vmatprep.subr.mxu0 0.0
        %831 = vmatpush1.msra.mxu0 0.0
        %832 = vmatprep.subr.mxu0 0.0
        %833 = vmatpush1.msra.mxu0 0.0
        %834 = vmatprep.subr.mxu0 0.0
        %835 = vmatpush1.msra.mxu0 0.0
        %836 = vmatprep.subr.mxu0 0.0
        %837 = vmatpush1.msra.mxu0 0.0
        %838 = vmatprep.subr.mxu0 0.0
        %839 = vmatpush1.msra.mxu0 0.0
        %840 = vmatprep.subr.mxu0 0.0
        %841 = vmatpush1.msra.mxu0 0.0
        %842 = vmatprep.subr.mxu0 0.0
        %843 = vmatpush1.msra.mxu0 0.0
        %844 = vmatprep.subr.mxu0 0.0
        %845 = vmatpush1.msra.mxu0 0.0
        %846 = vmatprep.subr.mxu0 0.0
        %847 = vmatpush1.msra.mxu0 0.0
        %848 = vmatprep.subr.mxu0 0.0
        %849 = vmatpush1.msra.mxu0 0.0
        %850 = vmatprep.subr.mxu0 0.0
        %851 = vmatpush1.msra.mxu0 0.0
        %852 = vmatprep.subr.mxu0 0.0
        %853 = vmatpush1.msra.mxu0 0.0
        %854 = vmatprep.subr.mxu0 0.0
        %855 = vmatpush1.msra.mxu0 0.0
        %856 = vmatprep.subr.mxu0 0.0
        %857 = vmatpush1.msra.mxu0 0.0
        %858 = vmatprep.mubr.f32.mxu0 %v635
        %859 = vmatmul.mubr.f32.gmra.mrb[0].mxu0 %v617
        %v860 = vpop.f32.mrb[0].mxu0
        %v861 = vadd.f32 %v626, %v860
        %v862 = vpop.f32.mrb[0].mxu0
        %v863 = vadd.f32 %v626, %v862
        %864 = vmatprep.mubr.f32.mxu0 %v638
        %865 = vmatmul.mubr.f32.gmra.mrb[0].mxu0 %v619
        %v866 = vpop.f32.mrb[0].mxu0
        %v867 = vadd.f32 %v631, %v866
        %v868 = vpop.f32.mrb[0].mxu0
        %v869 = vadd.f32 %v631, %v868
        %870 = vdwg.mxu0
        %871 = vmatprep.subr.mxu0 %v480
        %872 = vmatpush1.msra.mxu0 %v479
        %873 = vmatprep.subr.mxu0 %v488
        %874 = vmatpush1.msra.mxu0 %v487
        %875 = vmatprep.subr.mxu0 %v496
        %876 = vmatpush1.msra.mxu0 %v495
        %877 = vmatprep.subr.mxu0 %v504
        %878 = vmatpush1.msra.mxu0 %v503
        %879 = vmatprep.subr.mxu0 %v512
        %880 = vmatpush1.msra.mxu0 %v511
        %881 = vmatprep.subr.mxu0 %v520
        %882 = vmatpush1.msra.mxu0 %v519
        %883 = vmatprep.subr.mxu0 %v528
        %884 = vmatpush1.msra.mxu0 %v527
        %885 = vmatprep.subr.mxu0 %v536
        %886 = vmatpush1.msra.mxu0 %v535
        %887 = vmatprep.subr.mxu0 %v544
        %888 = vmatpush1.msra.mxu0 %v543
        %889 = vmatprep.subr.mxu0 %v552
        %890 = vmatpush1.msra.mxu0 %v551
        %891 = vmatprep.subr.mxu0 %v560
        %892 = vmatpush1.msra.mxu0 %v559
        %893 = vmatprep.subr.mxu0 %v568
        %894 = vmatpush1.msra.mxu0 %v567
        %895 = vmatprep.subr.mxu0 %v576
        %896 = vmatpush1.msra.mxu0 %v575
        %897 = vmatprep.subr.mxu0 %v584
        %898 = vmatpush1.msra.mxu0 %v583
        %899 = vmatprep.subr.mxu0 %v592
        %900 = vmatpush1.msra.mxu0 %v591
        %901 = vmatprep.subr.mxu0 %v600
        %902 = vmatpush1.msra.mxu0 %v599
        %903 = vmatprep.subr.mxu0 %v608
        %904 = vmatpush1.msra.mxu0 %v607
        %905 = vmatprep.subr.mxu0 %v616
        %906 = vmatpush1.msra.mxu0 %v615
        %907 = vmatprep.subr.mxu0 0.0
        %908 = vmatpush1.msra.mxu0 0.0
        %909 = vmatprep.subr.mxu0 0.0
        %910 = vmatpush1.msra.mxu0 0.0
        %911 = vmatprep.subr.mxu0 0.0
        %912 = vmatpush1.msra.mxu0 0.0
        %913 = vmatprep.subr.mxu0 0.0
        %914 = vmatpush1.msra.mxu0 0.0
        %915 = vmatprep.subr.mxu0 0.0
        %916 = vmatpush1.msra.mxu0 0.0
        %917 = vmatprep.subr.mxu0 0.0
        %918 = vmatpush1.msra.mxu0 0.0
        %919 = vmatprep.subr.mxu0 0.0
        %920 = vmatpush1.msra.mxu0 0.0
        %921 = vmatprep.subr.mxu0 0.0
        %922 = vmatpush1.msra.mxu0 0.0
        %923 = vmatprep.subr.mxu0 0.0
        %924 = vmatpush1.msra.mxu0 0.0
        %925 = vmatprep.subr.mxu0 0.0
        %926 = vmatpush1.msra.mxu0 0.0
        %927 = vmatprep.subr.mxu0 0.0
        %928 = vmatpush1.msra.mxu0 0.0
        %929 = vmatprep.subr.mxu0 0.0
        %930 = vmatpush1.msra.mxu0 0.0
        %931 = vmatprep.subr.mxu0 0.0
        %932 = vmatpush1.msra.mxu0 0.0
        %933 = vmatprep.subr.mxu0 0.0
        %934 = vmatpush1.msra.mxu0 0.0
        %935 = vmatprep.mubr.f32.mxu0 %v635
        %936 = vmatmul.mubr.f32.gmra.mrb[0].mxu0 %v617
        %v937 = vpop.f32.mrb[0].mxu0
        %v938 = vadd.f32 %v626, %v937
        %v939 = vpop.f32.mrb[0].mxu0
        %v940 = vadd.f32 %v626, %v939
        %941 = vmatprep.mubr.f32.mxu0 %v638
        %942 = vmatmul.mubr.f32.gmra.mrb[0].mxu0 %v619
        %v943 = vpop.f32.mrb[0].mxu0
        %v944 = vadd.f32 %v631, %v943
        %v945 = vpop.f32.mrb[0].mxu0
        %v946 = vadd.f32 %v631, %v945
        %947 = vdwg.mxu0
        %948 = vst [vmem:[%s470] sm:$0xff] %v707
        %949 = vst [vmem:[%s470 + $0x8] sm:$0xff] %v709
        %950 = vst [vmem:[%s470 + $0x10] sm:$0xff] %v784
        %951 = vst [vmem:[%s470 + $0x18] sm:$0xff] %v786
        %952 = vst [vmem:[%s470 + $0x20] sm:$0xff] %v861
        %953 = vst [vmem:[%s470 + $0x28] sm:$0xff] %v863
        %954 = vst [vmem:[%s470 + $0x30] sm:$0xff] %v938
        %955 = vst [vmem:[%s470 + $0x38] sm:$0xff] %v940
        %956 = vst [vmem:[%s470 + $0x40] sm:$0xf] %v713
        %957 = vst [vmem:[%s470 + $0x48] sm:$0xf] %v715
        %958 = vst [vmem:[%s470 + $0x50] sm:$0xf] %v790
        %959 = vst [vmem:[%s470 + $0x58] sm:$0xf] %v792
        %960 = vst [vmem:[%s470 + $0x60] sm:$0xf] %v867
        %961 = vst [vmem:[%s470 + $0x68] sm:$0xf] %v869
        %962 = vst [vmem:[%s470 + $0x70] sm:$0xf] %v944
        %963 = vst [vmem:[%s470 + $0x78] sm:$0xf] %v946
        %s964 = sand.u32 %s90, 1
        %s965 = sand.u32 %s90, 1
        %s966 = smul.addr %s965, 128
        %s967 = scalar_lea.vmem [#allocation3], %s966
        // Predicated region
        $region56: #{decoder_forward.9} parent=50 // pred_check
          %p968 = pneg %p100
        $region57: #{decoder_forward.9} parent=50 // pred_check_branch
          %970 = sbr.rel (%p968) target = $region59
        $region58: #{decoder_forward.9} parent=50 // pred_region
          %s971 = smul.u32 8, %s14
          %s972 = smul.addr %s971, 8
          %s973 = scalar_lea.vmem %s3, %s972
          // Predicated region
          $region60: #{decoder_forward.9} parent=58 // pred_check
            _
          $region61: #{decoder_forward.9} parent=58 // pred_check_branch
            %975 = sbr.rel (0) target = $region63
          $region62: #{decoder_forward.9} parent=58 // pred_region
            // Predicated region
            $region64: #{decoder_forward.9} parent=62 // pred_check
              _
            $region65: #{decoder_forward.9} parent=62 // pred_check_branch
              %977 = sbr.rel (0) target = $region67
            $region66: #{decoder_forward.9} parent=62 // pred_region
              loop: start=0, step=1, limit=1
              $region68: #{decoder_forward.9} parent=66 // loop_pre_header
                _
              $region69: #{decoder_forward.9} parent=66 // loop_header
                %s979 = sphi 0, %s983
                %p980 = scmp.ge.s32.totalorder %s979, 1
                %s984 = sphi %s967, %s967
                %s985 = sphi %s973, %s973
              $region70: #{decoder_forward.9} parent=66 // loop_header_branch
                %982 = sbr.rel (%p980) target = $region74
              $region71: #{decoder_forward.9} parent=66 // loop_body
                %v986 = vld [vmem:[%s984] sm:$0xff]
                %987 = vst [vmem:[%s985] sm:$0xff] %v986
                %v988 = vld [vmem:[%s984 + $0x8] sm:$0xff]
                %989 = vst [vmem:[%s985 + $0x8] sm:$0xff] %v988
                %v990 = vld [vmem:[%s984 + $0x10] sm:$0xff]
                %991 = vst [vmem:[%s985 + $0x10] sm:$0xff] %v990
                %v992 = vld [vmem:[%s984 + $0x18] sm:$0xff]
                %993 = vst [vmem:[%s985 + $0x18] sm:$0xff] %v992
                %v994 = vld [vmem:[%s984 + $0x20] sm:$0xff]
                %995 = vst [vmem:[%s985 + $0x20] sm:$0xff] %v994
                %v996 = vld [vmem:[%s984 + $0x28] sm:$0xff]
                %997 = vst [vmem:[%s985 + $0x28] sm:$0xff] %v996
                %v998 = vld [vmem:[%s984 + $0x30] sm:$0xff]
                %999 = vst [vmem:[%s985 + $0x30] sm:$0xff] %v998
                %v1000 = vld [vmem:[%s984 + $0x38] sm:$0xff]
                %1001 = vst [vmem:[%s985 + $0x38] sm:$0xff] %v1000
                %v1002 = vld [vmem:[%s984 + $0x40] sm:$0xff]
                %1003 = vst [vmem:[%s985 + $0x80] sm:$0xff] %v1002
                %v1004 = vld [vmem:[%s984 + $0x48] sm:$0xff]
                %1005 = vst [vmem:[%s985 + $0x88] sm:$0xff] %v1004
                %v1006 = vld [vmem:[%s984 + $0x50] sm:$0xff]
                %1007 = vst [vmem:[%s985 + $0x90] sm:$0xff] %v1006
                %v1008 = vld [vmem:[%s984 + $0x58] sm:$0xff]
                %1009 = vst [vmem:[%s985 + $0x98] sm:$0xff] %v1008
                %v1010 = vld [vmem:[%s984 + $0x60] sm:$0xff]
                %1011 = vst [vmem:[%s985 + $0xa0] sm:$0xff] %v1010
                %v1012 = vld [vmem:[%s984 + $0x68] sm:$0xff]
                %1013 = vst [vmem:[%s985 + $0xa8] sm:$0xff] %v1012
                %v1014 = vld [vmem:[%s984 + $0x70] sm:$0xff]
                %1015 = vst [vmem:[%s985 + $0xb0] sm:$0xff] %v1014
                %v1016 = vld [vmem:[%s984 + $0x78] sm:$0xff]
                %1017 = vst [vmem:[%s985 + $0xb8] sm:$0xff] %v1016
              $region72: #{decoder_forward.9} parent=66 // loop_footer
                %s983 = sadd.s32 1, %s979
              $region73: #{decoder_forward.9} parent=66 // loop_footer_branch
                %978 = sbr.rel target = $region69
              $region74: #{decoder_forward.9} parent=66 // loop_exit
                _
            $region67: #{decoder_forward.9} parent=62 // pred_fallthru
              _
            // Predicated region
            $region75: #{decoder_forward.9} parent=62 // pred_check
              _
            $region76: #{decoder_forward.9} parent=62 // pred_check_branch
              %1019 = sbr.rel target = $region78
            $region77: #{decoder_forward.9} parent=62 // pred_region
              _
            $region78: #{decoder_forward.9} parent=62 // pred_fallthru
              _
          $region63: #{decoder_forward.9} parent=58 // pred_fallthru
            _
          %1020 = vnop
        $region59: #{decoder_forward.9} parent=50 // pred_fallthru
          _
      $region51: #{decoder_forward.9} parent=5 // pred_fallthru
        _
      %p1021 = scmp.le.s32.totalorder 2, %s9
      // Predicated region
      $region79: #{decoder_forward.9} parent=5 // pred_check
        %p1022 = pneg %p1021
      $region80: #{decoder_forward.9} parent=5 // pred_check_branch
        %1024 = sbr.rel (%p1022) target = $region82
      $region81: #{decoder_forward.9} parent=5 // pred_region
        %s1025 = ssub.s32 %s9, 2
        // Predicated region
        $region83: #{decoder_forward.9} parent=81 // pred_check
          %p1026 = pneg %p106
        $region84: #{decoder_forward.9} parent=81 // pred_check_branch
          %1028 = sbr.rel (%p1026) target = $region86
        $region85: #{decoder_forward.9} parent=81 // pred_region
          %s1029 = sand.u32 %s91, 1
          %s1030 = sand.u32 %s91, 1
          %s1031 = smul.addr %s1030, 128
          %s1032 = scalar_lea.vmem [#allocation3], %s1031
        $region86: #{decoder_forward.9} parent=81 // pred_fallthru
          _
      $region82: #{decoder_forward.9} parent=5 // pred_fallthru
        _
    $region6: #{decoder_forward.9} parent=1 // loop_footer
      %s13 = sadd.s32 1, %s9
    $region7: #{decoder_forward.9} parent=1 // loop_footer_branch
      %8 = sbr.rel target = $region3
    $region8: #{decoder_forward.9} parent=1 // loop_exit
      _

</llo_original>
